<compile_context>
chip_gen: v7x
topology: tpu7x:2x2x1
jax: 0.10.0
libtpu: 0.0.40
codegen_flags: <defaults>
</compile_context>

<pallas_src>
import functools

import jax
import jax.numpy as jnp
from jax.experimental import pallas as pl
from jax.experimental.pallas import tpu as pltpu

_BF16 = jnp.bfloat16
_VMEM_LIMIT = 32 * 1024 * 1024  # within scoped/physical limits on v5e/v6e/v7x


def _cparams(*sems):
    return pltpu.CompilerParams(dimension_semantics=sems,
                                vmem_limit_bytes=_VMEM_LIMIT)


# --------------------------------------------------------------------------
# Tiling helpers
# --------------------------------------------------------------------------
def _row_tile(n):
    for t in (256, 128, 64, 32, 16, 8):       # capped at 256 (v7x VMEM budget)
        if n % t == 0:
            return t
    return n                                   # full dim fallback


def _col_tile(n):
    for t in (512, 256, 128):
        if n % t == 0:
            return t
    return n                                   # full dim (single lane-dense block)


# --------------------------------------------------------------------------
# In-kernel building blocks (values in f32, MXU operands in bf16)
# --------------------------------------------------------------------------
def _layernorm(z, g, b):
    mean = jnp.mean(z, axis=-1, keepdims=True)
    var = jnp.mean((z - mean) ** 2, axis=-1, keepdims=True)
    return (z - mean) * jax.lax.rsqrt(var + 1e-5) * g + b


def _bd_attention(q, k, v, head_mask, scale):
    """out = (Q K^T * scale) @ V, reassociated as scale * Q @ (K^T V (.) blockdiag).

    Mathematically identical to the per-head reference computation because the
    reference applies NO softmax and the masked_fill result is discarded."""
    kv = jax.lax.dot_general(k, v, (((0,), (0,)), ((), ())),
                             preferred_element_type=jnp.float32)   # (C, C) = K^T V
    kv = kv * head_mask                                            # per-head block-diag
    out = jnp.dot(q.astype(_BF16), kv.astype(_BF16),
                  preferred_element_type=jnp.float32)
    return out * scale


def _ffn(x_f32, w1_ref, b1_ref, w2_ref, b2_ref):
    """relu(x@W1+b1)@W2 + b2, hidden dim processed in <=512-wide chunks so the
    (T, 4C) f32 intermediate never materializes in full."""
    T = x_f32.shape[0]
    H = w1_ref.shape[-1]
    Cout = w2_ref.shape[-1]
    xb = x_f32.astype(_BF16)
    chunk = min(H, 512)
    acc = jnp.zeros((T, Cout), jnp.float32)
    for c0 in range(0, H, chunk):
        c1 = min(c0 + chunk, H)
        h = jnp.dot(xb, w1_ref[:, c0:c1],
                    preferred_element_type=jnp.float32) + b1_ref[:, c0:c1]
        h = jnp.maximum(h, 0.0)
        acc = acc + jnp.dot(h.astype(_BF16), w2_ref[c0:c1, :],
                            preferred_element_type=jnp.float32)
    return acc + b2_ref[...]


# --------------------------------------------------------------------------
# Fused encoder block kernel (one pallas_call per block, grid over batch)
# --------------------------------------------------------------------------
def _encode_block_kernel(x_ref, mask_ref, wqkv_ref, bqkv_ref, wproj_ref,
                         bproj_ref, w1_ref, b1_ref, w2_ref, b2_ref,
                         lng_ref, lnb_ref, out_ref, k_ref, v_ref, *, n_heads):
    C = x_ref.shape[-1]
    hs = C // n_heads
    scale = float(hs) ** -0.5
    xb = x_ref[0]                                   # (T, C) bf16
    x = xb.astype(jnp.float32)
    mask = mask_ref[...]
    lng = lng_ref[...]
    lnb = lnb_ref[...]

    qkv = jnp.dot(xb, wqkv_ref[...],
                  preferred_element_type=jnp.float32) + bqkv_ref[...]   # (T, 3C)
    q = qkv[:, :C]
    k = qkv[:, C:2 * C]
    v = qkv[:, 2 * C:]
    k_ref[0] = k.astype(k_ref.dtype)                # encoder K/V outputs (parity)
    v_ref[0] = v.astype(v_ref.dtype)

    attn = _bd_attention(q, k, v, mask, scale)      # (T, C), no mask/softmax
    proj = jnp.dot(attn.astype(_BF16), wproj_ref[...],
                   preferred_element_type=jnp.float32) + bproj_ref[...]
    out1 = _layernorm(x + proj, lng[0:1], lnb[0:1])         # ln1(x + proj)

    y = _ffn(out1, w1_ref, b1_ref, w2_ref, b2_ref)
    z = _layernorm(out1 + y, lng[1:2], lnb[1:2])            # FeedForward.ln
    out = _layernorm(out1 + z, lng[2:3], lnb[2:3])          # ln2
    out_ref[0] = out.astype(out_ref.dtype)


def encode_block(p, x, head_mask, n_heads):
    B, T, C = x.shape
    H = p["w1"].shape[-1]
    C3 = 3 * C
    const = lambda b: (0, 0)
    batch3 = lambda b: (b, 0, 0)
    kern = functools.partial(_encode_block_kernel, n_heads=n_heads)
    return pl.pallas_call(
        kern,
        grid=(B,),
        out_shape=(jax.ShapeDtypeStruct((B, T, C), _BF16),
                   jax.ShapeDtypeStruct((B, T, C), _BF16),
                   jax.ShapeDtypeStruct((B, T, C), _BF16)),
        in_specs=[
            pl.BlockSpec((1, T, C), batch3),       # x
            pl.BlockSpec((C, C), const),           # block-diag head mask
            pl.BlockSpec((C, C3), const),          # wqkv
            pl.BlockSpec((1, C3), const),          # bqkv
            pl.BlockSpec((C, C), const),           # wproj
            pl.BlockSpec((1, C), const),           # bproj
            pl.BlockSpec((C, H), const),           # w1
            pl.BlockSpec((1, H), const),           # b1
            pl.BlockSpec((H, C), const),           # w2
            pl.BlockSpec((1, C), const),           # b2
            pl.BlockSpec((3, C), const),           # LN gammas [ln1, ffwd.ln, ln2]
            pl.BlockSpec((3, C), const),           # LN betas
        ],
        out_specs=(pl.BlockSpec((1, T, C), batch3),
                   pl.BlockSpec((1, T, C), batch3),
                   pl.BlockSpec((1, T, C), batch3)),
        compiler_params=_cparams("parallel"),
    )(x, head_mask, p["wqkv"], p["bqkv"], p["wproj"], p["bproj"],
      p["w1"], p["b1"], p["w2"], p["b2"], p["ln_g"], p["ln_b"])


# --------------------------------------------------------------------------
# Fused decoder block kernel (self-attn + cross-attn + FFN in one call)
# --------------------------------------------------------------------------
def _decode_block_kernel(x_ref, ke_ref, ve_ref, mask_ref,
                         wqkv_ref, bqkv_ref, wproj1_ref, bproj1_ref,
                         wc_ref, bc_ref, wproj2_ref, bproj2_ref,
                         w1_ref, b1_ref, w2_ref, b2_ref,
                         lng_ref, lnb_ref, out_ref, *, n_heads):
    C = x_ref.shape[-1]
    hs = C // n_heads
    scale = float(hs) ** -0.5
    xb = x_ref[0]                                   # (T, C) bf16
    x = xb.astype(jnp.float32)
    mask = mask_ref[...]
    lng = lng_ref[...]
    lnb = lnb_ref[...]

    # "masked" self-attention branch (mask/softmax are parity no-ops)
    qkv = jnp.dot(xb, wqkv_ref[...],
                  preferred_element_type=jnp.float32) + bqkv_ref[...]
    attn = _bd_attention(qkv[:, :C], qkv[:, C:2 * C], qkv[:, 2 * C:], mask, scale)
    proj1 = jnp.dot(attn.astype(_BF16), wproj1_ref[...],
                    preferred_element_type=jnp.float32) + bproj1_ref[...]
    out1 = _layernorm(x + proj1, lng[0:1], lnb[0:1])        # ln1

    # cross-attention: Q from out1, K/V projected from the encoder's K/V
    wc = wc_ref[...]
    bc = bc_ref[...]
    q_c = jnp.dot(out1.astype(_BF16), wc[:, :C],
                  preferred_element_type=jnp.float32) + bc[:, :C]
    k_c = jnp.dot(ke_ref[0], wc[:, C:2 * C],
                  preferred_element_type=jnp.float32) + bc[:, C:2 * C]
    v_c = jnp.dot(ve_ref[0], wc[:, 2 * C:],
                  preferred_element_type=jnp.float32) + bc[:, 2 * C:]
    attn_c = _bd_attention(q_c, k_c, v_c, mask, scale)
    proj2 = jnp.dot(attn_c.astype(_BF16), wproj2_ref[...],
                    preferred_element_type=jnp.float32) + bproj2_ref[...]
    out2 = _layernorm(out1 + proj2, lng[1:2], lnb[1:2])     # ln2

    y = _ffn(out2, w1_ref, b1_ref, w2_ref, b2_ref)
    z = _layernorm(out2 + y, lng[2:3], lnb[2:3])            # FeedForward.ln
    out = _layernorm(out2 + z, lng[3:4], lnb[3:4])          # ln3
    out_ref[0] = out.astype(out_ref.dtype)


def decode_block(p, x, k_enc, v_enc, head_mask, n_heads):
    B, T, C = x.shape
    Ts = k_enc.shape[1]
    H = p["w1"].shape[-1]
    C3 = 3 * C
    const = lambda b: (0, 0)
    batch3 = lambda b: (b, 0, 0)
    kern = functools.partial(_decode_block_kernel, n_heads=n_heads)
    return pl.pallas_call(
        kern,
        grid=(B,),
        out_shape=jax.ShapeDtypeStruct((B, T, C), _BF16),
        in_specs=[
            pl.BlockSpec((1, T, C), batch3),       # x
            pl.BlockSpec((1, Ts, C), batch3),      # encoder K
            pl.BlockSpec((1, Ts, C), batch3),      # encoder V
            pl.BlockSpec((C, C), const),           # head mask
            pl.BlockSpec((C, C3), const),          # wqkv (masked self-attn)
            pl.BlockSpec((1, C3), const),
            pl.BlockSpec((C, C), const),           # wproj1
            pl.BlockSpec((1, C), const),
            pl.BlockSpec((C, C3), const),          # wc = [Wq_c | Wk_c | Wv_c]
            pl.BlockSpec((1, C3), const),
            pl.BlockSpec((C, C), const),           # wproj2
            pl.BlockSpec((1, C), const),
            pl.BlockSpec((C, H), const),           # w1
            pl.BlockSpec((1, H), const),
            pl.BlockSpec((H, C), const),           # w2
            pl.BlockSpec((1, C), const),
            pl.BlockSpec((4, C), const),           # LN gammas [ln1, ln2, ffwd.ln, ln3]
            pl.BlockSpec((4, C), const),           # LN betas
        ],
        out_specs=pl.BlockSpec((1, T, C), batch3),
        compiler_params=_cparams("parallel"),
    )(x, k_enc, v_enc, head_mask,
      p["wqkv_m"], p["bqkv_m"], p["wproj1"], p["bproj1"],
      p["wc"], p["bc"], p["wproj2"], p["bproj2"],
      p["w1"], p["b1"], p["w2"], p["b2"], p["ln_g"], p["ln_b"])


# --------------------------------------------------------------------------
# LM head (tiled linear) + online-LSE cross entropy (vocab-tiled)
# --------------------------------------------------------------------------
def _linear_kernel(x_ref, w_ref, b_ref, o_ref):
    o_ref[...] = (jnp.dot(x_ref[...].astype(_BF16), w_ref[...],
                          preferred_element_type=jnp.float32) + b_ref[...])


def linear2d(x, w, b2d):
    N, Din = x.shape
    Dout = w.shape[1]
    tm, tn = _row_tile(N), _col_tile(Dout)
    return pl.pallas_call(
        _linear_kernel,
        grid=(N // tm, Dout // tn),
        out_shape=jax.ShapeDtypeStruct((N, Dout), jnp.float32),
        in_specs=[
            pl.BlockSpec((tm, Din), lambda i, j: (i, 0)),
            pl.BlockSpec((Din, tn), lambda i, j: (0, j)),
            pl.BlockSpec((1, tn), lambda i, j: (0, j)),
        ],
        out_specs=pl.BlockSpec((tm, tn), lambda i, j: (i, j)),
        compiler_params=_cparams("parallel", "parallel"),
    )(x, w, b2d)


def _ce_kernel(logits_ref, tgt_ref, nll_ref, m_sc, l_sc, p_sc):
    j = pl.program_id(1)
    tv = logits_ref.shape[-1]

    @pl.when(j == 0)
    def _():
        m_sc[...] = jnp.full_like(m_sc, -jnp.inf)
        l_sc[...] = jnp.zeros_like(l_sc)
        p_sc[...] = jnp.zeros_like(p_sc)

    logits = logits_ref[...]                        # (tm, tv) f32
    tgt = tgt_ref[...]                              # (tm, 1) int32
    m_prev = m_sc[...]
    m_new = jnp.maximum(m_prev, jnp.max(logits, axis=-1, keepdims=True))
    l_sc[...] = (l_sc[...] * jnp.exp(m_prev - m_new)
                 + jnp.sum(jnp.exp(logits - m_new), axis=-1, keepdims=True))
    m_sc[...] = m_new
    iota = jax.lax.broadcasted_iota(jnp.int32, logits.shape, 1) + j * tv
    p_sc[...] += jnp.sum(jnp.where(iota == tgt, logits, 0.0),
                         axis=-1, keepdims=True)

    @pl.when(j == pl.num_programs(1) - 1)
    def _():
        nll_ref[...] = m_sc[...] + jnp.log(l_sc[...]) - p_sc[...]


def cross_entropy(logits2d, targets1d):
    N, V = logits2d.shape
    tm = _row_tile(N)
    tv = _col_tile(V)
    nll = pl.pallas_call(
        _ce_kernel,
        grid=(N // tm, V // tv),
        out_shape=jax.ShapeDtypeStruct((N, 1), jnp.float32),
        in_specs=[
            pl.BlockSpec((tm, tv), lambda i, j: (i, j)),
            pl.BlockSpec((tm, 1), lambda i, j: (i, 0)),
        ],
        out_specs=pl.BlockSpec((tm, 1), lambda i, j: (i, 0)),
        scratch_shapes=[pltpu.VMEM((tm, 1), jnp.float32)] * 3,
        compiler_params=_cparams("parallel", "arbitrary"),
    )(logits2d, targets1d.reshape(N, 1).astype(jnp.int32))
    return jnp.mean(nll)


# --------------------------------------------------------------------------
# Parameter init (mirrors nn.Module __init__; per-head weights fused at init)
# --------------------------------------------------------------------------
class _Init:
    def __init__(self, key):
        self.key = key

    def _next(self):
        self.key, sub = jax.random.split(self.key)
        return sub

    def dense(self, din, dout):
        bound = 1.0 / (din ** 0.5)
        w = jax.random.uniform(self._next(), (din, dout), jnp.float32, -bound, bound)
        b = jax.random.uniform(self._next(), (1, dout), jnp.float32, -bound, bound)
        return w, b

    def embed(self, n, d):
        return jax.random.normal(self._next(), (n, d), jnp.float32)


def _fused_head_qkv(init, C, n_heads):
    hs = C // n_heads

    def cat(pairs):
        return (jnp.concatenate([w for w, _ in pairs], axis=1),
                jnp.concatenate([b for _, b in pairs], axis=1))

    (wq, bq) = cat([init.dense(C, hs) for _ in range(n_heads)])
    (wk, bk) = cat([init.dense(C, hs) for _ in range(n_heads)])
    (wv, bv) = cat([init.dense(C, hs) for _ in range(n_heads)])
    return (jnp.concatenate([wq, wk, wv], axis=1).astype(_BF16),
            jnp.concatenate([bq, bk, bv], axis=1))


def init_encode_block(init, C, n_heads):
    wqkv, bqkv = _fused_head_qkv(init, C, n_heads)
    wp, bp = init.dense(C, C)
    w1, b1 = init.dense(C, 4 * C)
    w2, b2 = init.dense(4 * C, C)
    return dict(
        wqkv=wqkv, bqkv=bqkv,
        wproj=wp.astype(_BF16), bproj=bp,
        w1=w1.astype(_BF16), b1=b1, w2=w2.astype(_BF16), b2=b2,
        ln_g=jnp.ones((3, C), jnp.float32),    # [ln1, ffwd.ln, ln2]
        ln_b=jnp.zeros((3, C), jnp.float32))


def init_decode_block(init, C, n_heads):
    wqkv_m, bqkv_m = _fused_head_qkv(init, C, n_heads)   # masked self-attn heads
    wc, bc = _fused_head_qkv(init, C, n_heads)           # cross-attn heads
    wp1, bp1 = init.dense(C, C)
    wp2, bp2 = init.dense(C, C)
    w1, b1 = init.dense(C, 4 * C)
    w2, b2 = init.dense(4 * C, C)
    return dict(
        wqkv_m=wqkv_m, bqkv_m=bqkv_m, wc=wc, bc=bc,
        wproj1=wp1.astype(_BF16), bproj1=bp1,
        wproj2=wp2.astype(_BF16), bproj2=bp2,
        w1=w1.astype(_BF16), b1=b1, w2=w2.astype(_BF16), b2=b2,
        ln_g=jnp.ones((4, C), jnp.float32),    # [ln1, ln2, ffwd.ln, ln3]
        ln_b=jnp.zeros((4, C), jnp.float32))


def init_model(key, n_embd, voc_size, block_size, n_heads, n_layers):
    init = _Init(key)
    w_lm, b_lm = init.dense(n_embd, voc_size)
    return dict(
        encode_embedding=init.embed(voc_size, n_embd),
        decode_embedding=init.embed(voc_size, n_embd),
        positional_embedding=init.embed(block_size, n_embd),
        encode_blocks=[init_encode_block(init, n_embd, n_heads)
                       for _ in range(n_layers)],
        decode_blocks=[init_decode_block(init, n_embd, n_heads)
                       for _ in range(n_layers)],
        w_lm=w_lm.astype(_BF16), b_lm=b_lm)


# --------------------------------------------------------------------------
# Model forward (embedding gathers are XLA glue; all dense compute is Pallas)
# --------------------------------------------------------------------------
def _embed(emb, pos_emb, tokens, block_size):
    tok = jnp.take(emb, tokens, axis=0)
    pos_idx = jnp.clip(jnp.arange(tokens.shape[1]), 0, block_size - 1)
    pos = jnp.take(pos_emb, pos_idx, axis=0)
    return (tok + pos[None, :, :]).astype(_BF16)


def aiayn_forward(params, src, tgt, *, block_size, n_heads):
    """Returns (logits, loss) like AIAYNModel.forward(src, tgt)."""
    C = params["encode_embedding"].shape[1]
    hs = C // n_heads
    head_ids = jnp.arange(C, dtype=jnp.int32) // hs
    head_mask = (head_ids[:, None] == head_ids[None, :]).astype(jnp.float32)

    # ---- encoder ----
    x = _embed(params["encode_embedding"], params["positional_embedding"],
               src, block_size)
    k_enc = v_enc = None
    for bp in params["encode_blocks"]:
        x, k_enc, v_enc = encode_block(bp, x, head_mask, n_heads)

    # ---- decoder ----
    y = _embed(params["decode_embedding"], params["positional_embedding"],
               tgt, block_size)
    for bp in params["decode_blocks"]:
        y = decode_block(bp, y, k_enc, v_enc, head_mask, n_heads)

    B, T_tgt = tgt.shape
    logits2d = linear2d(y.reshape(B * T_tgt, C), params["w_lm"], params["b_lm"])
    loss = cross_entropy(logits2d, tgt.reshape(B * T_tgt))
    return logits2d.reshape(B, T_tgt, -1), loss
    # TODO(synk): AIAYNModel.generate (autoregressive multinomial sampling loop)
    # is not implemented; only the tgt-supplied training path is exercised.


# --------------------------------------------------------------------------
if __name__ == "__main__":
    n_embd, voc_size, block_size, n_heads, n_layers = 32, 64, 8, 4, 2
    B, T_src, T_tgt = 2, 8, 8

    key = jax.random.PRNGKey(0)
    kp, ks, kt = jax.random.split(key, 3)
    params = init_model(kp, n_embd, voc_size, block_size, n_heads, n_layers)

    src = jax.random.randint(ks, (B, T_src), 0, voc_size, dtype=jnp.int32)
    tgt = jax.random.randint(kt, (B, T_tgt), 0, voc_size, dtype=jnp.int32)

    fwd = jax.jit(functools.partial(aiayn_forward,
                                    block_size=block_size, n_heads=n_heads))
    logits, loss = fwd(params, src, tgt)
    jax.block_until_ready((logits, loss))

    assert logits.shape == (B, T_tgt, voc_size)
    assert bool(jnp.isfinite(loss))
    print("KERNEL_OK")
</pallas_src>

<mosaic_0001>
module attributes {stable_mosaic.version = 11 : i64} {
  func.func @_linear_kernel(%arg0: i32, %arg1: i32, %arg2: memref<16x32xbf16, #tpu.memory_space<vmem>>, %arg3: memref<32x64xbf16, #tpu.memory_space<vmem>>, %arg4: memref<1x64xf32, #tpu.memory_space<vmem>>, %arg5: memref<16x64xf32, #tpu.memory_space<vmem>>) attributes {dimension_semantics = [#tpu.dimension_semantics<parallel>, #tpu.dimension_semantics<parallel>], iteration_bounds = array<i64: 1, 1>, scalar_prefetch = 0 : i64, scratch_operands = 0 : i64, tpu.core_type = #tpu.core_type<tc>, window_params = [{transform_indices = @transform_0, window_bounds = array<i64: 16, 32>}, {transform_indices = @transform_1, window_bounds = array<i64: 32, 64>}, {transform_indices = @transform_2, window_bounds = array<i64: 1, 64>}, {transform_indices = @transform_3, window_bounds = array<i64: 16, 64>}]} {
    %c0 = arith.constant 0 : index
    %c0_0 = arith.constant 0 : index
    %0 = vector.load %arg2[%c0, %c0_0] : memref<16x32xbf16, #tpu.memory_space<vmem>>, vector<16x32xbf16>
    %c0_1 = arith.constant 0 : index
    %c0_2 = arith.constant 0 : index
    %1 = vector.load %arg3[%c0_1, %c0_2] : memref<32x64xbf16, #tpu.memory_space<vmem>>, vector<32x64xbf16>
    %cst = arith.constant dense<0.000000e+00> : vector<16x64xf32>
    %2 = tpu.matmul %0, %1, %cst {dimension_numbers = #tpu.dot_dimension_numbers<[1], [0], [0], [1], [0, 0, 1, 1], [], []>} : vector<16x32xbf16>, vector<32x64xbf16>, vector<16x64xf32> -> vector<16x64xf32>
    %c0_3 = arith.constant 0 : index
    %c0_4 = arith.constant 0 : index
    %3 = vector.load %arg4[%c0_3, %c0_4] : memref<1x64xf32, #tpu.memory_space<vmem>>, vector<1x64xf32>
    %4 = vector.broadcast %3 : vector<1x64xf32> to vector<16x64xf32>
    %5 = arith.addf %2, %4 : vector<16x64xf32>
    %c0_5 = arith.constant 0 : index
    %c0_6 = arith.constant 0 : index
    %6 = vector.load %arg5[%c0_5, %c0_6] : memref<16x64xf32, #tpu.memory_space<vmem>>, vector<16x64xf32>
    tpu.vector_store %arg5[%c0_5, %c0_6], %5 {strides = array<i32>} : memref<16x64xf32, #tpu.memory_space<vmem>>, vector<16x64xf32>,
    return
  }
  func.func @transform_0(%arg0: i32, %arg1: i32) -> (i32, i32) {
    %c0_i32 = arith.constant 0 : i32
    %c0_i32_0 = arith.constant 0 : i32
    return %arg0, %c0_i32 : i32, i32
  }
  func.func @transform_1(%arg0: i32, %arg1: i32) -> (i32, i32) {
    %c0_i32 = arith.constant 0 : i32
    %c0_i32_0 = arith.constant 0 : i32
    return %c0_i32, %arg1 : i32, i32
  }
  func.func @transform_2(%arg0: i32, %arg1: i32) -> (i32, i32) {
    %c0_i32 = arith.constant 0 : i32
    %c0_i32_0 = arith.constant 0 : i32
    return %c0_i32, %arg1 : i32, i32
  }
  func.func @transform_3(%arg0: i32, %arg1: i32) -> (i32, i32) {
    %c0_i32 = arith.constant 0 : i32
    return %arg0, %arg1 : i32, i32
  }
}

module attributes {stable_mosaic.version = 11 : i64} {
  func.func @_encode_block_kernel(%arg0: i32, %arg1: memref<1x8x32xbf16, #tpu.memory_space<vmem>>, %arg2: memref<32x32xf32, #tpu.memory_space<vmem>>, %arg3: memref<32x96xbf16, #tpu.memory_space<vmem>>, %arg4: memref<1x96xf32, #tpu.memory_space<vmem>>, %arg5: memref<32x32xbf16, #tpu.memory_space<vmem>>, %arg6: memref<1x32xf32, #tpu.memory_space<vmem>>, %arg7: memref<32x128xbf16, #tpu.memory_space<vmem>>, %arg8: memref<1x128xf32, #tpu.memory_space<vmem>>, %arg9: memref<128x32xbf16, #tpu.memory_space<vmem>>, %arg10: memref<1x32xf32, #tpu.memory_space<vmem>>, %arg11: memref<3x32xf32, #tpu.memory_space<vmem>>, %arg12: memref<3x32xf32, #tpu.memory_space<vmem>>, %arg13: memref<1x8x32xbf16, #tpu.memory_space<vmem>>, %arg14: memref<1x8x32xbf16, #tpu.memory_space<vmem>>, %arg15: memref<1x8x32xbf16, #tpu.memory_space<vmem>>) attributes {dimension_semantics = [#tpu.dimension_semantics<parallel>], iteration_bounds = array<i64: 2>, scalar_prefetch = 0 : i64, scratch_operands = 0 : i64, tpu.core_type = #tpu.core_type<tc>, window_params = [{transform_indices = @transform_0, window_bounds = array<i64: 1, 8, 32>}, {pipeline_mode = #tpu.pipeline_mode<synchronous>, transform_indices = @transform_1, window_bounds = array<i64: 32, 32>}, {pipeline_mode = #tpu.pipeline_mode<synchronous>, transform_indices = @transform_2, window_bounds = array<i64: 32, 96>}, {pipeline_mode = #tpu.pipeline_mode<synchronous>, transform_indices = @transform_3, window_bounds = array<i64: 1, 96>}, {pipeline_mode = #tpu.pipeline_mode<synchronous>, transform_indices = @transform_4, window_bounds = array<i64: 32, 32>}, {pipeline_mode = #tpu.pipeline_mode<synchronous>, transform_indices = @transform_5, window_bounds = array<i64: 1, 32>}, {pipeline_mode = #tpu.pipeline_mode<synchronous>, transform_indices = @transform_6, window_bounds = array<i64: 32, 128>}, {pipeline_mode = #tpu.pipeline_mode<synchronous>, transform_indices = @transform_7, window_bounds = array<i64: 1, 128>}, {pipeline_mode = #tpu.pipeline_mode<synchronous>, transform_indices = @transform_8, window_bounds = array<i64: 128, 32>}, {pipeline_mode = #tpu.pipeline_mode<synchronous>, transform_indices = @transform_9, window_bounds = array<i64: 1, 32>}, {pipeline_mode = #tpu.pipeline_mode<synchronous>, transform_indices = @transform_10, window_bounds = array<i64: 3, 32>}, {pipeline_mode = #tpu.pipeline_mode<synchronous>, transform_indices = @transform_11, window_bounds = array<i64: 3, 32>}, {transform_indices = @transform_12, window_bounds = array<i64: 1, 8, 32>}, {transform_indices = @transform_13, window_bounds = array<i64: 1, 8, 32>}, {transform_indices = @transform_14, window_bounds = array<i64: 1, 8, 32>}]} {
    %c0 = arith.constant 0 : index
    %c0_0 = arith.constant 0 : index
    %c0_1 = arith.constant 0 : index
    %0 = vector.load %arg1[%c0, %c0_0, %c0_1] : memref<1x8x32xbf16, #tpu.memory_space<vmem>>, vector<1x8x32xbf16>
    %1 = vector.shape_cast %0 : vector<1x8x32xbf16> to vector<8x32xbf16>
    %2 = arith.extf %1 : vector<8x32xbf16> to vector<8x32xf32>
    %c0_2 = arith.constant 0 : index
    %c0_3 = arith.constant 0 : index
    %3 = vector.load %arg2[%c0_2, %c0_3] : memref<32x32xf32, #tpu.memory_space<vmem>>, vector<32x32xf32>
    %c0_4 = arith.constant 0 : index
    %c0_5 = arith.constant 0 : index
    %4 = vector.load %arg11[%c0_4, %c0_5] : memref<3x32xf32, #tpu.memory_space<vmem>>, vector<3x32xf32>
    %c0_6 = arith.constant 0 : index
    %c0_7 = arith.constant 0 : index
    %5 = vector.load %arg12[%c0_6, %c0_7] : memref<3x32xf32, #tpu.memory_space<vmem>>, vector<3x32xf32>
    %c0_8 = arith.constant 0 : index
    %c0_9 = arith.constant 0 : index
    %6 = vector.load %arg3[%c0_8, %c0_9] : memref<32x96xbf16, #tpu.memory_space<vmem>>, vector<32x96xbf16>
    %cst = arith.constant dense<0.000000e+00> : vector<8x96xf32>
    %7 = tpu.matmul %1, %6, %cst {dimension_numbers = #tpu.dot_dimension_numbers<[1], [0], [0], [1], [0, 0, 1, 1], [], []>} : vector<8x32xbf16>, vector<32x96xbf16>, vector<8x96xf32> -> vector<8x96xf32>
    %c0_10 = arith.constant 0 : index
    %c0_11 = arith.constant 0 : index
    %8 = vector.load %arg4[%c0_10, %c0_11] : memref<1x96xf32, #tpu.memory_space<vmem>>, vector<1x96xf32>
    %9 = vector.broadcast %8 : vector<1x96xf32> to vector<8x96xf32>
    %10 = arith.addf %7, %9 : vector<8x96xf32>
    %11 = vector.extract_strided_slice %10 {offsets = [0, 0], sizes = [8, 32], strides = [1, 1]} : vector<8x96xf32> to vector<8x32xf32>
    %12 = vector.extract_strided_slice %10 {offsets = [0, 32], sizes = [8, 32], strides = [1, 1]} : vector<8x96xf32> to vector<8x32xf32>
    %13 = vector.extract_strided_slice %10 {offsets = [0, 64], sizes = [8, 32], strides = [1, 1]} : vector<8x96xf32> to vector<8x32xf32>
    %14 = arith.truncf %12 : vector<8x32xf32> to vector<8x32xbf16>
    %c0_12 = arith.constant 0 : index
    %c0_13 = arith.constant 0 : index
    %c0_14 = arith.constant 0 : index
    %15 = vector.load %arg14[%c0_12, %c0_13, %c0_14] : memref<1x8x32xbf16, #tpu.memory_space<vmem>>, vector<1x8x32xbf16>
    %16 = vector.shape_cast %15 : vector<1x8x32xbf16> to vector<8x32xbf16>
    %17 = vector.shape_cast %14 : vector<8x32xbf16> to vector<1x8x32xbf16>
    tpu.vector_store %arg14[%c0_12, %c0_13, %c0_14], %17 {strides = array<i32>} : memref<1x8x32xbf16, #tpu.memory_space<vmem>>, vector<1x8x32xbf16>,
    %18 = arith.truncf %13 : vector<8x32xf32> to vector<8x32xbf16>
    %c0_15 = arith.constant 0 : index
    %c0_16 = arith.constant 0 : index
    %c0_17 = arith.constant 0 : index
    %19 = vector.load %arg15[%c0_15, %c0_16, %c0_17] : memref<1x8x32xbf16, #tpu.memory_space<vmem>>, vector<1x8x32xbf16>
    %20 = vector.shape_cast %19 : vector<1x8x32xbf16> to vector<8x32xbf16>
    %21 = vector.shape_cast %18 : vector<8x32xbf16> to vector<1x8x32xbf16>
    tpu.vector_store %arg15[%c0_15, %c0_16, %c0_17], %21 {strides = array<i32>} : memref<1x8x32xbf16, #tpu.memory_space<vmem>>, vector<1x8x32xbf16>,
    %cst_18 = arith.constant dense<0.000000e+00> : vector<32x32xf32>
    %22 = tpu.matmul %12, %13, %cst_18 {dimension_numbers = #tpu.dot_dimension_numbers<[0], [0], [1], [1], [0, 1, 1, 1], [], []>} : vector<8x32xf32>, vector<8x32xf32>, vector<32x32xf32> -> vector<32x32xf32>
    %23 = arith.mulf %22, %3 : vector<32x32xf32>
    %24 = arith.truncf %11 : vector<8x32xf32> to vector<8x32xbf16>
    %25 = arith.truncf %23 : vector<32x32xf32> to vector<32x32xbf16>
    %cst_19 = arith.constant dense<0.000000e+00> : vector<8x32xf32>
    %26 = tpu.matmul %24, %25, %cst_19 {dimension_numbers = #tpu.dot_dimension_numbers<[1], [0], [0], [1], [0, 0, 1, 1], [], []>} : vector<8x32xbf16>, vector<32x32xbf16>, vector<8x32xf32> -> vector<8x32xf32>
    %cst_20 = arith.constant 0.353553385 : f32
    %27 = vector.broadcast %cst_20 : f32 to vector<8x32xf32>
    %28 = arith.mulf %26, %27 : vector<8x32xf32>
    %29 = arith.truncf %28 : vector<8x32xf32> to vector<8x32xbf16>
    %c0_21 = arith.constant 0 : index
    %c0_22 = arith.constant 0 : index
    %30 = vector.load %arg5[%c0_21, %c0_22] : memref<32x32xbf16, #tpu.memory_space<vmem>>, vector<32x32xbf16>
    %cst_23 = arith.constant dense<0.000000e+00> : vector<8x32xf32>
    %31 = tpu.matmul %29, %30, %cst_23 {dimension_numbers = #tpu.dot_dimension_numbers<[1], [0], [0], [1], [0, 0, 1, 1], [], []>} : vector<8x32xbf16>, vector<32x32xbf16>, vector<8x32xf32> -> vector<8x32xf32>
    %c0_24 = arith.constant 0 : index
    %c0_25 = arith.constant 0 : index
    %32 = vector.load %arg6[%c0_24, %c0_25] : memref<1x32xf32, #tpu.memory_space<vmem>>, vector<1x32xf32>
    %33 = vector.broadcast %32 : vector<1x32xf32> to vector<8x32xf32>
    %34 = arith.addf %31, %33 : vector<8x32xf32>
    %35 = arith.addf %2, %34 : vector<8x32xf32>
    %36 = vector.extract_strided_slice %4 {offsets = [0, 0], sizes = [1, 32], strides = [1, 1]} : vector<3x32xf32> to vector<1x32xf32>
    %37 = vector.extract_strided_slice %5 {offsets = [0, 0], sizes = [1, 32], strides = [1, 1]} : vector<3x32xf32> to vector<1x32xf32>
    %cst_26 = arith.constant dense<0.000000e+00> : vector<8xf32>
    %38 = vector.multi_reduction <add>, %35, %cst_26 [1] : vector<8x32xf32> to vector<8xf32>
    %39 = vector.shape_cast %38 : vector<8xf32> to vector<8x1xf32>
    %cst_27 = arith.constant 3.200000e+01 : f32
    %40 = vector.broadcast %cst_27 : f32 to vector<8x1xf32>
    %41 = arith.divf %39, %40 : vector<8x1xf32>
    %42 = vector.broadcast %41 : vector<8x1xf32> to vector<8x32xf32>
    %43 = arith.subf %35, %42 : vector<8x32xf32>
    %44 = arith.mulf %43, %43 : vector<8x32xf32>
    %cst_28 = arith.constant dense<0.000000e+00> : vector<8xf32>
    %45 = vector.multi_reduction <add>, %44, %cst_28 [1] : vector<8x32xf32> to vector<8xf32>
    %46 = vector.shape_cast %45 : vector<8xf32> to vector<8x1xf32>
    %cst_29 = arith.constant 3.200000e+01 : f32
    %47 = vector.broadcast %cst_29 : f32 to vector<8x1xf32>
    %48 = arith.divf %46, %47 : vector<8x1xf32>
    %49 = vector.broadcast %41 : vector<8x1xf32> to vector<8x32xf32>
    %50 = arith.subf %35, %49 : vector<8x32xf32>
    %cst_30 = arith.constant 9.99999974E-6 : f32
    %51 = vector.broadcast %cst_30 : f32 to vector<8x1xf32>
    %52 = arith.addf %48, %51 : vector<8x1xf32>
    %53 = math.rsqrt %52 : vector<8x1xf32>
    %54 = vector.broadcast %53 : vector<8x1xf32> to vector<8x32xf32>
    %55 = arith.mulf %50, %54 : vector<8x32xf32>
    %56 = vector.broadcast %36 : vector<1x32xf32> to vector<8x32xf32>
    %57 = arith.mulf %55, %56 : vector<8x32xf32>
    %58 = vector.broadcast %37 : vector<1x32xf32> to vector<8x32xf32>
    %59 = arith.addf %57, %58 : vector<8x32xf32>
    %60 = arith.truncf %59 : vector<8x32xf32> to vector<8x32xbf16>
    %cst_31 = arith.constant 0.000000e+00 : f32
    %61 = vector.broadcast %cst_31 : f32 to vector<8x32xf32>
    %c0_32 = arith.constant 0 : index
    %c0_33 = arith.constant 0 : index
    %62 = vector.load %arg7[%c0_32, %c0_33] : memref<32x128xbf16, #tpu.memory_space<vmem>>, vector<32x128xbf16>
    %cst_34 = arith.constant dense<0.000000e+00> : vector<8x128xf32>
    %63 = tpu.matmul %60, %62, %cst_34 {dimension_numbers = #tpu.dot_dimension_numbers<[1], [0], [0], [1], [0, 0, 1, 1], [], []>} : vector<8x32xbf16>, vector<32x128xbf16>, vector<8x128xf32> -> vector<8x128xf32>
    %c0_35 = arith.constant 0 : index
    %c0_36 = arith.constant 0 : index
    %64 = vector.load %arg8[%c0_35, %c0_36] : memref<1x128xf32, #tpu.memory_space<vmem>>, vector<1x128xf32>
    %65 = vector.broadcast %64 : vector<1x128xf32> to vector<8x128xf32>
    %66 = arith.addf %63, %65 : vector<8x128xf32>
    %cst_37 = arith.constant 0.000000e+00 : f32
    %67 = vector.broadcast %cst_37 : f32 to vector<8x128xf32>
    %68 = arith.maximumf %66, %67 : vector<8x128xf32>
    %69 = arith.truncf %68 : vector<8x128xf32> to vector<8x128xbf16>
    %c0_38 = arith.constant 0 : index
    %c0_39 = arith.constant 0 : index
    %70 = vector.load %arg9[%c0_38, %c0_39] : memref<128x32xbf16, #tpu.memory_space<vmem>>, vector<128x32xbf16>
    %cst_40 = arith.constant dense<0.000000e+00> : vector<8x32xf32>
    %71 = tpu.matmul %69, %70, %cst_40 {dimension_numbers = #tpu.dot_dimension_numbers<[1], [0], [0], [1], [0, 0, 1, 1], [], []>} : vector<8x128xbf16>, vector<128x32xbf16>, vector<8x32xf32> -> vector<8x32xf32>
    %72 = arith.addf %61, %71 : vector<8x32xf32>
    %c0_41 = arith.constant 0 : index
    %c0_42 = arith.constant 0 : index
    %73 = vector.load %arg10[%c0_41, %c0_42] : memref<1x32xf32, #tpu.memory_space<vmem>>, vector<1x32xf32>
    %74 = vector.broadcast %73 : vector<1x32xf32> to vector<8x32xf32>
    %75 = arith.addf %72, %74 : vector<8x32xf32>
    %76 = arith.addf %59, %75 : vector<8x32xf32>
    %77 = vector.extract_strided_slice %4 {offsets = [1, 0], sizes = [1, 32], strides = [1, 1]} : vector<3x32xf32> to vector<1x32xf32>
    %78 = vector.extract_strided_slice %5 {offsets = [1, 0], sizes = [1, 32], strides = [1, 1]} : vector<3x32xf32> to vector<1x32xf32>
    %cst_43 = arith.constant dense<0.000000e+00> : vector<8xf32>
    %79 = vector.multi_reduction <add>, %76, %cst_43 [1] : vector<8x32xf32> to vector<8xf32>
    %80 = vector.shape_cast %79 : vector<8xf32> to vector<8x1xf32>
    %cst_44 = arith.constant 3.200000e+01 : f32
    %81 = vector.broadcast %cst_44 : f32 to vector<8x1xf32>
    %82 = arith.divf %80, %81 : vector<8x1xf32>
    %83 = vector.broadcast %82 : vector<8x1xf32> to vector<8x32xf32>
    %84 = arith.subf %76, %83 : vector<8x32xf32>
    %85 = arith.mulf %84, %84 : vector<8x32xf32>
    %cst_45 = arith.constant dense<0.000000e+00> : vector<8xf32>
    %86 = vector.multi_reduction <add>, %85, %cst_45 [1] : vector<8x32xf32> to vector<8xf32>
    %87 = vector.shape_cast %86 : vector<8xf32> to vector<8x1xf32>
    %cst_46 = arith.constant 3.200000e+01 : f32
    %88 = vector.broadcast %cst_46 : f32 to vector<8x1xf32>
    %89 = arith.divf %87, %88 : vector<8x1xf32>
    %90 = vector.broadcast %82 : vector<8x1xf32> to vector<8x32xf32>
    %91 = arith.subf %76, %90 : vector<8x32xf32>
    %cst_47 = arith.constant 9.99999974E-6 : f32
    %92 = vector.broadcast %cst_47 : f32 to vector<8x1xf32>
    %93 = arith.addf %89, %92 : vector<8x1xf32>
    %94 = math.rsqrt %93 : vector<8x1xf32>
    %95 = vector.broadcast %94 : vector<8x1xf32> to vector<8x32xf32>
    %96 = arith.mulf %91, %95 : vector<8x32xf32>
    %97 = vector.broadcast %77 : vector<1x32xf32> to vector<8x32xf32>
    %98 = arith.mulf %96, %97 : vector<8x32xf32>
    %99 = vector.broadcast %78 : vector<1x32xf32> to vector<8x32xf32>
    %100 = arith.addf %98, %99 : vector<8x32xf32>
    %101 = arith.addf %59, %100 : vector<8x32xf32>
    %102 = vector.extract_strided_slice %4 {offsets = [2, 0], sizes = [1, 32], strides = [1, 1]} : vector<3x32xf32> to vector<1x32xf32>
    %103 = vector.extract_strided_slice %5 {offsets = [2, 0], sizes = [1, 32], strides = [1, 1]} : vector<3x32xf32> to vector<1x32xf32>
    %cst_48 = arith.constant dense<0.000000e+00> : vector<8xf32>
    %104 = vector.multi_reduction <add>, %101, %cst_48 [1] : vector<8x32xf32> to vector<8xf32>
    %105 = vector.shape_cast %104 : vector<8xf32> to vector<8x1xf32>
    %cst_49 = arith.constant 3.200000e+01 : f32
    %106 = vector.broadcast %cst_49 : f32 to vector<8x1xf32>
    %107 = arith.divf %105, %106 : vector<8x1xf32>
    %108 = vector.broadcast %107 : vector<8x1xf32> to vector<8x32xf32>
    %109 = arith.subf %101, %108 : vector<8x32xf32>
    %110 = arith.mulf %109, %109 : vector<8x32xf32>
    %cst_50 = arith.constant dense<0.000000e+00> : vector<8xf32>
    %111 = vector.multi_reduction <add>, %110, %cst_50 [1] : vector<8x32xf32> to vector<8xf32>
    %112 = vector.shape_cast %111 : vector<8xf32> to vector<8x1xf32>
    %cst_51 = arith.constant 3.200000e+01 : f32
    %113 = vector.broadcast %cst_51 : f32 to vector<8x1xf32>
    %114 = arith.divf %112, %113 : vector<8x1xf32>
    %115 = vector.broadcast %107 : vector<8x1xf32> to vector<8x32xf32>
    %116 = arith.subf %101, %115 : vector<8x32xf32>
    %cst_52 = arith.constant 9.99999974E-6 : f32
    %117 = vector.broadcast %cst_52 : f32 to vector<8x1xf32>
    %118 = arith.addf %114, %117 : vector<8x1xf32>
    %119 = math.rsqrt %118 : vector<8x1xf32>
    %120 = vector.broadcast %119 : vector<8x1xf32> to vector<8x32xf32>
    %121 = arith.mulf %116, %120 : vector<8x32xf32>
    %122 = vector.broadcast %102 : vector<1x32xf32> to vector<8x32xf32>
    %123 = arith.mulf %121, %122 : vector<8x32xf32>
    %124 = vector.broadcast %103 : vector<1x32xf32> to vector<8x32xf32>
    %125 = arith.addf %123, %124 : vector<8x32xf32>
    %126 = arith.truncf %125 : vector<8x32xf32> to vector<8x32xbf16>
    %c0_53 = arith.constant 0 : index
    %c0_54 = arith.constant 0 : index
    %c0_55 = arith.constant 0 : index
    %127 = vector.load %arg13[%c0_53, %c0_54, %c0_55] : memref<1x8x32xbf16, #tpu.memory_space<vmem>>, vector<1x8x32xbf16>
    %128 = vector.shape_cast %127 : vector<1x8x32xbf16> to vector<8x32xbf16>
    %129 = vector.shape_cast %126 : vector<8x32xbf16> to vector<1x8x32xbf16>
    tpu.vector_store %arg13[%c0_53, %c0_54, %c0_55], %129 {strides = array<i32>} : memref<1x8x32xbf16, #tpu.memory_space<vmem>>, vector<1x8x32xbf16>,
    return
  }
  func.func @transform_0(%arg0: i32) -> (i32, i32, i32) {
    %c0_i32 = arith.constant 0 : i32
    %c0_i32_0 = arith.constant 0 : i32
    %c0_i32_1 = arith.constant 0 : i32
    return %arg0, %c0_i32, %c0_i32_0 : i32, i32, i32
  }
  func.func @transform_1(%arg0: i32) -> (i32, i32) {
    %c0_i32 = arith.constant 0 : i32
    %c0_i32_0 = arith.constant 0 : i32
    %c0_i32_1 = arith.constant 0 : i32
    return %c0_i32, %c0_i32_0 : i32, i32
  }
  func.func @transform_2(%arg0: i32) -> (i32, i32) {
    %c0_i32 = arith.constant 0 : i32
    %c0_i32_0 = arith.constant 0 : i32
    %c0_i32_1 = arith.constant 0 : i32
    return %c0_i32, %c0_i32_0 : i32, i32
  }
  func.func @transform_3(%arg0: i32) -> (i32, i32) {
    %c0_i32 = arith.constant 0 : i32
    %c0_i32_0 = arith.constant 0 : i32
    %c0_i32_1 = arith.constant 0 : i32
    return %c0_i32, %c0_i32_0 : i32, i32
  }
  func.func @transform_4(%arg0: i32) -> (i32, i32) {
    %c0_i32 = arith.constant 0 : i32
    %c0_i32_0 = arith.constant 0 : i32
    %c0_i32_1 = arith.constant 0 : i32
    return %c0_i32, %c0_i32_0 : i32, i32
  }
  func.func @transform_5(%arg0: i32) -> (i32, i32) {
    %c0_i32 = arith.constant 0 : i32
    %c0_i32_0 = arith.constant 0 : i32
    %c0_i32_1 = arith.constant 0 : i32
    return %c0_i32, %c0_i32_0 : i32, i32
  }
  func.func @transform_6(%arg0: i32) -> (i32, i32) {
    %c0_i32 = arith.constant 0 : i32
    %c0_i32_0 = arith.constant 0 : i32
    %c0_i32_1 = arith.constant 0 : i32
    return %c0_i32, %c0_i32_0 : i32, i32
  }
  func.func @transform_7(%arg0: i32) -> (i32, i32) {
    %c0_i32 = arith.constant 0 : i32
    %c0_i32_0 = arith.constant 0 : i32
    %c0_i32_1 = arith.constant 0 : i32
    return %c0_i32, %c0_i32_0 : i32, i32
  }
  func.func @transform_8(%arg0: i32) -> (i32, i32) {
    %c0_i32 = arith.constant 0 : i32
    %c0_i32_0 = arith.constant 0 : i32
    %c0_i32_1 = arith.constant 0 : i32
    return %c0_i32, %c0_i32_0 : i32, i32
  }
  func.func @transform_9(%arg0: i32) -> (i32, i32) {
    %c0_i32 = arith.constant 0 : i32
    %c0_i32_0 = arith.constant 0 : i32
    %c0_i32_1 = arith.constant 0 : i32
    return %c0_i32, %c0_i32_0 : i32, i32
  }
  func.func @transform_10(%arg0: i32) -> (i32, i32) {
    %c0_i32 = arith.constant 0 : i32
    %c0_i32_0 = arith.constant 0 : i32
    %c0_i32_1 = arith.constant 0 : i32
    return %c0_i32, %c0_i32_0 : i32, i32
  }
  func.func @transform_11(%arg0: i32) -> (i32, i32) {
    %c0_i32 = arith.constant 0 : i32
    %c0_i32_0 = arith.constant 0 : i32
    %c0_i32_1 = arith.constant 0 : i32
    return %c0_i32, %c0_i32_0 : i32, i32
  }
  func.func @transform_12(%arg0: i32) -> (i32, i32, i32) {
    %c0_i32 = arith.constant 0 : i32
    %c0_i32_0 = arith.constant 0 : i32
    %c0_i32_1 = arith.constant 0 : i32
    return %arg0, %c0_i32, %c0_i32_0 : i32, i32, i32
  }
  func.func @transform_13(%arg0: i32) -> (i32, i32, i32) {
    %c0_i32 = arith.constant 0 : i32
    %c0_i32_0 = arith.constant 0 : i32
    %c0_i32_1 = arith.constant 0 : i32
    return %arg0, %c0_i32, %c0_i32_0 : i32, i32, i32
  }
  func.func @transform_14(%arg0: i32) -> (i32, i32, i32) {
    %c0_i32 = arith.constant 0 : i32
    %c0_i32_0 = arith.constant 0 : i32
    %c0_i32_1 = arith.constant 0 : i32
    return %arg0, %c0_i32, %c0_i32_0 : i32, i32, i32
  }
}

module attributes {stable_mosaic.version = 11 : i64} {
  func.func @_decode_block_kernel(%arg0: i32, %arg1: memref<1x8x32xbf16, #tpu.memory_space<vmem>>, %arg2: memref<1x8x32xbf16, #tpu.memory_space<vmem>>, %arg3: memref<1x8x32xbf16, #tpu.memory_space<vmem>>, %arg4: memref<32x32xf32, #tpu.memory_space<vmem>>, %arg5: memref<32x96xbf16, #tpu.memory_space<vmem>>, %arg6: memref<1x96xf32, #tpu.memory_space<vmem>>, %arg7: memref<32x32xbf16, #tpu.memory_space<vmem>>, %arg8: memref<1x32xf32, #tpu.memory_space<vmem>>, %arg9: memref<32x96xbf16, #tpu.memory_space<vmem>>, %arg10: memref<1x96xf32, #tpu.memory_space<vmem>>, %arg11: memref<32x32xbf16, #tpu.memory_space<vmem>>, %arg12: memref<1x32xf32, #tpu.memory_space<vmem>>, %arg13: memref<32x128xbf16, #tpu.memory_space<vmem>>, %arg14: memref<1x128xf32, #tpu.memory_space<vmem>>, %arg15: memref<128x32xbf16, #tpu.memory_space<vmem>>, %arg16: memref<1x32xf32, #tpu.memory_space<vmem>>, %arg17: memref<4x32xf32, #tpu.memory_space<vmem>>, %arg18: memref<4x32xf32, #tpu.memory_space<vmem>>, %arg19: memref<1x8x32xbf16, #tpu.memory_space<vmem>>) attributes {dimension_semantics = [#tpu.dimension_semantics<parallel>], iteration_bounds = array<i64: 2>, scalar_prefetch = 0 : i64, scratch_operands = 0 : i64, tpu.core_type = #tpu.core_type<tc>, window_params = [{transform_indices = @transform_0, window_bounds = array<i64: 1, 8, 32>}, {transform_indices = @transform_1, window_bounds = array<i64: 1, 8, 32>}, {transform_indices = @transform_2, window_bounds = array<i64: 1, 8, 32>}, {pipeline_mode = #tpu.pipeline_mode<synchronous>, transform_indices = @transform_3, window_bounds = array<i64: 32, 32>}, {pipeline_mode = #tpu.pipeline_mode<synchronous>, transform_indices = @transform_4, window_bounds = array<i64: 32, 96>}, {pipeline_mode = #tpu.pipeline_mode<synchronous>, transform_indices = @transform_5, window_bounds = array<i64: 1, 96>}, {pipeline_mode = #tpu.pipeline_mode<synchronous>, transform_indices = @transform_6, window_bounds = array<i64: 32, 32>}, {pipeline_mode = #tpu.pipeline_mode<synchronous>, transform_indices = @transform_7, window_bounds = array<i64: 1, 32>}, {pipeline_mode = #tpu.pipeline_mode<synchronous>, transform_indices = @transform_8, window_bounds = array<i64: 32, 96>}, {pipeline_mode = #tpu.pipeline_mode<synchronous>, transform_indices = @transform_9, window_bounds = array<i64: 1, 96>}, {pipeline_mode = #tpu.pipeline_mode<synchronous>, transform_indices = @transform_10, window_bounds = array<i64: 32, 32>}, {pipeline_mode = #tpu.pipeline_mode<synchronous>, transform_indices = @transform_11, window_bounds = array<i64: 1, 32>}, {pipeline_mode = #tpu.pipeline_mode<synchronous>, transform_indices = @transform_12, window_bounds = array<i64: 32, 128>}, {pipeline_mode = #tpu.pipeline_mode<synchronous>, transform_indices = @transform_13, window_bounds = array<i64: 1, 128>}, {pipeline_mode = #tpu.pipeline_mode<synchronous>, transform_indices = @transform_14, window_bounds = array<i64: 128, 32>}, {pipeline_mode = #tpu.pipeline_mode<synchronous>, transform_indices = @transform_15, window_bounds = array<i64: 1, 32>}, {pipeline_mode = #tpu.pipeline_mode<synchronous>, transform_indices = @transform_16, window_bounds = array<i64: 4, 32>}, {pipeline_mode = #tpu.pipeline_mode<synchronous>, transform_indices = @transform_17, window_bounds = array<i64: 4, 32>}, {transform_indices = @transform_18, window_bounds = array<i64: 1, 8, 32>}]} {
    %c0 = arith.constant 0 : index
    %c0_0 = arith.constant 0 : index
    %c0_1 = arith.constant 0 : index
    %0 = vector.load %arg1[%c0, %c0_0, %c0_1] : memref<1x8x32xbf16, #tpu.memory_space<vmem>>, vector<1x8x32xbf16>
    %1 = vector.shape_cast %0 : vector<1x8x32xbf16> to vector<8x32xbf16>
    %2 = arith.extf %1 : vector<8x32xbf16> to vector<8x32xf32>
    %c0_2 = arith.constant 0 : index
    %c0_3 = arith.constant 0 : index
    %3 = vector.load %arg4[%c0_2, %c0_3] : memref<32x32xf32, #tpu.memory_space<vmem>>, vector<32x32xf32>
    %c0_4 = arith.constant 0 : index
    %c0_5 = arith.constant 0 : index
    %4 = vector.load %arg17[%c0_4, %c0_5] : memref<4x32xf32, #tpu.memory_space<vmem>>, vector<4x32xf32>
    %c0_6 = arith.constant 0 : index
    %c0_7 = arith.constant 0 : index
    %5 = vector.load %arg18[%c0_6, %c0_7] : memref<4x32xf32, #tpu.memory_space<vmem>>, vector<4x32xf32>
    %c0_8 = arith.constant 0 : index
    %c0_9 = arith.constant 0 : index
    %6 = vector.load %arg5[%c0_8, %c0_9] : memref<32x96xbf16, #tpu.memory_space<vmem>>, vector<32x96xbf16>
    %cst = arith.constant dense<0.000000e+00> : vector<8x96xf32>
    %7 = tpu.matmul %1, %6, %cst {dimension_numbers = #tpu.dot_dimension_numbers<[1], [0], [0], [1], [0, 0, 1, 1], [], []>} : vector<8x32xbf16>, vector<32x96xbf16>, vector<8x96xf32> -> vector<8x96xf32>
    %c0_10 = arith.constant 0 : index
    %c0_11 = arith.constant 0 : index
    %8 = vector.load %arg6[%c0_10, %c0_11] : memref<1x96xf32, #tpu.memory_space<vmem>>, vector<1x96xf32>
    %9 = vector.broadcast %8 : vector<1x96xf32> to vector<8x96xf32>
    %10 = arith.addf %7, %9 : vector<8x96xf32>
    %11 = vector.extract_strided_slice %10 {offsets = [0, 0], sizes = [8, 32], strides = [1, 1]} : vector<8x96xf32> to vector<8x32xf32>
    %12 = vector.extract_strided_slice %10 {offsets = [0, 32], sizes = [8, 32], strides = [1, 1]} : vector<8x96xf32> to vector<8x32xf32>
    %13 = vector.extract_strided_slice %10 {offsets = [0, 64], sizes = [8, 32], strides = [1, 1]} : vector<8x96xf32> to vector<8x32xf32>
    %cst_12 = arith.constant dense<0.000000e+00> : vector<32x32xf32>
    %14 = tpu.matmul %12, %13, %cst_12 {dimension_numbers = #tpu.dot_dimension_numbers<[0], [0], [1], [1], [0, 1, 1, 1], [], []>} : vector<8x32xf32>, vector<8x32xf32>, vector<32x32xf32> -> vector<32x32xf32>
    %15 = arith.mulf %14, %3 : vector<32x32xf32>
    %16 = arith.truncf %11 : vector<8x32xf32> to vector<8x32xbf16>
    %17 = arith.truncf %15 : vector<32x32xf32> to vector<32x32xbf16>
    %cst_13 = arith.constant dense<0.000000e+00> : vector<8x32xf32>
    %18 = tpu.matmul %16, %17, %cst_13 {dimension_numbers = #tpu.dot_dimension_numbers<[1], [0], [0], [1], [0, 0, 1, 1], [], []>} : vector<8x32xbf16>, vector<32x32xbf16>, vector<8x32xf32> -> vector<8x32xf32>
    %cst_14 = arith.constant 0.353553385 : f32
    %19 = vector.broadcast %cst_14 : f32 to vector<8x32xf32>
    %20 = arith.mulf %18, %19 : vector<8x32xf32>
    %21 = arith.truncf %20 : vector<8x32xf32> to vector<8x32xbf16>
    %c0_15 = arith.constant 0 : index
    %c0_16 = arith.constant 0 : index
    %22 = vector.load %arg7[%c0_15, %c0_16] : memref<32x32xbf16, #tpu.memory_space<vmem>>, vector<32x32xbf16>
    %cst_17 = arith.constant dense<0.000000e+00> : vector<8x32xf32>
    %23 = tpu.matmul %21, %22, %cst_17 {dimension_numbers = #tpu.dot_dimension_numbers<[1], [0], [0], [1], [0, 0, 1, 1], [], []>} : vector<8x32xbf16>, vector<32x32xbf16>, vector<8x32xf32> -> vector<8x32xf32>
    %c0_18 = arith.constant 0 : index
    %c0_19 = arith.constant 0 : index
    %24 = vector.load %arg8[%c0_18, %c0_19] : memref<1x32xf32, #tpu.memory_space<vmem>>, vector<1x32xf32>
    %25 = vector.broadcast %24 : vector<1x32xf32> to vector<8x32xf32>
    %26 = arith.addf %23, %25 : vector<8x32xf32>
    %27 = arith.addf %2, %26 : vector<8x32xf32>
    %28 = vector.extract_strided_slice %4 {offsets = [0, 0], sizes = [1, 32], strides = [1, 1]} : vector<4x32xf32> to vector<1x32xf32>
    %29 = vector.extract_strided_slice %5 {offsets = [0, 0], sizes = [1, 32], strides = [1, 1]} : vector<4x32xf32> to vector<1x32xf32>
    %cst_20 = arith.constant dense<0.000000e+00> : vector<8xf32>
    %30 = vector.multi_reduction <add>, %27, %cst_20 [1] : vector<8x32xf32> to vector<8xf32>
    %31 = vector.shape_cast %30 : vector<8xf32> to vector<8x1xf32>
    %cst_21 = arith.constant 3.200000e+01 : f32
    %32 = vector.broadcast %cst_21 : f32 to vector<8x1xf32>
    %33 = arith.divf %31, %32 : vector<8x1xf32>
    %34 = vector.broadcast %33 : vector<8x1xf32> to vector<8x32xf32>
    %35 = arith.subf %27, %34 : vector<8x32xf32>
    %36 = arith.mulf %35, %35 : vector<8x32xf32>
    %cst_22 = arith.constant dense<0.000000e+00> : vector<8xf32>
    %37 = vector.multi_reduction <add>, %36, %cst_22 [1] : vector<8x32xf32> to vector<8xf32>
    %38 = vector.shape_cast %37 : vector<8xf32> to vector<8x1xf32>
    %cst_23 = arith.constant 3.200000e+01 : f32
    %39 = vector.broadcast %cst_23 : f32 to vector<8x1xf32>
    %40 = arith.divf %38, %39 : vector<8x1xf32>
    %41 = vector.broadcast %33 : vector<8x1xf32> to vector<8x32xf32>
    %42 = arith.subf %27, %41 : vector<8x32xf32>
    %cst_24 = arith.constant 9.99999974E-6 : f32
    %43 = vector.broadcast %cst_24 : f32 to vector<8x1xf32>
    %44 = arith.addf %40, %43 : vector<8x1xf32>
    %45 = math.rsqrt %44 : vector<8x1xf32>
    %46 = vector.broadcast %45 : vector<8x1xf32> to vector<8x32xf32>
    %47 = arith.mulf %42, %46 : vector<8x32xf32>
    %48 = vector.broadcast %28 : vector<1x32xf32> to vector<8x32xf32>
    %49 = arith.mulf %47, %48 : vector<8x32xf32>
    %50 = vector.broadcast %29 : vector<1x32xf32> to vector<8x32xf32>
    %51 = arith.addf %49, %50 : vector<8x32xf32>
    %c0_25 = arith.constant 0 : index
    %c0_26 = arith.constant 0 : index
    %52 = vector.load %arg9[%c0_25, %c0_26] : memref<32x96xbf16, #tpu.memory_space<vmem>>, vector<32x96xbf16>
    %c0_27 = arith.constant 0 : index
    %c0_28 = arith.constant 0 : index
    %53 = vector.load %arg10[%c0_27, %c0_28] : memref<1x96xf32, #tpu.memory_space<vmem>>, vector<1x96xf32>
    %54 = arith.truncf %51 : vector<8x32xf32> to vector<8x32xbf16>
    %55 = vector.extract_strided_slice %52 {offsets = [0, 0], sizes = [32, 32], strides = [1, 1]} : vector<32x96xbf16> to vector<32x32xbf16>
    %cst_29 = arith.constant dense<0.000000e+00> : vector<8x32xf32>
    %56 = tpu.matmul %54, %55, %cst_29 {dimension_numbers = #tpu.dot_dimension_numbers<[1], [0], [0], [1], [0, 0, 1, 1], [], []>} : vector<8x32xbf16>, vector<32x32xbf16>, vector<8x32xf32> -> vector<8x32xf32>
    %57 = vector.extract_strided_slice %53 {offsets = [0, 0], sizes = [1, 32], strides = [1, 1]} : vector<1x96xf32> to vector<1x32xf32>
    %58 = vector.broadcast %57 : vector<1x32xf32> to vector<8x32xf32>
    %59 = arith.addf %56, %58 : vector<8x32xf32>
    %c0_30 = arith.constant 0 : index
    %c0_31 = arith.constant 0 : index
    %c0_32 = arith.constant 0 : index
    %60 = vector.load %arg2[%c0_30, %c0_31, %c0_32] : memref<1x8x32xbf16, #tpu.memory_space<vmem>>, vector<1x8x32xbf16>
    %61 = vector.shape_cast %60 : vector<1x8x32xbf16> to vector<8x32xbf16>
    %62 = vector.extract_strided_slice %52 {offsets = [0, 32], sizes = [32, 32], strides = [1, 1]} : vector<32x96xbf16> to vector<32x32xbf16>
    %cst_33 = arith.constant dense<0.000000e+00> : vector<8x32xf32>
    %63 = tpu.matmul %61, %62, %cst_33 {dimension_numbers = #tpu.dot_dimension_numbers<[1], [0], [0], [1], [0, 0, 1, 1], [], []>} : vector<8x32xbf16>, vector<32x32xbf16>, vector<8x32xf32> -> vector<8x32xf32>
    %64 = vector.extract_strided_slice %53 {offsets = [0, 32], sizes = [1, 32], strides = [1, 1]} : vector<1x96xf32> to vector<1x32xf32>
    %65 = vector.broadcast %64 : vector<1x32xf32> to vector<8x32xf32>
    %66 = arith.addf %63, %65 : vector<8x32xf32>
    %c0_34 = arith.constant 0 : index
    %c0_35 = arith.constant 0 : index
    %c0_36 = arith.constant 0 : index
    %67 = vector.load %arg3[%c0_34, %c0_35, %c0_36] : memref<1x8x32xbf16, #tpu.memory_space<vmem>>, vector<1x8x32xbf16>
    %68 = vector.shape_cast %67 : vector<1x8x32xbf16> to vector<8x32xbf16>
    %69 = vector.extract_strided_slice %52 {offsets = [0, 64], sizes = [32, 32], strides = [1, 1]} : vector<32x96xbf16> to vector<32x32xbf16>
    %cst_37 = arith.constant dense<0.000000e+00> : vector<8x32xf32>
    %70 = tpu.matmul %68, %69, %cst_37 {dimension_numbers = #tpu.dot_dimension_numbers<[1], [0], [0], [1], [0, 0, 1, 1], [], []>} : vector<8x32xbf16>, vector<32x32xbf16>, vector<8x32xf32> -> vector<8x32xf32>
    %71 = vector.extract_strided_slice %53 {offsets = [0, 64], sizes = [1, 32], strides = [1, 1]} : vector<1x96xf32> to vector<1x32xf32>
    %72 = vector.broadcast %71 : vector<1x32xf32> to vector<8x32xf32>
    %73 = arith.addf %70, %72 : vector<8x32xf32>
    %cst_38 = arith.constant dense<0.000000e+00> : vector<32x32xf32>
    %74 = tpu.matmul %66, %73, %cst_38 {dimension_numbers = #tpu.dot_dimension_numbers<[0], [0], [1], [1], [0, 1, 1, 1], [], []>} : vector<8x32xf32>, vector<8x32xf32>, vector<32x32xf32> -> vector<32x32xf32>
    %75 = arith.mulf %74, %3 : vector<32x32xf32>
    %76 = arith.truncf %59 : vector<8x32xf32> to vector<8x32xbf16>
    %77 = arith.truncf %75 : vector<32x32xf32> to vector<32x32xbf16>
    %cst_39 = arith.constant dense<0.000000e+00> : vector<8x32xf32>
    %78 = tpu.matmul %76, %77, %cst_39 {dimension_numbers = #tpu.dot_dimension_numbers<[1], [0], [0], [1], [0, 0, 1, 1], [], []>} : vector<8x32xbf16>, vector<32x32xbf16>, vector<8x32xf32> -> vector<8x32xf32>
    %cst_40 = arith.constant 0.353553385 : f32
    %79 = vector.broadcast %cst_40 : f32 to vector<8x32xf32>
    %80 = arith.mulf %78, %79 : vector<8x32xf32>
    %81 = arith.truncf %80 : vector<8x32xf32> to vector<8x32xbf16>
    %c0_41 = arith.constant 0 : index
    %c0_42 = arith.constant 0 : index
    %82 = vector.load %arg11[%c0_41, %c0_42] : memref<32x32xbf16, #tpu.memory_space<vmem>>, vector<32x32xbf16>
    %cst_43 = arith.constant dense<0.000000e+00> : vector<8x32xf32>
    %83 = tpu.matmul %81, %82, %cst_43 {dimension_numbers = #tpu.dot_dimension_numbers<[1], [0], [0], [1], [0, 0, 1, 1], [], []>} : vector<8x32xbf16>, vector<32x32xbf16>, vector<8x32xf32> -> vector<8x32xf32>
    %c0_44 = arith.constant 0 : index
    %c0_45 = arith.constant 0 : index
    %84 = vector.load %arg12[%c0_44, %c0_45] : memref<1x32xf32, #tpu.memory_space<vmem>>, vector<1x32xf32>
    %85 = vector.broadcast %84 : vector<1x32xf32> to vector<8x32xf32>
    %86 = arith.addf %83, %85 : vector<8x32xf32>
    %87 = arith.addf %51, %86 : vector<8x32xf32>
    %88 = vector.extract_strided_slice %4 {offsets = [1, 0], sizes = [1, 32], strides = [1, 1]} : vector<4x32xf32> to vector<1x32xf32>
    %89 = vector.extract_strided_slice %5 {offsets = [1, 0], sizes = [1, 32], strides = [1, 1]} : vector<4x32xf32> to vector<1x32xf32>
    %cst_46 = arith.constant dense<0.000000e+00> : vector<8xf32>
    %90 = vector.multi_reduction <add>, %87, %cst_46 [1] : vector<8x32xf32> to vector<8xf32>
    %91 = vector.shape_cast %90 : vector<8xf32> to vector<8x1xf32>
    %cst_47 = arith.constant 3.200000e+01 : f32
    %92 = vector.broadcast %cst_47 : f32 to vector<8x1xf32>
    %93 = arith.divf %91, %92 : vector<8x1xf32>
    %94 = vector.broadcast %93 : vector<8x1xf32> to vector<8x32xf32>
    %95 = arith.subf %87, %94 : vector<8x32xf32>
    %96 = arith.mulf %95, %95 : vector<8x32xf32>
    %cst_48 = arith.constant dense<0.000000e+00> : vector<8xf32>
    %97 = vector.multi_reduction <add>, %96, %cst_48 [1] : vector<8x32xf32> to vector<8xf32>
    %98 = vector.shape_cast %97 : vector<8xf32> to vector<8x1xf32>
    %cst_49 = arith.constant 3.200000e+01 : f32
    %99 = vector.broadcast %cst_49 : f32 to vector<8x1xf32>
    %100 = arith.divf %98, %99 : vector<8x1xf32>
    %101 = vector.broadcast %93 : vector<8x1xf32> to vector<8x32xf32>
    %102 = arith.subf %87, %101 : vector<8x32xf32>
    %cst_50 = arith.constant 9.99999974E-6 : f32
    %103 = vector.broadcast %cst_50 : f32 to vector<8x1xf32>
    %104 = arith.addf %100, %103 : vector<8x1xf32>
    %105 = math.rsqrt %104 : vector<8x1xf32>
    %106 = vector.broadcast %105 : vector<8x1xf32> to vector<8x32xf32>
    %107 = arith.mulf %102, %106 : vector<8x32xf32>
    %108 = vector.broadcast %88 : vector<1x32xf32> to vector<8x32xf32>
    %109 = arith.mulf %107, %108 : vector<8x32xf32>
    %110 = vector.broadcast %89 : vector<1x32xf32> to vector<8x32xf32>
    %111 = arith.addf %109, %110 : vector<8x32xf32>
    %112 = arith.truncf %111 : vector<8x32xf32> to vector<8x32xbf16>
    %cst_51 = arith.constant 0.000000e+00 : f32
    %113 = vector.broadcast %cst_51 : f32 to vector<8x32xf32>
    %c0_52 = arith.constant 0 : index
    %c0_53 = arith.constant 0 : index
    %114 = vector.load %arg13[%c0_52, %c0_53] : memref<32x128xbf16, #tpu.memory_space<vmem>>, vector<32x128xbf16>
    %cst_54 = arith.constant dense<0.000000e+00> : vector<8x128xf32>
    %115 = tpu.matmul %112, %114, %cst_54 {dimension_numbers = #tpu.dot_dimension_numbers<[1], [0], [0], [1], [0, 0, 1, 1], [], []>} : vector<8x32xbf16>, vector<32x128xbf16>, vector<8x128xf32> -> vector<8x128xf32>
    %c0_55 = arith.constant 0 : index
    %c0_56 = arith.constant 0 : index
    %116 = vector.load %arg14[%c0_55, %c0_56] : memref<1x128xf32, #tpu.memory_space<vmem>>, vector<1x128xf32>
    %117 = vector.broadcast %116 : vector<1x128xf32> to vector<8x128xf32>
    %118 = arith.addf %115, %117 : vector<8x128xf32>
    %cst_57 = arith.constant 0.000000e+00 : f32
    %119 = vector.broadcast %cst_57 : f32 to vector<8x128xf32>
    %120 = arith.maximumf %118, %119 : vector<8x128xf32>
    %121 = arith.truncf %120 : vector<8x128xf32> to vector<8x128xbf16>
    %c0_58 = arith.constant 0 : index
    %c0_59 = arith.constant 0 : index
    %122 = vector.load %arg15[%c0_58, %c0_59] : memref<128x32xbf16, #tpu.memory_space<vmem>>, vector<128x32xbf16>
    %cst_60 = arith.constant dense<0.000000e+00> : vector<8x32xf32>
    %123 = tpu.matmul %121, %122, %cst_60 {dimension_numbers = #tpu.dot_dimension_numbers<[1], [0], [0], [1], [0, 0, 1, 1], [], []>} : vector<8x128xbf16>, vector<128x32xbf16>, vector<8x32xf32> -> vector<8x32xf32>
    %124 = arith.addf %113, %123 : vector<8x32xf32>
    %c0_61 = arith.constant 0 : index
    %c0_62 = arith.constant 0 : index
    %125 = vector.load %arg16[%c0_61, %c0_62] : memref<1x32xf32, #tpu.memory_space<vmem>>, vector<1x32xf32>
    %126 = vector.broadcast %125 : vector<1x32xf32> to vector<8x32xf32>
    %127 = arith.addf %124, %126 : vector<8x32xf32>
    %128 = arith.addf %111, %127 : vector<8x32xf32>
    %129 = vector.extract_strided_slice %4 {offsets = [2, 0], sizes = [1, 32], strides = [1, 1]} : vector<4x32xf32> to vector<1x32xf32>
    %130 = vector.extract_strided_slice %5 {offsets = [2, 0], sizes = [1, 32], strides = [1, 1]} : vector<4x32xf32> to vector<1x32xf32>
    %cst_63 = arith.constant dense<0.000000e+00> : vector<8xf32>
    %131 = vector.multi_reduction <add>, %128, %cst_63 [1] : vector<8x32xf32> to vector<8xf32>
    %132 = vector.shape_cast %131 : vector<8xf32> to vector<8x1xf32>
    %cst_64 = arith.constant 3.200000e+01 : f32
    %133 = vector.broadcast %cst_64 : f32 to vector<8x1xf32>
    %134 = arith.divf %132, %133 : vector<8x1xf32>
    %135 = vector.broadcast %134 : vector<8x1xf32> to vector<8x32xf32>
    %136 = arith.subf %128, %135 : vector<8x32xf32>
    %137 = arith.mulf %136, %136 : vector<8x32xf32>
    %cst_65 = arith.constant dense<0.000000e+00> : vector<8xf32>
    %138 = vector.multi_reduction <add>, %137, %cst_65 [1] : vector<8x32xf32> to vector<8xf32>
    %139 = vector.shape_cast %138 : vector<8xf32> to vector<8x1xf32>
    %cst_66 = arith.constant 3.200000e+01 : f32
    %140 = vector.broadcast %cst_66 : f32 to vector<8x1xf32>
    %141 = arith.divf %139, %140 : vector<8x1xf32>
    %142 = vector.broadcast %134 : vector<8x1xf32> to vector<8x32xf32>
    %143 = arith.subf %128, %142 : vector<8x32xf32>
    %cst_67 = arith.constant 9.99999974E-6 : f32
    %144 = vector.broadcast %cst_67 : f32 to vector<8x1xf32>
    %145 = arith.addf %141, %144 : vector<8x1xf32>
    %146 = math.rsqrt %145 : vector<8x1xf32>
    %147 = vector.broadcast %146 : vector<8x1xf32> to vector<8x32xf32>
    %148 = arith.mulf %143, %147 : vector<8x32xf32>
    %149 = vector.broadcast %129 : vector<1x32xf32> to vector<8x32xf32>
    %150 = arith.mulf %148, %149 : vector<8x32xf32>
    %151 = vector.broadcast %130 : vector<1x32xf32> to vector<8x32xf32>
    %152 = arith.addf %150, %151 : vector<8x32xf32>
    %153 = arith.addf %111, %152 : vector<8x32xf32>
    %154 = vector.extract_strided_slice %4 {offsets = [3, 0], sizes = [1, 32], strides = [1, 1]} : vector<4x32xf32> to vector<1x32xf32>
    %155 = vector.extract_strided_slice %5 {offsets = [3, 0], sizes = [1, 32], strides = [1, 1]} : vector<4x32xf32> to vector<1x32xf32>
    %cst_68 = arith.constant dense<0.000000e+00> : vector<8xf32>
    %156 = vector.multi_reduction <add>, %153, %cst_68 [1] : vector<8x32xf32> to vector<8xf32>
    %157 = vector.shape_cast %156 : vector<8xf32> to vector<8x1xf32>
    %cst_69 = arith.constant 3.200000e+01 : f32
    %158 = vector.broadcast %cst_69 : f32 to vector<8x1xf32>
    %159 = arith.divf %157, %158 : vector<8x1xf32>
    %160 = vector.broadcast %159 : vector<8x1xf32> to vector<8x32xf32>
    %161 = arith.subf %153, %160 : vector<8x32xf32>
    %162 = arith.mulf %161, %161 : vector<8x32xf32>
    %cst_70 = arith.constant dense<0.000000e+00> : vector<8xf32>
    %163 = vector.multi_reduction <add>, %162, %cst_70 [1] : vector<8x32xf32> to vector<8xf32>
    %164 = vector.shape_cast %163 : vector<8xf32> to vector<8x1xf32>
    %cst_71 = arith.constant 3.200000e+01 : f32
    %165 = vector.broadcast %cst_71 : f32 to vector<8x1xf32>
    %166 = arith.divf %164, %165 : vector<8x1xf32>
    %167 = vector.broadcast %159 : vector<8x1xf32> to vector<8x32xf32>
    %168 = arith.subf %153, %167 : vector<8x32xf32>
    %cst_72 = arith.constant 9.99999974E-6 : f32
    %169 = vector.broadcast %cst_72 : f32 to vector<8x1xf32>
    %170 = arith.addf %166, %169 : vector<8x1xf32>
    %171 = math.rsqrt %170 : vector<8x1xf32>
    %172 = vector.broadcast %171 : vector<8x1xf32> to vector<8x32xf32>
    %173 = arith.mulf %168, %172 : vector<8x32xf32>
    %174 = vector.broadcast %154 : vector<1x32xf32> to vector<8x32xf32>
    %175 = arith.mulf %173, %174 : vector<8x32xf32>
    %176 = vector.broadcast %155 : vector<1x32xf32> to vector<8x32xf32>
    %177 = arith.addf %175, %176 : vector<8x32xf32>
    %178 = arith.truncf %177 : vector<8x32xf32> to vector<8x32xbf16>
    %c0_73 = arith.constant 0 : index
    %c0_74 = arith.constant 0 : index
    %c0_75 = arith.constant 0 : index
    %179 = vector.load %arg19[%c0_73, %c0_74, %c0_75] : memref<1x8x32xbf16, #tpu.memory_space<vmem>>, vector<1x8x32xbf16>
    %180 = vector.shape_cast %179 : vector<1x8x32xbf16> to vector<8x32xbf16>
    %181 = vector.shape_cast %178 : vector<8x32xbf16> to vector<1x8x32xbf16>
    tpu.vector_store %arg19[%c0_73, %c0_74, %c0_75], %181 {strides = array<i32>} : memref<1x8x32xbf16, #tpu.memory_space<vmem>>, vector<1x8x32xbf16>,
    return
  }
  func.func @transform_0(%arg0: i32) -> (i32, i32, i32) {
    %c0_i32 = arith.constant 0 : i32
    %c0_i32_0 = arith.constant 0 : i32
    %c0_i32_1 = arith.constant 0 : i32
    return %arg0, %c0_i32, %c0_i32_0 : i32, i32, i32
  }
  func.func @transform_1(%arg0: i32) -> (i32, i32, i32) {
    %c0_i32 = arith.constant 0 : i32
    %c0_i32_0 = arith.constant 0 : i32
    %c0_i32_1 = arith.constant 0 : i32
    return %arg0, %c0_i32, %c0_i32_0 : i32, i32, i32
  }
  func.func @transform_2(%arg0: i32) -> (i32, i32, i32) {
    %c0_i32 = arith.constant 0 : i32
    %c0_i32_0 = arith.constant 0 : i32
    %c0_i32_1 = arith.constant 0 : i32
    return %arg0, %c0_i32, %c0_i32_0 : i32, i32, i32
  }
  func.func @transform_3(%arg0: i32) -> (i32, i32) {
    %c0_i32 = arith.constant 0 : i32
    %c0_i32_0 = arith.constant 0 : i32
    %c0_i32_1 = arith.constant 0 : i32
    return %c0_i32, %c0_i32_0 : i32, i32
  }
  func.func @transform_4(%arg0: i32) -> (i32, i32) {
    %c0_i32 = arith.constant 0 : i32
    %c0_i32_0 = arith.constant 0 : i32
    %c0_i32_1 = arith.constant 0 : i32
    return %c0_i32, %c0_i32_0 : i32, i32
  }
  func.func @transform_5(%arg0: i32) -> (i32, i32) {
    %c0_i32 = arith.constant 0 : i32
    %c0_i32_0 = arith.constant 0 : i32
    %c0_i32_1 = arith.constant 0 : i32
    return %c0_i32, %c0_i32_0 : i32, i32
  }
  func.func @transform_6(%arg0: i32) -> (i32, i32) {
    %c0_i32 = arith.constant 0 : i32
    %c0_i32_0 = arith.constant 0 : i32
    %c0_i32_1 = arith.constant 0 : i32
    return %c0_i32, %c0_i32_0 : i32, i32
  }
  func.func @transform_7(%arg0: i32) -> (i32, i32) {
    %c0_i32 = arith.constant 0 : i32
    %c0_i32_0 = arith.constant 0 : i32
    %c0_i32_1 = arith.constant 0 : i32
    return %c0_i32, %c0_i32_0 : i32, i32
  }
  func.func @transform_8(%arg0: i32) -> (i32, i32) {
    %c0_i32 = arith.constant 0 : i32
    %c0_i32_0 = arith.constant 0 : i32
    %c0_i32_1 = arith.constant 0 : i32
    return %c0_i32, %c0_i32_0 : i32, i32
  }
  func.func @transform_9(%arg0: i32) -> (i32, i32) {
    %c0_i32 = arith.constant 0 : i32
    %c0_i32_0 = arith.constant 0 : i32
    %c0_i32_1 = arith.constant 0 : i32
    return %c0_i32, %c0_i32_0 : i32, i32
  }
  func.func @transform_10(%arg0: i32) -> (i32, i32) {
    %c0_i32 = arith.constant 0 : i32
    %c0_i32_0 = arith.constant 0 : i32
    %c0_i32_1 = arith.constant 0 : i32
    return %c0_i32, %c0_i32_0 : i32, i32
  }
  func.func @transform_11(%arg0: i32) -> (i32, i32) {
    %c0_i32 = arith.constant 0 : i32
    %c0_i32_0 = arith.constant 0 : i32
    %c0_i32_1 = arith.constant 0 : i32
    return %c0_i32, %c0_i32_0 : i32, i32
  }
  func.func @transform_12(%arg0: i32) -> (i32, i32) {
    %c0_i32 = arith.constant 0 : i32
    %c0_i32_0 = arith.constant 0 : i32
    %c0_i32_1 = arith.constant 0 : i32
    return %c0_i32, %c0_i32_0 : i32, i32
  }
  func.func @transform_13(%arg0: i32) -> (i32, i32) {
    %c0_i32 = arith.constant 0 : i32
    %c0_i32_0 = arith.constant 0 : i32
    %c0_i32_1 = arith.constant 0 : i32
    return %c0_i32, %c0_i32_0 : i32, i32
  }
  func.func @transform_14(%arg0: i32) -> (i32, i32) {
    %c0_i32 = arith.constant 0 : i32
    %c0_i32_0 = arith.constant 0 : i32
    %c0_i32_1 = arith.constant 0 : i32
    return %c0_i32, %c0_i32_0 : i32, i32
  }
  func.func @transform_15(%arg0: i32) -> (i32, i32) {
    %c0_i32 = arith.constant 0 : i32
    %c0_i32_0 = arith.constant 0 : i32
    %c0_i32_1 = arith.constant 0 : i32
    return %c0_i32, %c0_i32_0 : i32, i32
  }
  func.func @transform_16(%arg0: i32) -> (i32, i32) {
    %c0_i32 = arith.constant 0 : i32
    %c0_i32_0 = arith.constant 0 : i32
    %c0_i32_1 = arith.constant 0 : i32
    return %c0_i32, %c0_i32_0 : i32, i32
  }
  func.func @transform_17(%arg0: i32) -> (i32, i32) {
    %c0_i32 = arith.constant 0 : i32
    %c0_i32_0 = arith.constant 0 : i32
    %c0_i32_1 = arith.constant 0 : i32
    return %c0_i32, %c0_i32_0 : i32, i32
  }
  func.func @transform_18(%arg0: i32) -> (i32, i32, i32) {
    %c0_i32 = arith.constant 0 : i32
    %c0_i32_0 = arith.constant 0 : i32
    %c0_i32_1 = arith.constant 0 : i32
    return %arg0, %c0_i32, %c0_i32_0 : i32, i32, i32
  }
}

module attributes {stable_mosaic.version = 11 : i64} {
  func.func @_encode_block_kernel(%arg0: i32, %arg1: memref<1x8x32xbf16, #tpu.memory_space<vmem>>, %arg2: memref<32x32xf32, #tpu.memory_space<vmem>>, %arg3: memref<32x96xbf16, #tpu.memory_space<vmem>>, %arg4: memref<1x96xf32, #tpu.memory_space<vmem>>, %arg5: memref<32x32xbf16, #tpu.memory_space<vmem>>, %arg6: memref<1x32xf32, #tpu.memory_space<vmem>>, %arg7: memref<32x128xbf16, #tpu.memory_space<vmem>>, %arg8: memref<1x128xf32, #tpu.memory_space<vmem>>, %arg9: memref<128x32xbf16, #tpu.memory_space<vmem>>, %arg10: memref<1x32xf32, #tpu.memory_space<vmem>>, %arg11: memref<3x32xf32, #tpu.memory_space<vmem>>, %arg12: memref<3x32xf32, #tpu.memory_space<vmem>>, %arg13: memref<1x8x32xbf16, #tpu.memory_space<vmem>>, %arg14: memref<1x8x32xbf16, #tpu.memory_space<vmem>>, %arg15: memref<1x8x32xbf16, #tpu.memory_space<vmem>>) attributes {dimension_semantics = [#tpu.dimension_semantics<parallel>], iteration_bounds = array<i64: 2>, scalar_prefetch = 0 : i64, scratch_operands = 0 : i64, tpu.core_type = #tpu.core_type<tc>, window_params = [{transform_indices = @transform_0, window_bounds = array<i64: 1, 8, 32>}, {pipeline_mode = #tpu.pipeline_mode<synchronous>, transform_indices = @transform_1, window_bounds = array<i64: 32, 32>}, {pipeline_mode = #tpu.pipeline_mode<synchronous>, transform_indices = @transform_2, window_bounds = array<i64: 32, 96>}, {pipeline_mode = #tpu.pipeline_mode<synchronous>, transform_indices = @transform_3, window_bounds = array<i64: 1, 96>}, {pipeline_mode = #tpu.pipeline_mode<synchronous>, transform_indices = @transform_4, window_bounds = array<i64: 32, 32>}, {pipeline_mode = #tpu.pipeline_mode<synchronous>, transform_indices = @transform_5, window_bounds = array<i64: 1, 32>}, {pipeline_mode = #tpu.pipeline_mode<synchronous>, transform_indices = @transform_6, window_bounds = array<i64: 32, 128>}, {pipeline_mode = #tpu.pipeline_mode<synchronous>, transform_indices = @transform_7, window_bounds = array<i64: 1, 128>}, {pipeline_mode = #tpu.pipeline_mode<synchronous>, transform_indices = @transform_8, window_bounds = array<i64: 128, 32>}, {pipeline_mode = #tpu.pipeline_mode<synchronous>, transform_indices = @transform_9, window_bounds = array<i64: 1, 32>}, {pipeline_mode = #tpu.pipeline_mode<synchronous>, transform_indices = @transform_10, window_bounds = array<i64: 3, 32>}, {pipeline_mode = #tpu.pipeline_mode<synchronous>, transform_indices = @transform_11, window_bounds = array<i64: 3, 32>}, {transform_indices = @transform_12, window_bounds = array<i64: 1, 8, 32>}, {transform_indices = @transform_13, window_bounds = array<i64: 1, 8, 32>}, {transform_indices = @transform_14, window_bounds = array<i64: 1, 8, 32>}]} {
    %c0 = arith.constant 0 : index
    %c0_0 = arith.constant 0 : index
    %c0_1 = arith.constant 0 : index
    %0 = vector.load %arg1[%c0, %c0_0, %c0_1] : memref<1x8x32xbf16, #tpu.memory_space<vmem>>, vector<1x8x32xbf16>
    %1 = vector.shape_cast %0 : vector<1x8x32xbf16> to vector<8x32xbf16>
    %2 = arith.extf %1 : vector<8x32xbf16> to vector<8x32xf32>
    %c0_2 = arith.constant 0 : index
    %c0_3 = arith.constant 0 : index
    %3 = vector.load %arg2[%c0_2, %c0_3] : memref<32x32xf32, #tpu.memory_space<vmem>>, vector<32x32xf32>
    %c0_4 = arith.constant 0 : index
    %c0_5 = arith.constant 0 : index
    %4 = vector.load %arg11[%c0_4, %c0_5] : memref<3x32xf32, #tpu.memory_space<vmem>>, vector<3x32xf32>
    %c0_6 = arith.constant 0 : index
    %c0_7 = arith.constant 0 : index
    %5 = vector.load %arg12[%c0_6, %c0_7] : memref<3x32xf32, #tpu.memory_space<vmem>>, vector<3x32xf32>
    %c0_8 = arith.constant 0 : index
    %c0_9 = arith.constant 0 : index
    %6 = vector.load %arg3[%c0_8, %c0_9] : memref<32x96xbf16, #tpu.memory_space<vmem>>, vector<32x96xbf16>
    %cst = arith.constant dense<0.000000e+00> : vector<8x96xf32>
    %7 = tpu.matmul %1, %6, %cst {dimension_numbers = #tpu.dot_dimension_numbers<[1], [0], [0], [1], [0, 0, 1, 1], [], []>} : vector<8x32xbf16>, vector<32x96xbf16>, vector<8x96xf32> -> vector<8x96xf32>
    %c0_10 = arith.constant 0 : index
    %c0_11 = arith.constant 0 : index
    %8 = vector.load %arg4[%c0_10, %c0_11] : memref<1x96xf32, #tpu.memory_space<vmem>>, vector<1x96xf32>
    %9 = vector.broadcast %8 : vector<1x96xf32> to vector<8x96xf32>
    %10 = arith.addf %7, %9 : vector<8x96xf32>
    %11 = vector.extract_strided_slice %10 {offsets = [0, 0], sizes = [8, 32], strides = [1, 1]} : vector<8x96xf32> to vector<8x32xf32>
    %12 = vector.extract_strided_slice %10 {offsets = [0, 32], sizes = [8, 32], strides = [1, 1]} : vector<8x96xf32> to vector<8x32xf32>
    %13 = vector.extract_strided_slice %10 {offsets = [0, 64], sizes = [8, 32], strides = [1, 1]} : vector<8x96xf32> to vector<8x32xf32>
    %14 = arith.truncf %12 : vector<8x32xf32> to vector<8x32xbf16>
    %c0_12 = arith.constant 0 : index
    %c0_13 = arith.constant 0 : index
    %c0_14 = arith.constant 0 : index
    %15 = vector.load %arg14[%c0_12, %c0_13, %c0_14] : memref<1x8x32xbf16, #tpu.memory_space<vmem>>, vector<1x8x32xbf16>
    %16 = vector.shape_cast %15 : vector<1x8x32xbf16> to vector<8x32xbf16>
    %17 = vector.shape_cast %14 : vector<8x32xbf16> to vector<1x8x32xbf16>
    tpu.vector_store %arg14[%c0_12, %c0_13, %c0_14], %17 {strides = array<i32>} : memref<1x8x32xbf16, #tpu.memory_space<vmem>>, vector<1x8x32xbf16>,
    %18 = arith.truncf %13 : vector<8x32xf32> to vector<8x32xbf16>
    %c0_15 = arith.constant 0 : index
    %c0_16 = arith.constant 0 : index
    %c0_17 = arith.constant 0 : index
    %19 = vector.load %arg15[%c0_15, %c0_16, %c0_17] : memref<1x8x32xbf16, #tpu.memory_space<vmem>>, vector<1x8x32xbf16>
    %20 = vector.shape_cast %19 : vector<1x8x32xbf16> to vector<8x32xbf16>
    %21 = vector.shape_cast %18 : vector<8x32xbf16> to vector<1x8x32xbf16>
    tpu.vector_store %arg15[%c0_15, %c0_16, %c0_17], %21 {strides = array<i32>} : memref<1x8x32xbf16, #tpu.memory_space<vmem>>, vector<1x8x32xbf16>,
    %cst_18 = arith.constant dense<0.000000e+00> : vector<32x32xf32>
    %22 = tpu.matmul %12, %13, %cst_18 {dimension_numbers = #tpu.dot_dimension_numbers<[0], [0], [1], [1], [0, 1, 1, 1], [], []>} : vector<8x32xf32>, vector<8x32xf32>, vector<32x32xf32> -> vector<32x32xf32>
    %23 = arith.mulf %22, %3 : vector<32x32xf32>
    %24 = arith.truncf %11 : vector<8x32xf32> to vector<8x32xbf16>
    %25 = arith.truncf %23 : vector<32x32xf32> to vector<32x32xbf16>
    %cst_19 = arith.constant dense<0.000000e+00> : vector<8x32xf32>
    %26 = tpu.matmul %24, %25, %cst_19 {dimension_numbers = #tpu.dot_dimension_numbers<[1], [0], [0], [1], [0, 0, 1, 1], [], []>} : vector<8x32xbf16>, vector<32x32xbf16>, vector<8x32xf32> -> vector<8x32xf32>
    %cst_20 = arith.constant 0.353553385 : f32
    %27 = vector.broadcast %cst_20 : f32 to vector<8x32xf32>
    %28 = arith.mulf %26, %27 : vector<8x32xf32>
    %29 = arith.truncf %28 : vector<8x32xf32> to vector<8x32xbf16>
    %c0_21 = arith.constant 0 : index
    %c0_22 = arith.constant 0 : index
    %30 = vector.load %arg5[%c0_21, %c0_22] : memref<32x32xbf16, #tpu.memory_space<vmem>>, vector<32x32xbf16>
    %cst_23 = arith.constant dense<0.000000e+00> : vector<8x32xf32>
    %31 = tpu.matmul %29, %30, %cst_23 {dimension_numbers = #tpu.dot_dimension_numbers<[1], [0], [0], [1], [0, 0, 1, 1], [], []>} : vector<8x32xbf16>, vector<32x32xbf16>, vector<8x32xf32> -> vector<8x32xf32>
    %c0_24 = arith.constant 0 : index
    %c0_25 = arith.constant 0 : index
    %32 = vector.load %arg6[%c0_24, %c0_25] : memref<1x32xf32, #tpu.memory_space<vmem>>, vector<1x32xf32>
    %33 = vector.broadcast %32 : vector<1x32xf32> to vector<8x32xf32>
    %34 = arith.addf %31, %33 : vector<8x32xf32>
    %35 = arith.addf %2, %34 : vector<8x32xf32>
    %36 = vector.extract_strided_slice %4 {offsets = [0, 0], sizes = [1, 32], strides = [1, 1]} : vector<3x32xf32> to vector<1x32xf32>
    %37 = vector.extract_strided_slice %5 {offsets = [0, 0], sizes = [1, 32], strides = [1, 1]} : vector<3x32xf32> to vector<1x32xf32>
    %cst_26 = arith.constant dense<0.000000e+00> : vector<8xf32>
    %38 = vector.multi_reduction <add>, %35, %cst_26 [1] : vector<8x32xf32> to vector<8xf32>
    %39 = vector.shape_cast %38 : vector<8xf32> to vector<8x1xf32>
    %cst_27 = arith.constant 3.200000e+01 : f32
    %40 = vector.broadcast %cst_27 : f32 to vector<8x1xf32>
    %41 = arith.divf %39, %40 : vector<8x1xf32>
    %42 = vector.broadcast %41 : vector<8x1xf32> to vector<8x32xf32>
    %43 = arith.subf %35, %42 : vector<8x32xf32>
    %44 = arith.mulf %43, %43 : vector<8x32xf32>
    %cst_28 = arith.constant dense<0.000000e+00> : vector<8xf32>
    %45 = vector.multi_reduction <add>, %44, %cst_28 [1] : vector<8x32xf32> to vector<8xf32>
    %46 = vector.shape_cast %45 : vector<8xf32> to vector<8x1xf32>
    %cst_29 = arith.constant 3.200000e+01 : f32
    %47 = vector.broadcast %cst_29 : f32 to vector<8x1xf32>
    %48 = arith.divf %46, %47 : vector<8x1xf32>
    %49 = vector.broadcast %41 : vector<8x1xf32> to vector<8x32xf32>
    %50 = arith.subf %35, %49 : vector<8x32xf32>
    %cst_30 = arith.constant 9.99999974E-6 : f32
    %51 = vector.broadcast %cst_30 : f32 to vector<8x1xf32>
    %52 = arith.addf %48, %51 : vector<8x1xf32>
    %53 = math.rsqrt %52 : vector<8x1xf32>
    %54 = vector.broadcast %53 : vector<8x1xf32> to vector<8x32xf32>
    %55 = arith.mulf %50, %54 : vector<8x32xf32>
    %56 = vector.broadcast %36 : vector<1x32xf32> to vector<8x32xf32>
    %57 = arith.mulf %55, %56 : vector<8x32xf32>
    %58 = vector.broadcast %37 : vector<1x32xf32> to vector<8x32xf32>
    %59 = arith.addf %57, %58 : vector<8x32xf32>
    %60 = arith.truncf %59 : vector<8x32xf32> to vector<8x32xbf16>
    %cst_31 = arith.constant 0.000000e+00 : f32
    %61 = vector.broadcast %cst_31 : f32 to vector<8x32xf32>
    %c0_32 = arith.constant 0 : index
    %c0_33 = arith.constant 0 : index
    %62 = vector.load %arg7[%c0_32, %c0_33] : memref<32x128xbf16, #tpu.memory_space<vmem>>, vector<32x128xbf16>
    %cst_34 = arith.constant dense<0.000000e+00> : vector<8x128xf32>
    %63 = tpu.matmul %60, %62, %cst_34 {dimension_numbers = #tpu.dot_dimension_numbers<[1], [0], [0], [1], [0, 0, 1, 1], [], []>} : vector<8x32xbf16>, vector<32x128xbf16>, vector<8x128xf32> -> vector<8x128xf32>
    %c0_35 = arith.constant 0 : index
    %c0_36 = arith.constant 0 : index
    %64 = vector.load %arg8[%c0_35, %c0_36] : memref<1x128xf32, #tpu.memory_space<vmem>>, vector<1x128xf32>
    %65 = vector.broadcast %64 : vector<1x128xf32> to vector<8x128xf32>
    %66 = arith.addf %63, %65 : vector<8x128xf32>
    %cst_37 = arith.constant 0.000000e+00 : f32
    %67 = vector.broadcast %cst_37 : f32 to vector<8x128xf32>
    %68 = arith.maximumf %66, %67 : vector<8x128xf32>
    %69 = arith.truncf %68 : vector<8x128xf32> to vector<8x128xbf16>
    %c0_38 = arith.constant 0 : index
    %c0_39 = arith.constant 0 : index
    %70 = vector.load %arg9[%c0_38, %c0_39] : memref<128x32xbf16, #tpu.memory_space<vmem>>, vector<128x32xbf16>
    %cst_40 = arith.constant dense<0.000000e+00> : vector<8x32xf32>
    %71 = tpu.matmul %69, %70, %cst_40 {dimension_numbers = #tpu.dot_dimension_numbers<[1], [0], [0], [1], [0, 0, 1, 1], [], []>} : vector<8x128xbf16>, vector<128x32xbf16>, vector<8x32xf32> -> vector<8x32xf32>
    %72 = arith.addf %61, %71 : vector<8x32xf32>
    %c0_41 = arith.constant 0 : index
    %c0_42 = arith.constant 0 : index
    %73 = vector.load %arg10[%c0_41, %c0_42] : memref<1x32xf32, #tpu.memory_space<vmem>>, vector<1x32xf32>
    %74 = vector.broadcast %73 : vector<1x32xf32> to vector<8x32xf32>
    %75 = arith.addf %72, %74 : vector<8x32xf32>
    %76 = arith.addf %59, %75 : vector<8x32xf32>
    %77 = vector.extract_strided_slice %4 {offsets = [1, 0], sizes = [1, 32], strides = [1, 1]} : vector<3x32xf32> to vector<1x32xf32>
    %78 = vector.extract_strided_slice %5 {offsets = [1, 0], sizes = [1, 32], strides = [1, 1]} : vector<3x32xf32> to vector<1x32xf32>
    %cst_43 = arith.constant dense<0.000000e+00> : vector<8xf32>
    %79 = vector.multi_reduction <add>, %76, %cst_43 [1] : vector<8x32xf32> to vector<8xf32>
    %80 = vector.shape_cast %79 : vector<8xf32> to vector<8x1xf32>
    %cst_44 = arith.constant 3.200000e+01 : f32
    %81 = vector.broadcast %cst_44 : f32 to vector<8x1xf32>
    %82 = arith.divf %80, %81 : vector<8x1xf32>
    %83 = vector.broadcast %82 : vector<8x1xf32> to vector<8x32xf32>
    %84 = arith.subf %76, %83 : vector<8x32xf32>
    %85 = arith.mulf %84, %84 : vector<8x32xf32>
    %cst_45 = arith.constant dense<0.000000e+00> : vector<8xf32>
    %86 = vector.multi_reduction <add>, %85, %cst_45 [1] : vector<8x32xf32> to vector<8xf32>
    %87 = vector.shape_cast %86 : vector<8xf32> to vector<8x1xf32>
    %cst_46 = arith.constant 3.200000e+01 : f32
    %88 = vector.broadcast %cst_46 : f32 to vector<8x1xf32>
    %89 = arith.divf %87, %88 : vector<8x1xf32>
    %90 = vector.broadcast %82 : vector<8x1xf32> to vector<8x32xf32>
    %91 = arith.subf %76, %90 : vector<8x32xf32>
    %cst_47 = arith.constant 9.99999974E-6 : f32
    %92 = vector.broadcast %cst_47 : f32 to vector<8x1xf32>
    %93 = arith.addf %89, %92 : vector<8x1xf32>
    %94 = math.rsqrt %93 : vector<8x1xf32>
    %95 = vector.broadcast %94 : vector<8x1xf32> to vector<8x32xf32>
    %96 = arith.mulf %91, %95 : vector<8x32xf32>
    %97 = vector.broadcast %77 : vector<1x32xf32> to vector<8x32xf32>
    %98 = arith.mulf %96, %97 : vector<8x32xf32>
    %99 = vector.broadcast %78 : vector<1x32xf32> to vector<8x32xf32>
    %100 = arith.addf %98, %99 : vector<8x32xf32>
    %101 = arith.addf %59, %100 : vector<8x32xf32>
    %102 = vector.extract_strided_slice %4 {offsets = [2, 0], sizes = [1, 32], strides = [1, 1]} : vector<3x32xf32> to vector<1x32xf32>
    %103 = vector.extract_strided_slice %5 {offsets = [2, 0], sizes = [1, 32], strides = [1, 1]} : vector<3x32xf32> to vector<1x32xf32>
    %cst_48 = arith.constant dense<0.000000e+00> : vector<8xf32>
    %104 = vector.multi_reduction <add>, %101, %cst_48 [1] : vector<8x32xf32> to vector<8xf32>
    %105 = vector.shape_cast %104 : vector<8xf32> to vector<8x1xf32>
    %cst_49 = arith.constant 3.200000e+01 : f32
    %106 = vector.broadcast %cst_49 : f32 to vector<8x1xf32>
    %107 = arith.divf %105, %106 : vector<8x1xf32>
    %108 = vector.broadcast %107 : vector<8x1xf32> to vector<8x32xf32>
    %109 = arith.subf %101, %108 : vector<8x32xf32>
    %110 = arith.mulf %109, %109 : vector<8x32xf32>
    %cst_50 = arith.constant dense<0.000000e+00> : vector<8xf32>
    %111 = vector.multi_reduction <add>, %110, %cst_50 [1] : vector<8x32xf32> to vector<8xf32>
    %112 = vector.shape_cast %111 : vector<8xf32> to vector<8x1xf32>
    %cst_51 = arith.constant 3.200000e+01 : f32
    %113 = vector.broadcast %cst_51 : f32 to vector<8x1xf32>
    %114 = arith.divf %112, %113 : vector<8x1xf32>
    %115 = vector.broadcast %107 : vector<8x1xf32> to vector<8x32xf32>
    %116 = arith.subf %101, %115 : vector<8x32xf32>
    %cst_52 = arith.constant 9.99999974E-6 : f32
    %117 = vector.broadcast %cst_52 : f32 to vector<8x1xf32>
    %118 = arith.addf %114, %117 : vector<8x1xf32>
    %119 = math.rsqrt %118 : vector<8x1xf32>
    %120 = vector.broadcast %119 : vector<8x1xf32> to vector<8x32xf32>
    %121 = arith.mulf %116, %120 : vector<8x32xf32>
    %122 = vector.broadcast %102 : vector<1x32xf32> to vector<8x32xf32>
    %123 = arith.mulf %121, %122 : vector<8x32xf32>
    %124 = vector.broadcast %103 : vector<1x32xf32> to vector<8x32xf32>
    %125 = arith.addf %123, %124 : vector<8x32xf32>
    %126 = arith.truncf %125 : vector<8x32xf32> to vector<8x32xbf16>
    %c0_53 = arith.constant 0 : index
    %c0_54 = arith.constant 0 : index
    %c0_55 = arith.constant 0 : index
    %127 = vector.load %arg13[%c0_53, %c0_54, %c0_55] : memref<1x8x32xbf16, #tpu.memory_space<vmem>>, vector<1x8x32xbf16>
    %128 = vector.shape_cast %127 : vector<1x8x32xbf16> to vector<8x32xbf16>
    %129 = vector.shape_cast %126 : vector<8x32xbf16> to vector<1x8x32xbf16>
    tpu.vector_store %arg13[%c0_53, %c0_54, %c0_55], %129 {strides = array<i32>} : memref<1x8x32xbf16, #tpu.memory_space<vmem>>, vector<1x8x32xbf16>,
    return
  }
  func.func @transform_0(%arg0: i32) -> (i32, i32, i32) {
    %c0_i32 = arith.constant 0 : i32
    %c0_i32_0 = arith.constant 0 : i32
    %c0_i32_1 = arith.constant 0 : i32
    return %arg0, %c0_i32, %c0_i32_0 : i32, i32, i32
  }
  func.func @transform_1(%arg0: i32) -> (i32, i32) {
    %c0_i32 = arith.constant 0 : i32
    %c0_i32_0 = arith.constant 0 : i32
    %c0_i32_1 = arith.constant 0 : i32
    return %c0_i32, %c0_i32_0 : i32, i32
  }
  func.func @transform_2(%arg0: i32) -> (i32, i32) {
    %c0_i32 = arith.constant 0 : i32
    %c0_i32_0 = arith.constant 0 : i32
    %c0_i32_1 = arith.constant 0 : i32
    return %c0_i32, %c0_i32_0 : i32, i32
  }
  func.func @transform_3(%arg0: i32) -> (i32, i32) {
    %c0_i32 = arith.constant 0 : i32
    %c0_i32_0 = arith.constant 0 : i32
    %c0_i32_1 = arith.constant 0 : i32
    return %c0_i32, %c0_i32_0 : i32, i32
  }
  func.func @transform_4(%arg0: i32) -> (i32, i32) {
    %c0_i32 = arith.constant 0 : i32
    %c0_i32_0 = arith.constant 0 : i32
    %c0_i32_1 = arith.constant 0 : i32
    return %c0_i32, %c0_i32_0 : i32, i32
  }
  func.func @transform_5(%arg0: i32) -> (i32, i32) {
    %c0_i32 = arith.constant 0 : i32
    %c0_i32_0 = arith.constant 0 : i32
    %c0_i32_1 = arith.constant 0 : i32
    return %c0_i32, %c0_i32_0 : i32, i32
  }
  func.func @transform_6(%arg0: i32) -> (i32, i32) {
    %c0_i32 = arith.constant 0 : i32
    %c0_i32_0 = arith.constant 0 : i32
    %c0_i32_1 = arith.constant 0 : i32
    return %c0_i32, %c0_i32_0 : i32, i32
  }
  func.func @transform_7(%arg0: i32) -> (i32, i32) {
    %c0_i32 = arith.constant 0 : i32
    %c0_i32_0 = arith.constant 0 : i32
    %c0_i32_1 = arith.constant 0 : i32
    return %c0_i32, %c0_i32_0 : i32, i32
  }
  func.func @transform_8(%arg0: i32) -> (i32, i32) {
    %c0_i32 = arith.constant 0 : i32
    %c0_i32_0 = arith.constant 0 : i32
    %c0_i32_1 = arith.constant 0 : i32
    return %c0_i32, %c0_i32_0 : i32, i32
  }
  func.func @transform_9(%arg0: i32) -> (i32, i32) {
    %c0_i32 = arith.constant 0 : i32
    %c0_i32_0 = arith.constant 0 : i32
    %c0_i32_1 = arith.constant 0 : i32
    return %c0_i32, %c0_i32_0 : i32, i32
  }
  func.func @transform_10(%arg0: i32) -> (i32, i32) {
    %c0_i32 = arith.constant 0 : i32
    %c0_i32_0 = arith.constant 0 : i32
    %c0_i32_1 = arith.constant 0 : i32
    return %c0_i32, %c0_i32_0 : i32, i32
  }
  func.func @transform_11(%arg0: i32) -> (i32, i32) {
    %c0_i32 = arith.constant 0 : i32
    %c0_i32_0 = arith.constant 0 : i32
    %c0_i32_1 = arith.constant 0 : i32
    return %c0_i32, %c0_i32_0 : i32, i32
  }
  func.func @transform_12(%arg0: i32) -> (i32, i32, i32) {
    %c0_i32 = arith.constant 0 : i32
    %c0_i32_0 = arith.constant 0 : i32
    %c0_i32_1 = arith.constant 0 : i32
    return %arg0, %c0_i32, %c0_i32_0 : i32, i32, i32
  }
  func.func @transform_13(%arg0: i32) -> (i32, i32, i32) {
    %c0_i32 = arith.constant 0 : i32
    %c0_i32_0 = arith.constant 0 : i32
    %c0_i32_1 = arith.constant 0 : i32
    return %arg0, %c0_i32, %c0_i32_0 : i32, i32, i32
  }
  func.func @transform_14(%arg0: i32) -> (i32, i32, i32) {
    %c0_i32 = arith.constant 0 : i32
    %c0_i32_0 = arith.constant 0 : i32
    %c0_i32_1 = arith.constant 0 : i32
    return %arg0, %c0_i32, %c0_i32_0 : i32, i32, i32
  }
}

module attributes {stable_mosaic.version = 11 : i64} {
  func.func @_ce_kernel(%arg0: i32, %arg1: i32, %arg2: memref<16x64xf32, #tpu.memory_space<vmem>>, %arg3: memref<16x1xi32, #tpu.memory_space<vmem>>, %arg4: memref<16x1xf32, #tpu.memory_space<vmem>>, %arg5: memref<16x1xf32, #tpu.memory_space<vmem>>, %arg6: memref<16x1xf32, #tpu.memory_space<vmem>>, %arg7: memref<16x1xf32, #tpu.memory_space<vmem>>) attributes {dimension_semantics = [#tpu.dimension_semantics<parallel>, #tpu.dimension_semantics<arbitrary>], iteration_bounds = array<i64: 1, 1>, scalar_prefetch = 0 : i64, scratch_operands = 3 : i64, tpu.core_type = #tpu.core_type<tc>, window_params = [{transform_indices = @transform_0, window_bounds = array<i64: 16, 64>}, {transform_indices = @transform_1, window_bounds = array<i64: 16, 1>}, {transform_indices = @transform_2, window_bounds = array<i64: 16, 1>}]} {
    %c0_i32 = arith.constant 0 : i32
    %0 = arith.cmpi eq, %arg1, %c0_i32 : i32
    %1 = arith.extui %0 : i1 to i32
    %c0_i32_0 = arith.constant 0 : i32
    %2 = arith.cmpi ne, %1, %c0_i32_0 : i32
    scf.if %2 {
      %cst_21 = arith.constant 0xFF800000 : f32
      %37 = vector.broadcast %cst_21 : f32 to vector<16x1xf32>
      %c0_22 = arith.constant 0 : index
      %c0_23 = arith.constant 0 : index
      %38 = vector.load %arg5[%c0_22, %c0_23] : memref<16x1xf32, #tpu.memory_space<vmem>>, vector<16x1xf32>
      tpu.vector_store %arg5[%c0_22, %c0_23], %37 {strides = array<i32>} : memref<16x1xf32, #tpu.memory_space<vmem>>, vector<16x1xf32>,
      %cst_24 = arith.constant 0.000000e+00 : f32
      %39 = vector.broadcast %cst_24 : f32 to vector<16x1xf32>
      %c0_25 = arith.constant 0 : index
      %c0_26 = arith.constant 0 : index
      %40 = vector.load %arg6[%c0_25, %c0_26] : memref<16x1xf32, #tpu.memory_space<vmem>>, vector<16x1xf32>
      tpu.vector_store %arg6[%c0_25, %c0_26], %39 {strides = array<i32>} : memref<16x1xf32, #tpu.memory_space<vmem>>, vector<16x1xf32>,
      %cst_27 = arith.constant 0.000000e+00 : f32
      %41 = vector.broadcast %cst_27 : f32 to vector<16x1xf32>
      %c0_28 = arith.constant 0 : index
      %c0_29 = arith.constant 0 : index
      %42 = vector.load %arg7[%c0_28, %c0_29] : memref<16x1xf32, #tpu.memory_space<vmem>>, vector<16x1xf32>
      tpu.vector_store %arg7[%c0_28, %c0_29], %41 {strides = array<i32>} : memref<16x1xf32, #tpu.memory_space<vmem>>, vector<16x1xf32>,
    } else {
    }
    %c0 = arith.constant 0 : index
    %c0_1 = arith.constant 0 : index
    %3 = vector.load %arg2[%c0, %c0_1] : memref<16x64xf32, #tpu.memory_space<vmem>>, vector<16x64xf32>
    %c0_2 = arith.constant 0 : index
    %c0_3 = arith.constant 0 : index
    %4 = vector.load %arg3[%c0_2, %c0_3] : memref<16x1xi32, #tpu.memory_space<vmem>>, vector<16x1xi32>
    %c0_4 = arith.constant 0 : index
    %c0_5 = arith.constant 0 : index
    %5 = vector.load %arg5[%c0_4, %c0_5] : memref<16x1xf32, #tpu.memory_space<vmem>>, vector<16x1xf32>
    %cst = arith.constant dense<0xFF800000> : vector<16xf32>
    %6 = vector.multi_reduction <maximumf>, %3, %cst [1] : vector<16x64xf32> to vector<16xf32>
    %7 = vector.shape_cast %6 : vector<16xf32> to vector<16x1xf32>
    %8 = arith.maximumf %5, %7 : vector<16x1xf32>
    %c0_6 = arith.constant 0 : index
    %c0_7 = arith.constant 0 : index
    %9 = vector.load %arg6[%c0_6, %c0_7] : memref<16x1xf32, #tpu.memory_space<vmem>>, vector<16x1xf32>
    %10 = arith.subf %5, %8 : vector<16x1xf32>
    %11 = math.exp %10 : vector<16x1xf32>
    %12 = arith.mulf %9, %11 : vector<16x1xf32>
    %13 = vector.broadcast %8 : vector<16x1xf32> to vector<16x64xf32>
    %14 = arith.subf %3, %13 : vector<16x64xf32>
    %15 = math.exp %14 : vector<16x64xf32>
    %cst_8 = arith.constant dense<0.000000e+00> : vector<16xf32>
    %16 = vector.multi_reduction <add>, %15, %cst_8 [1] : vector<16x64xf32> to vector<16xf32>
    %17 = vector.shape_cast %16 : vector<16xf32> to vector<16x1xf32>
    %18 = arith.addf %12, %17 : vector<16x1xf32>
    %c0_9 = arith.constant 0 : index
    %c0_10 = arith.constant 0 : index
    %19 = vector.load %arg6[%c0_9, %c0_10] : memref<16x1xf32, #tpu.memory_space<vmem>>, vector<16x1xf32>
    tpu.vector_store %arg6[%c0_9, %c0_10], %18 {strides = array<i32>} : memref<16x1xf32, #tpu.memory_space<vmem>>, vector<16x1xf32>,
    %c0_11 = arith.constant 0 : index
    %c0_12 = arith.constant 0 : index
    %20 = vector.load %arg5[%c0_11, %c0_12] : memref<16x1xf32, #tpu.memory_space<vmem>>, vector<16x1xf32>
    tpu.vector_store %arg5[%c0_11, %c0_12], %8 {strides = array<i32>} : memref<16x1xf32, #tpu.memory_space<vmem>>, vector<16x1xf32>,
    %21 = tpu.iota {dimensions = array<i32: 1>} : vector<16x64xi32>
    %c64_i32 = arith.constant 64 : i32
    %22 = arith.muli %arg1, %c64_i32 : i32
    %23 = vector.broadcast %22 : i32 to vector<16x64xi32>
    %24 = arith.addi %21, %23 : vector<16x64xi32>
    %c0_13 = arith.constant 0 : index
    %c0_14 = arith.constant 0 : index
    %25 = vector.load %arg7[%c0_13, %c0_14] : memref<16x1xf32, #tpu.memory_space<vmem>>, vector<16x1xf32>
    %26 = vector.broadcast %4 : vector<16x1xi32> to vector<16x64xi32>
    %27 = arith.cmpi eq, %24, %26 : vector<16x64xi32>
    %cst_15 = arith.constant 0.000000e+00 : f32
    %28 = vector.broadcast %cst_15 : f32 to vector<16x64xf32>
    %29 = arith.select %27, %3, %28 : vector<16x64xi1>, vector<16x64xf32>
    %cst_16 = arith.constant dense<0.000000e+00> : vector<16xf32>
    %30 = vector.multi_reduction <add>, %29, %cst_16 [1] : vector<16x64xf32> to vector<16xf32>
    %31 = vector.shape_cast %30 : vector<16xf32> to vector<16x1xf32>
    %32 = arith.addf %25, %31 : vector<16x1xf32>
    %c0_17 = arith.constant 0 : index
    %c0_18 = arith.constant 0 : index
    %33 = vector.load %arg7[%c0_17, %c0_18] : memref<16x1xf32, #tpu.memory_space<vmem>>, vector<16x1xf32>
    tpu.vector_store %arg7[%c0_17, %c0_18], %32 {strides = array<i32>} : memref<16x1xf32, #tpu.memory_space<vmem>>, vector<16x1xf32>,
    %c0_i32_19 = arith.constant 0 : i32
    %34 = arith.cmpi eq, %arg1, %c0_i32_19 : i32
    %35 = arith.extui %34 : i1 to i32
    %c0_i32_20 = arith.constant 0 : i32
    %36 = arith.cmpi ne, %35, %c0_i32_20 : i32
    scf.if %36 {
      %c0_21 = arith.constant 0 : index
      %c0_22 = arith.constant 0 : index
      %37 = vector.load %arg5[%c0_21, %c0_22] : memref<16x1xf32, #tpu.memory_space<vmem>>, vector<16x1xf32>
      %c0_23 = arith.constant 0 : index
      %c0_24 = arith.constant 0 : index
      %38 = vector.load %arg6[%c0_23, %c0_24] : memref<16x1xf32, #tpu.memory_space<vmem>>, vector<16x1xf32>
      %39 = math.log %38 : vector<16x1xf32>
      %40 = arith.addf %37, %39 : vector<16x1xf32>
      %c0_25 = arith.constant 0 : index
      %c0_26 = arith.constant 0 : index
      %41 = vector.load %arg7[%c0_25, %c0_26] : memref<16x1xf32, #tpu.memory_space<vmem>>, vector<16x1xf32>
      %42 = arith.subf %40, %41 : vector<16x1xf32>
      %c0_27 = arith.constant 0 : index
      %c0_28 = arith.constant 0 : index
      %43 = vector.load %arg4[%c0_27, %c0_28] : memref<16x1xf32, #tpu.memory_space<vmem>>, vector<16x1xf32>
      tpu.vector_store %arg4[%c0_27, %c0_28], %42 {strides = array<i32>} : memref<16x1xf32, #tpu.memory_space<vmem>>, vector<16x1xf32>,
    } else {
    }
    return
  }
  func.func @transform_0(%arg0: i32, %arg1: i32) -> (i32, i32) {
    %c0_i32 = arith.constant 0 : i32
    return %arg0, %arg1 : i32, i32
  }
  func.func @transform_1(%arg0: i32, %arg1: i32) -> (i32, i32) {
    %c0_i32 = arith.constant 0 : i32
    %c0_i32_0 = arith.constant 0 : i32
    return %arg0, %c0_i32 : i32, i32
  }
  func.func @transform_2(%arg0: i32, %arg1: i32) -> (i32, i32) {
    %c0_i32 = arith.constant 0 : i32
    %c0_i32_0 = arith.constant 0 : i32
    return %arg0, %c0_i32 : i32, i32
  }
}

</mosaic_0001>

<llo_original>
// kernel: aiayn_forward.10
$region0: #{aiayn_forward.10}
  #allocation0 [shape = 'u32[]', space=smem, size = 0x4, offset = 0x4, fixed_abs, tag = 'smem constant byte address 0x4 - core index']
  #allocation1 [shape = 'u32[144,128]{1,0:T(1,128)}', space=vmem, size = 0x12000, scoped, tag = 'internal scratch']
  %s0 = inlined_call_operand.vmem [shape: bf16[16,32], index: 0, kind: input, shape index: {}]
  %s1 = inlined_call_operand.vmem [shape: bf16[32,64], index: 1, kind: input, shape index: {}]
  %s2 = inlined_call_operand.vmem [shape: f32[1,64], index: 2, kind: input, shape index: {}]
  %s3 = inlined_call_operand.vmem [shape: f32[16,64], index: 3, kind: output, shape index: {}]
  %s4 = sld [smem:[#allocation0]]
  $region22: #{aiayn_forward.10} parent=0
    _
  %s6 = ssub.s32 1, %s4
  %s7 = scalar_select 0, %s6, %s4
  // Predicated region
  $region2: #{aiayn_forward.10} parent=0 // pred_check
    _
  $region3: #{aiayn_forward.10} parent=0 // pred_check_branch
    %9 = sbr.rel (0) target = $region5
  $region4: #{aiayn_forward.10} parent=0 // pred_region
    _
  $region5: #{aiayn_forward.10} parent=0 // pred_fallthru
    _
  // Predicated region
  $region6: #{aiayn_forward.10} parent=0 // pred_check
    _
  $region7: #{aiayn_forward.10} parent=0 // pred_check_branch
    %11 = sbr.rel (0) target = $region9
  $region8: #{aiayn_forward.10} parent=0 // pred_region
    _
  $region9: #{aiayn_forward.10} parent=0 // pred_fallthru
    _
  // Predicated region
  $region10: #{aiayn_forward.10} parent=0 // pred_check
    _
  $region11: #{aiayn_forward.10} parent=0 // pred_check_branch
    %13 = sbr.rel (0) target = $region13
  $region12: #{aiayn_forward.10} parent=0 // pred_region
    _
  $region13: #{aiayn_forward.10} parent=0 // pred_fallthru
    _
  %v15 = vld [vmem:[%s0] sm:$0xf]
  %v16 = vld [vmem:[%s0 + $0x4] sm:$0xf]
  %v17 = vld [vmem:[%s1] sm:$0xf]
  %v18 = vld [vmem:[%s1 + $0x4] sm:$0xf]
  %v19 = vld [vmem:[%s1 + $0x8] sm:$0xf]
  %v20 = vld [vmem:[%s1 + $0xc] sm:$0xf]
  %v21 = vld [vmem:[%s2] sm:$0x1]
  %v23 = vlaneseq
  %v24 = vshrl.u32 %v23, 7
  %v25 = vsub.s32 0, %v24
  %v26 = vrot.slane %v21, %v25
  %v30 = vunpack.c.l.b16 %v15
  %v31 = vunpack.c.l.b16 %v16
  %v32 = vpack.c.b16 %v31, %v30
  %v37 = vunpack.c.l.b16 %v17
  %v38 = vunpack.c.l.b16 %v18
  %v39 = vunpack.c.l.b16 %v19
  %v40 = vunpack.c.l.b16 %v20
  %v41 = vpack.c.b16 %v38, %v37
  %v42 = vpack.c.b16 %v40, %v39
  %vm45 = vcmask 261120
  %v47 = vsel %vm45, %v32, 0
  %49 = vmatprep.subr.bf16.mxu0 0
  %50 = vmatpush1.bf16.msra.mxu0 %v41
  %51 = vmatprep.subr.bf16.mxu0 0
  %52 = vmatpush1.bf16.msra.mxu0 %v42
  %53 = vmatprep.subr.bf16.mxu0 0
  %54 = vmatpush1.bf16.msra.mxu0 0
  %55 = vmatprep.subr.bf16.mxu0 0
  %56 = vmatpush1.bf16.msra.mxu0 0
  %57 = vmatprep.subr.bf16.mxu0 0
  %58 = vmatpush1.bf16.msra.mxu0 0
  %59 = vmatprep.subr.bf16.mxu0 0
  %60 = vmatpush1.bf16.msra.mxu0 0
  %61 = vmatprep.subr.bf16.mxu0 0
  %62 = vmatpush1.bf16.msra.mxu0 0
  %63 = vmatprep.subr.bf16.mxu0 0
  %64 = vmatpush1.bf16.msra.mxu0 0
  %65 = vmatprep.subr.bf16.mxu0 0
  %66 = vmatpush1.bf16.msra.mxu0 0
  %67 = vmatprep.subr.bf16.mxu0 0
  %68 = vmatpush1.bf16.msra.mxu0 0
  %69 = vmatprep.subr.bf16.mxu0 0
  %70 = vmatpush1.bf16.msra.mxu0 0
  %71 = vmatprep.subr.bf16.mxu0 0
  %72 = vmatpush1.bf16.msra.mxu0 0
  %73 = vmatprep.subr.bf16.mxu0 0
  %74 = vmatpush1.bf16.msra.mxu0 0
  %75 = vmatprep.subr.bf16.mxu0 0
  %76 = vmatpush1.bf16.msra.mxu0 0
  %77 = vmatprep.subr.bf16.mxu0 0
  %78 = vmatpush1.bf16.msra.mxu0 0
  %79 = vmatprep.subr.bf16.mxu0 0
  %80 = vmatpush1.bf16.msra.mxu0 0
  %81 = vmatprep.mubr.bf16.mxu0 0
  %82 = vmatmul.mubr.bf16.gmra.mrb[0].mxu0 %v47
  %v83 = vpop.f32.mrb[0].mxu0
  %v84 = vadd.f32 %v26, %v83
  %v85 = vpop.f32.mrb[0].mxu0
  %v86 = vpop.f32.mrb[0].mxu0
  %v87 = vadd.f32 %v26, %v86
  %v88 = vpop.f32.mrb[0].mxu0
  %89 = vdwg.mxu0
  %vm90 = vcmask 523264
  %91 = vst.msk [vmem:[%s3] sm:$0xff] %vm90, %v84
  %92 = vst.msk [vmem:[%s3 + $0x8] sm:$0xff] %vm90, %v87
  // Predicated region
  $region14: #{aiayn_forward.10} parent=0 // pred_check
    _
  $region15: #{aiayn_forward.10} parent=0 // pred_check_branch
    %94 = sbr.rel (0) target = $region17
  $region16: #{aiayn_forward.10} parent=0 // pred_region
    _
  $region17: #{aiayn_forward.10} parent=0 // pred_fallthru
    _
  // Predicated region
  $region18: #{aiayn_forward.10} parent=0 // pred_check
    _
  $region19: #{aiayn_forward.10} parent=0 // pred_check_branch
    %96 = sbr.rel (0) target = $region21
  $region20: #{aiayn_forward.10} parent=0 // pred_region
    _
  $region21: #{aiayn_forward.10} parent=0 // pred_fallthru
    _

// kernel: aiayn_forward.7
$region0: #{aiayn_forward.7}
  #allocation0 [shape = 'u32[]', space=smem, size = 0x4, offset = 0x4, fixed_abs, tag = 'smem constant byte address 0x4 - core index']
  #allocation1 [shape = 'u32[144,128]{1,0:T(1,128)}', space=vmem, size = 0x12000, scoped, tag = 'internal scratch']
  %s0 = inlined_call_operand.vmem [shape: bf16[2,8,32], index: 0, kind: input, shape index: {}]
  %s1 = inlined_call_operand.vmem [shape: f32[32,32], index: 1, kind: input, shape index: {}]
  %s2 = inlined_call_operand.vmem [shape: bf16[32,96], index: 2, kind: input, shape index: {}]
  %s3 = inlined_call_operand.vmem [shape: f32[1,96], index: 3, kind: input, shape index: {}]
  %s4 = inlined_call_operand.vmem [shape: bf16[32,32], index: 4, kind: input, shape index: {}]
  %s5 = inlined_call_operand.vmem [shape: f32[1,32], index: 5, kind: input, shape index: {}]
  %s6 = inlined_call_operand.vmem [shape: bf16[32,128], index: 6, kind: input, shape index: {}]
  %s7 = inlined_call_operand.vmem [shape: f32[1,128], index: 7, kind: input, shape index: {}]
  %s8 = inlined_call_operand.vmem [shape: bf16[128,32], index: 8, kind: input, shape index: {}]
  %s9 = inlined_call_operand.vmem [shape: f32[1,32], index: 9, kind: input, shape index: {}]
  %s10 = inlined_call_operand.vmem [shape: f32[3,32], index: 10, kind: input, shape index: {}]
  %s11 = inlined_call_operand.vmem [shape: f32[3,32], index: 11, kind: input, shape index: {}]
  %s12 = inlined_call_operand.hbm [shape: bf16[2,8,32], index: 12, kind: output, shape index: {0}]
  %s13 = inlined_call_operand.vmem [shape: bf16[2,8,32], index: 13, kind: output, shape index: {1}]
  %s14 = inlined_call_operand.vmem [shape: bf16[2,8,32], index: 14, kind: output, shape index: {2}]
  %15 = xla_tuple %s12, %s13, %s14
  %s16 = sld [smem:[#allocation0]]
  $region97: #{aiayn_forward.7} parent=0
    _
  %s18 = ssub.s32 1, %s16
  %s19 = scalar_select 0, %s18, %s16
  $region1: #{aiayn_forward.7} parent=0
    #allocation2 [shape = 'u8[4096]{0}', space=vmem, size = 0x1000, scoped, tag = 'output window, operand 0']
    #allocation3 [shape = 's32[2]{0}', space=sflag, size = 0x8, scoped, tag = 'scoped memory for aiayn_forward.7']
    %20 = vsyncpa [#allocation3], 0
    %s21 = scalar_lea.sflag [#allocation3], 1
    %22 = vsyncpa %s21, 0
    loop: start=0, step=1, limit=4
    $region2: #{aiayn_forward.7} parent=1 // loop_pre_header
      _
    $region3: #{aiayn_forward.7} parent=1 // loop_header
      %s24 = sphi 0, %s28
      %p25 = scmp.ge.s32.totalorder %s24, 4
      %s34 = sphi 0, %s36
      %s37 = sphi 0, %s34
      %s38 = sphi 0, %s37
      %s54 = sphi 0, %s38
      %s58 = sphi 0, %s58
      %s60 = sphi 0, %s58
      %s61 = sphi 0, %s60
      %s75 = sphi 0, %s61
      %s79 = sphi 0, %s79
      %s81 = sphi 0, %s79
      %s82 = sphi 0, %s81
      %s96 = sphi 0, %s82
      %s100 = sphi 0, %s100
      %s102 = sphi 0, %s100
      %s103 = sphi 0, %s102
      %s117 = sphi 0, %s103
      %s121 = sphi 0, %s121
      %s123 = sphi 0, %s121
      %s124 = sphi 0, %s123
      %s138 = sphi 0, %s124
      %s142 = sphi 0, %s142
      %s144 = sphi 0, %s142
      %s145 = sphi 0, %s144
      %s159 = sphi 0, %s145
      %s163 = sphi 0, %s163
      %s165 = sphi 0, %s163
      %s166 = sphi 0, %s165
      %s180 = sphi 0, %s166
      %s184 = sphi 0, %s184
      %s186 = sphi 0, %s184
      %s187 = sphi 0, %s186
      %s201 = sphi 0, %s187
      %s205 = sphi 0, %s205
      %s207 = sphi 0, %s205
      %s208 = sphi 0, %s207
      %s222 = sphi 0, %s208
      %s226 = sphi 0, %s226
      %s228 = sphi 0, %s226
      %s229 = sphi 0, %s228
      %s243 = sphi 0, %s229
      %s247 = sphi 0, %s247
      %s249 = sphi 0, %s247
      %s250 = sphi 0, %s249
      %s264 = sphi 0, %s250
      %s268 = sphi 0, %s268
      %s270 = sphi 0, %s268
      %s271 = sphi 0, %s270
      %s285 = sphi 0, %s271
      %s291 = sphi 0, %s293
      %s294 = sphi 0, %s291
      %s295 = sphi 0, %s294
      %s311 = sphi 0, %s295
      %s317 = sphi 0, %s319
      %s320 = sphi 0, %s317
      %s321 = sphi 0, %s320
      %s337 = sphi 0, %s321
      %s343 = sphi 0, %s345
      %s346 = sphi 0, %s343
      %s347 = sphi 0, %s346
      %s363 = sphi 0, %s347
    $region4: #{aiayn_forward.7} parent=1 // loop_header_branch
      %27 = sbr.rel (%p25) target = $region8
    $region5: #{aiayn_forward.7} parent=1 // loop_body
      %s29 = ssub.s32 %s24, 1
      %s30 = ssub.s32 %s24, 2
      %s31 = sadd.s32 %s24, 1
      %s32 = ssub.s32 %s24, %s31
      %p33 = scmp.eq.s32.totalorder %s32, 0
      %s35 = sadd.s32 %s34, 1
      %s36 = scalar_select %p33, %s34, %s35
      %p39 = pneg %p33
      %p40 = scmp.eq.s32.totalorder %s24, 1
      %p41 = por %p39, %p40
      %p42 = scmp.ne.s32.totalorder %s34, %s37
      %p43 = scmp.eq.s32.totalorder %s24, 0
      %p44 = por %p42, %p43
      %p45 = scmp.ne.s32.totalorder %s34, %s37
      %p46 = scmp.eq.s32.totalorder %s29, 1
      %p47 = por %p45, %p46
      %p48 = scmp.ne.s32.totalorder %s37, %s38
      %p49 = scmp.eq.s32.totalorder %s29, 0
      %p50 = por %p48, %p49
      %p51 = scmp.ne.s32.totalorder %s37, %s38
      %p52 = scmp.eq.s32.totalorder %s30, 1
      %p53 = por %p51, %p52
      %p55 = scmp.ne.s32.totalorder %s38, %s54
      %p56 = scmp.eq.s32.totalorder %s30, 0
      %p57 = por %p55, %p56
      %s59 = sadd.s32 %s58, 1
      %p62 = scmp.eq.s32.totalorder %s24, 1
      %p63 = scmp.ne.s32.totalorder %s58, %s60
      %p64 = scmp.eq.s32.totalorder %s24, 0
      %p65 = por %p63, %p64
      %p66 = scmp.ne.s32.totalorder %s58, %s60
      %p67 = scmp.eq.s32.totalorder %s29, 1
      %p68 = por %p66, %p67
      %p69 = scmp.ne.s32.totalorder %s60, %s61
      %p70 = scmp.eq.s32.totalorder %s29, 0
      %p71 = por %p69, %p70
      %p72 = scmp.ne.s32.totalorder %s60, %s61
      %p73 = scmp.eq.s32.totalorder %s30, 1
      %p74 = por %p72, %p73
      %p76 = scmp.ne.s32.totalorder %s61, %s75
      %p77 = scmp.eq.s32.totalorder %s30, 0
      %p78 = por %p76, %p77
      %s80 = sadd.s32 %s79, 1
      %p83 = scmp.eq.s32.totalorder %s24, 1
      %p84 = scmp.ne.s32.totalorder %s79, %s81
      %p85 = scmp.eq.s32.totalorder %s24, 0
      %p86 = por %p84, %p85
      %p87 = scmp.ne.s32.totalorder %s79, %s81
      %p88 = scmp.eq.s32.totalorder %s29, 1
      %p89 = por %p87, %p88
      %p90 = scmp.ne.s32.totalorder %s81, %s82
      %p91 = scmp.eq.s32.totalorder %s29, 0
      %p92 = por %p90, %p91
      %p93 = scmp.ne.s32.totalorder %s81, %s82
      %p94 = scmp.eq.s32.totalorder %s30, 1
      %p95 = por %p93, %p94
      %p97 = scmp.ne.s32.totalorder %s82, %s96
      %p98 = scmp.eq.s32.totalorder %s30, 0
      %p99 = por %p97, %p98
      %s101 = sadd.s32 %s100, 1
      %p104 = scmp.eq.s32.totalorder %s24, 1
      %p105 = scmp.ne.s32.totalorder %s100, %s102
      %p106 = scmp.eq.s32.totalorder %s24, 0
      %p107 = por %p105, %p106
      %p108 = scmp.ne.s32.totalorder %s100, %s102
      %p109 = scmp.eq.s32.totalorder %s29, 1
      %p110 = por %p108, %p109
      %p111 = scmp.ne.s32.totalorder %s102, %s103
      %p112 = scmp.eq.s32.totalorder %s29, 0
      %p113 = por %p111, %p112
      %p114 = scmp.ne.s32.totalorder %s102, %s103
      %p115 = scmp.eq.s32.totalorder %s30, 1
      %p116 = por %p114, %p115
      %p118 = scmp.ne.s32.totalorder %s103, %s117
      %p119 = scmp.eq.s32.totalorder %s30, 0
      %p120 = por %p118, %p119
      %s122 = sadd.s32 %s121, 1
      %p125 = scmp.eq.s32.totalorder %s24, 1
      %p126 = scmp.ne.s32.totalorder %s121, %s123
      %p127 = scmp.eq.s32.totalorder %s24, 0
      %p128 = por %p126, %p127
      %p129 = scmp.ne.s32.totalorder %s121, %s123
      %p130 = scmp.eq.s32.totalorder %s29, 1
      %p131 = por %p129, %p130
      %p132 = scmp.ne.s32.totalorder %s123, %s124
      %p133 = scmp.eq.s32.totalorder %s29, 0
      %p134 = por %p132, %p133
      %p135 = scmp.ne.s32.totalorder %s123, %s124
      %p136 = scmp.eq.s32.totalorder %s30, 1
      %p137 = por %p135, %p136
      %p139 = scmp.ne.s32.totalorder %s124, %s138
      %p140 = scmp.eq.s32.totalorder %s30, 0
      %p141 = por %p139, %p140
      %s143 = sadd.s32 %s142, 1
      %p146 = scmp.eq.s32.totalorder %s24, 1
      %p147 = scmp.ne.s32.totalorder %s142, %s144
      %p148 = scmp.eq.s32.totalorder %s24, 0
      %p149 = por %p147, %p148
      %p150 = scmp.ne.s32.totalorder %s142, %s144
      %p151 = scmp.eq.s32.totalorder %s29, 1
      %p152 = por %p150, %p151
      %p153 = scmp.ne.s32.totalorder %s144, %s145
      %p154 = scmp.eq.s32.totalorder %s29, 0
      %p155 = por %p153, %p154
      %p156 = scmp.ne.s32.totalorder %s144, %s145
      %p157 = scmp.eq.s32.totalorder %s30, 1
      %p158 = por %p156, %p157
      %p160 = scmp.ne.s32.totalorder %s145, %s159
      %p161 = scmp.eq.s32.totalorder %s30, 0
      %p162 = por %p160, %p161
      %s164 = sadd.s32 %s163, 1
      %p167 = scmp.eq.s32.totalorder %s24, 1
      %p168 = scmp.ne.s32.totalorder %s163, %s165
      %p169 = scmp.eq.s32.totalorder %s24, 0
      %p170 = por %p168, %p169
      %p171 = scmp.ne.s32.totalorder %s163, %s165
      %p172 = scmp.eq.s32.totalorder %s29, 1
      %p173 = por %p171, %p172
      %p174 = scmp.ne.s32.totalorder %s165, %s166
      %p175 = scmp.eq.s32.totalorder %s29, 0
      %p176 = por %p174, %p175
      %p177 = scmp.ne.s32.totalorder %s165, %s166
      %p178 = scmp.eq.s32.totalorder %s30, 1
      %p179 = por %p177, %p178
      %p181 = scmp.ne.s32.totalorder %s166, %s180
      %p182 = scmp.eq.s32.totalorder %s30, 0
      %p183 = por %p181, %p182
      %s185 = sadd.s32 %s184, 1
      %p188 = scmp.eq.s32.totalorder %s24, 1
      %p189 = scmp.ne.s32.totalorder %s184, %s186
      %p190 = scmp.eq.s32.totalorder %s24, 0
      %p191 = por %p189, %p190
      %p192 = scmp.ne.s32.totalorder %s184, %s186
      %p193 = scmp.eq.s32.totalorder %s29, 1
      %p194 = por %p192, %p193
      %p195 = scmp.ne.s32.totalorder %s186, %s187
      %p196 = scmp.eq.s32.totalorder %s29, 0
      %p197 = por %p195, %p196
      %p198 = scmp.ne.s32.totalorder %s186, %s187
      %p199 = scmp.eq.s32.totalorder %s30, 1
      %p200 = por %p198, %p199
      %p202 = scmp.ne.s32.totalorder %s187, %s201
      %p203 = scmp.eq.s32.totalorder %s30, 0
      %p204 = por %p202, %p203
      %s206 = sadd.s32 %s205, 1
      %p209 = scmp.eq.s32.totalorder %s24, 1
      %p210 = scmp.ne.s32.totalorder %s205, %s207
      %p211 = scmp.eq.s32.totalorder %s24, 0
      %p212 = por %p210, %p211
      %p213 = scmp.ne.s32.totalorder %s205, %s207
      %p214 = scmp.eq.s32.totalorder %s29, 1
      %p215 = por %p213, %p214
      %p216 = scmp.ne.s32.totalorder %s207, %s208
      %p217 = scmp.eq.s32.totalorder %s29, 0
      %p218 = por %p216, %p217
      %p219 = scmp.ne.s32.totalorder %s207, %s208
      %p220 = scmp.eq.s32.totalorder %s30, 1
      %p221 = por %p219, %p220
      %p223 = scmp.ne.s32.totalorder %s208, %s222
      %p224 = scmp.eq.s32.totalorder %s30, 0
      %p225 = por %p223, %p224
      %s227 = sadd.s32 %s226, 1
      %p230 = scmp.eq.s32.totalorder %s24, 1
      %p231 = scmp.ne.s32.totalorder %s226, %s228
      %p232 = scmp.eq.s32.totalorder %s24, 0
      %p233 = por %p231, %p232
      %p234 = scmp.ne.s32.totalorder %s226, %s228
      %p235 = scmp.eq.s32.totalorder %s29, 1
      %p236 = por %p234, %p235
      %p237 = scmp.ne.s32.totalorder %s228, %s229
      %p238 = scmp.eq.s32.totalorder %s29, 0
      %p239 = por %p237, %p238
      %p240 = scmp.ne.s32.totalorder %s228, %s229
      %p241 = scmp.eq.s32.totalorder %s30, 1
      %p242 = por %p240, %p241
      %p244 = scmp.ne.s32.totalorder %s229, %s243
      %p245 = scmp.eq.s32.totalorder %s30, 0
      %p246 = por %p244, %p245
      %s248 = sadd.s32 %s247, 1
      %p251 = scmp.eq.s32.totalorder %s24, 1
      %p252 = scmp.ne.s32.totalorder %s247, %s249
      %p253 = scmp.eq.s32.totalorder %s24, 0
      %p254 = por %p252, %p253
      %p255 = scmp.ne.s32.totalorder %s247, %s249
      %p256 = scmp.eq.s32.totalorder %s29, 1
      %p257 = por %p255, %p256
      %p258 = scmp.ne.s32.totalorder %s249, %s250
      %p259 = scmp.eq.s32.totalorder %s29, 0
      %p260 = por %p258, %p259
      %p261 = scmp.ne.s32.totalorder %s249, %s250
      %p262 = scmp.eq.s32.totalorder %s30, 1
      %p263 = por %p261, %p262
      %p265 = scmp.ne.s32.totalorder %s250, %s264
      %p266 = scmp.eq.s32.totalorder %s30, 0
      %p267 = por %p265, %p266
      %s269 = sadd.s32 %s268, 1
      %p272 = scmp.eq.s32.totalorder %s24, 1
      %p273 = scmp.ne.s32.totalorder %s268, %s270
      %p274 = scmp.eq.s32.totalorder %s24, 0
      %p275 = por %p273, %p274
      %p276 = scmp.ne.s32.totalorder %s268, %s270
      %p277 = scmp.eq.s32.totalorder %s29, 1
      %p278 = por %p276, %p277
      %p279 = scmp.ne.s32.totalorder %s270, %s271
      %p280 = scmp.eq.s32.totalorder %s29, 0
      %p281 = por %p279, %p280
      %p282 = scmp.ne.s32.totalorder %s270, %s271
      %p283 = scmp.eq.s32.totalorder %s30, 1
      %p284 = por %p282, %p283
      %p286 = scmp.ne.s32.totalorder %s271, %s285
      %p287 = scmp.eq.s32.totalorder %s30, 0
      %p288 = por %p286, %p287
      %s289 = ssub.s32 %s24, %s31
      %p290 = scmp.eq.s32.totalorder %s289, 0
      %s292 = sadd.s32 %s291, 1
      %s293 = scalar_select %p290, %s291, %s292
      %p296 = pneg %p290
      %p297 = scmp.eq.s32.totalorder %s24, 1
      %p298 = por %p296, %p297
      %p299 = scmp.ne.s32.totalorder %s291, %s294
      %p300 = scmp.eq.s32.totalorder %s24, 0
      %p301 = por %p299, %p300
      %p302 = scmp.ne.s32.totalorder %s291, %s294
      %p303 = scmp.eq.s32.totalorder %s29, 1
      %p304 = por %p302, %p303
      %p305 = scmp.ne.s32.totalorder %s294, %s295
      %p306 = scmp.eq.s32.totalorder %s29, 0
      %p307 = por %p305, %p306
      %p308 = scmp.ne.s32.totalorder %s294, %s295
      %p309 = scmp.eq.s32.totalorder %s30, 1
      %p310 = por %p308, %p309
      %p312 = scmp.ne.s32.totalorder %s295, %s311
      %p313 = scmp.eq.s32.totalorder %s30, 0
      %p314 = por %p312, %p313
      %s315 = ssub.s32 %s24, %s31
      %p316 = scmp.eq.s32.totalorder %s315, 0
      %s318 = sadd.s32 %s317, 1
      %s319 = scalar_select %p316, %s317, %s318
      %p322 = pneg %p316
      %p323 = scmp.eq.s32.totalorder %s24, 1
      %p324 = por %p322, %p323
      %p325 = scmp.ne.s32.totalorder %s317, %s320
      %p326 = scmp.eq.s32.totalorder %s24, 0
      %p327 = por %p325, %p326
      %p328 = scmp.ne.s32.totalorder %s317, %s320
      %p329 = scmp.eq.s32.totalorder %s29, 1
      %p330 = por %p328, %p329
      %p331 = scmp.ne.s32.totalorder %s320, %s321
      %p332 = scmp.eq.s32.totalorder %s29, 0
      %p333 = por %p331, %p332
      %p334 = scmp.ne.s32.totalorder %s320, %s321
      %p335 = scmp.eq.s32.totalorder %s30, 1
      %p336 = por %p334, %p335
      %p338 = scmp.ne.s32.totalorder %s321, %s337
      %p339 = scmp.eq.s32.totalorder %s30, 0
      %p340 = por %p338, %p339
      %s341 = ssub.s32 %s24, %s31
      %p342 = scmp.eq.s32.totalorder %s341, 0
      %s344 = sadd.s32 %s343, 1
      %s345 = scalar_select %p342, %s343, %s344
      %p348 = pneg %p342
      %p349 = scmp.eq.s32.totalorder %s24, 1
      %p350 = por %p348, %p349
      %p351 = scmp.ne.s32.totalorder %s343, %s346
      %p352 = scmp.eq.s32.totalorder %s24, 0
      %p353 = por %p351, %p352
      %p354 = scmp.ne.s32.totalorder %s343, %s346
      %p355 = scmp.eq.s32.totalorder %s29, 1
      %p356 = por %p354, %p355
      %p357 = scmp.ne.s32.totalorder %s346, %s347
      %p358 = scmp.eq.s32.totalorder %s29, 0
      %p359 = por %p357, %p358
      %p360 = scmp.ne.s32.totalorder %s346, %s347
      %p361 = scmp.eq.s32.totalorder %s30, 1
      %p362 = por %p360, %p361
      %p364 = scmp.ne.s32.totalorder %s347, %s363
      %p365 = scmp.eq.s32.totalorder %s30, 0
      %p366 = por %p364, %p365
      %p367 = scmp.le.s32.totalorder 1, %s24
      %p368 = scmp.lt.s32.totalorder %s24, 3
      %p369 = pnand %p367, %p368
      %p370 = pneg %p369
      // Predicated region
      $region9: #{aiayn_forward.7} parent=5 // pred_check
        _
      $region10: #{aiayn_forward.7} parent=5 // pred_check_branch
        %372 = sbr.rel (%p369) target = $region12
      $region11: #{aiayn_forward.7} parent=5 // pred_region
        %s373 = ssub.s32 %s24, 1
        // Predicated region
        $region13: #{aiayn_forward.7} parent=11 // pred_check
          %p374 = pneg %p71
        $region14: #{aiayn_forward.7} parent=11 // pred_check_branch
          %376 = sbr.rel (%p374) target = $region16
        $region15: #{aiayn_forward.7} parent=11 // pred_region
          _
        $region16: #{aiayn_forward.7} parent=11 // pred_fallthru
          _
        // Predicated region
        $region17: #{aiayn_forward.7} parent=11 // pred_check
          %p377 = pneg %p92
        $region18: #{aiayn_forward.7} parent=11 // pred_check_branch
          %379 = sbr.rel (%p377) target = $region20
        $region19: #{aiayn_forward.7} parent=11 // pred_region
          _
        $region20: #{aiayn_forward.7} parent=11 // pred_fallthru
          _
        // Predicated region
        $region21: #{aiayn_forward.7} parent=11 // pred_check
          %p380 = pneg %p113
        $region22: #{aiayn_forward.7} parent=11 // pred_check_branch
          %382 = sbr.rel (%p380) target = $region24
        $region23: #{aiayn_forward.7} parent=11 // pred_region
          _
        $region24: #{aiayn_forward.7} parent=11 // pred_fallthru
          _
        // Predicated region
        $region25: #{aiayn_forward.7} parent=11 // pred_check
          %p383 = pneg %p134
        $region26: #{aiayn_forward.7} parent=11 // pred_check_branch
          %385 = sbr.rel (%p383) target = $region28
        $region27: #{aiayn_forward.7} parent=11 // pred_region
          _
        $region28: #{aiayn_forward.7} parent=11 // pred_fallthru
          _
        // Predicated region
        $region29: #{aiayn_forward.7} parent=11 // pred_check
          %p386 = pneg %p155
        $region30: #{aiayn_forward.7} parent=11 // pred_check_branch
          %388 = sbr.rel (%p386) target = $region32
        $region31: #{aiayn_forward.7} parent=11 // pred_region
          _
        $region32: #{aiayn_forward.7} parent=11 // pred_fallthru
          _
        // Predicated region
        $region33: #{aiayn_forward.7} parent=11 // pred_check
          %p389 = pneg %p176
        $region34: #{aiayn_forward.7} parent=11 // pred_check_branch
          %391 = sbr.rel (%p389) target = $region36
        $region35: #{aiayn_forward.7} parent=11 // pred_region
          _
        $region36: #{aiayn_forward.7} parent=11 // pred_fallthru
          _
        // Predicated region
        $region37: #{aiayn_forward.7} parent=11 // pred_check
          %p392 = pneg %p197
        $region38: #{aiayn_forward.7} parent=11 // pred_check_branch
          %394 = sbr.rel (%p392) target = $region40
        $region39: #{aiayn_forward.7} parent=11 // pred_region
          _
        $region40: #{aiayn_forward.7} parent=11 // pred_fallthru
          _
        // Predicated region
        $region41: #{aiayn_forward.7} parent=11 // pred_check
          %p395 = pneg %p218
        $region42: #{aiayn_forward.7} parent=11 // pred_check_branch
          %397 = sbr.rel (%p395) target = $region44
        $region43: #{aiayn_forward.7} parent=11 // pred_region
          _
        $region44: #{aiayn_forward.7} parent=11 // pred_fallthru
          _
        // Predicated region
        $region45: #{aiayn_forward.7} parent=11 // pred_check
          %p398 = pneg %p239
        $region46: #{aiayn_forward.7} parent=11 // pred_check_branch
          %400 = sbr.rel (%p398) target = $region48
        $region47: #{aiayn_forward.7} parent=11 // pred_region
          _
        $region48: #{aiayn_forward.7} parent=11 // pred_fallthru
          _
        // Predicated region
        $region49: #{aiayn_forward.7} parent=11 // pred_check
          %p401 = pneg %p260
        $region50: #{aiayn_forward.7} parent=11 // pred_check_branch
          %403 = sbr.rel (%p401) target = $region52
        $region51: #{aiayn_forward.7} parent=11 // pred_region
          _
        $region52: #{aiayn_forward.7} parent=11 // pred_fallthru
          _
        // Predicated region
        $region53: #{aiayn_forward.7} parent=11 // pred_check
          %p404 = pneg %p281
        $region54: #{aiayn_forward.7} parent=11 // pred_check_branch
          %406 = sbr.rel (%p404) target = $region56
        $region55: #{aiayn_forward.7} parent=11 // pred_region
          _
        $region56: #{aiayn_forward.7} parent=11 // pred_fallthru
          _
      $region12: #{aiayn_forward.7} parent=5 // pred_fallthru
        _
      %p407 = scmp.lt.s32.totalorder %s24, 2
      // Predicated region
      $region57: #{aiayn_forward.7} parent=5 // pred_check
        %p408 = pneg %p407
      $region58: #{aiayn_forward.7} parent=5 // pred_check_branch
        %410 = sbr.rel (%p408) target = $region60
      $region59: #{aiayn_forward.7} parent=5 // pred_region
        // Predicated region
        $region61: #{aiayn_forward.7} parent=59 // pred_check
          %p411 = pneg %p44
        $region62: #{aiayn_forward.7} parent=59 // pred_check_branch
          %413 = sbr.rel (%p411) target = $region64
        $region63: #{aiayn_forward.7} parent=59 // pred_region
          %p414 = scmp.lt.s32.totalorder %s24, 1
          %s415 = scalar_select %p414, %s24, 1
          %s416 = smul.addr %s415, 4
          %s417 = scalar_lea.vmem %s0, %s416
        $region64: #{aiayn_forward.7} parent=59 // pred_fallthru
          _
      $region60: #{aiayn_forward.7} parent=5 // pred_fallthru
        _
      %p418 = scmp.le.s32.totalorder 1, %s24
      %p419 = scmp.lt.s32.totalorder %s24, 3
      %p420 = pnand %p418, %p419
      %p421 = pneg %p420
      // Predicated region
      $region65: #{aiayn_forward.7} parent=5 // pred_check
        _
      $region66: #{aiayn_forward.7} parent=5 // pred_check_branch
        %423 = sbr.rel (%p420) target = $region68
      $region67: #{aiayn_forward.7} parent=5 // pred_region
        %s424 = ssub.s32 %s24, 1
        %p425 = scmp.lt.s32.totalorder %s29, 1
        %s426 = scalar_select %p425, %s29, 1
        %s427 = smul.addr %s426, 4
        %s428 = scalar_lea.vmem %s0, %s427
        %p429 = pneg %p50
        %p430 = pneg %p47
        %p431 = pneg %p71
        %p432 = pneg %p68
        %p433 = pneg %p92
        %p434 = pneg %p89
        %p435 = pneg %p113
        %p436 = pneg %p110
        %p437 = pneg %p134
        %p438 = pneg %p131
        %p439 = pneg %p155
        %p440 = pneg %p152
        %p441 = pneg %p176
        %p442 = pneg %p173
        %p443 = pneg %p197
        %p444 = pneg %p194
        %p445 = pneg %p218
        %p446 = pneg %p215
        %p447 = pneg %p239
        %p448 = pneg %p236
        %p449 = pneg %p260
        %p450 = pneg %p257
        %p451 = pneg %p281
        %p452 = pneg %p278
        %p453 = pneg %p307
        %p454 = pneg %p304
        %s455 = sand.u32 %s294, 1
        %s456 = scalar_lea.sflag [#allocation3], %s455
        %s457 = sand.u32 %s294, 1
        %s458 = smul.addr %s457, 4
        %s459 = scalar_lea.vmem [#allocation2], %s458
        %p460 = pneg %p333
        %p461 = pneg %p330
        %p462 = scmp.lt.s32.totalorder %s29, 1
        %s463 = scalar_select %p462, %s29, 1
        %s464 = smul.addr %s463, 4
        %s465 = scalar_lea.vmem %s13, %s464
        %p466 = pneg %p359
        %p467 = pneg %p356
        %p468 = scmp.lt.s32.totalorder %s29, 1
        %s469 = scalar_select %p468, %s29, 1
        %s470 = smul.addr %s469, 4
        %s471 = scalar_lea.vmem %s14, %s470
        %p472 = scmp.lt.s32.totalorder %s29, 1
        %s473 = scalar_select %p472, %s29, 1
        %s474 = smul.addr %s473, 4
        %s475 = scalar_lea.vmem %s0, %s474
        %p476 = scmp.lt.s32.totalorder %s29, 1
        %s477 = scalar_select %p476, %s29, 1
        %s478 = smul.addr %s477, 4
        %s479 = scalar_lea.vmem %s13, %s478
        %p480 = scmp.lt.s32.totalorder %s29, 1
        %s481 = scalar_select %p480, %s29, 1
        %s482 = smul.addr %s481, 4
        %s483 = scalar_lea.vmem %s14, %s482
        %v485 = vld [vmem:[%s475] sm:$0xf]
        %v486 = vunpack.c.l.bf16 %v485
        %v487 = vld [vmem:[%s1] sm:$0xff]
        %v488 = vld [vmem:[%s1 + $0x8] sm:$0xff]
        %v489 = vld [vmem:[%s1 + $0x10] sm:$0xff]
        %v490 = vld [vmem:[%s1 + $0x18] sm:$0xff]
        %v491 = vld [vmem:[%s10] sm:$0x7]
        %v492 = vld [vmem:[%s11] sm:$0x7]
        %v493 = vld [vmem:[%s2] sm:$0xf]
        %v494 = vld [vmem:[%s2 + $0x4] sm:$0xf]
        %v495 = vld [vmem:[%s2 + $0x8] sm:$0xf]
        %v496 = vld [vmem:[%s2 + $0xc] sm:$0xf]
        %v497 = vld [vmem:[%s3] sm:$0x1]
        %v499 = vlaneseq
        %v500 = vshrl.u32 %v499, 7
        %v501 = vsub.s32 0, %v500
        %v502 = vrot.slane %v497, %v501
        %v508 = vunpack.c.l.b16 %v493
        %v509 = vunpack.c.l.b16 %v494
        %v510 = vunpack.c.l.b16 %v495
        %v511 = vunpack.c.l.b16 %v496
        %v512 = vpack.c.b16 %v509, %v508
        %v513 = vpack.c.b16 %v511, %v510
        %vm516 = vcmask 261120
        %v518 = vsel %vm516, %v485, 0
        %520 = vmatprep.subr.bf16.mxu0 0
        %521 = vmatpush1.bf16.msra.mxu0 %v512
        %522 = vmatprep.subr.bf16.mxu0 0
        %523 = vmatpush1.bf16.msra.mxu0 %v513
        %524 = vmatprep.subr.bf16.mxu0 0
        %525 = vmatpush1.bf16.msra.mxu0 0
        %526 = vmatprep.subr.bf16.mxu0 0
        %527 = vmatpush1.bf16.msra.mxu0 0
        %528 = vmatprep.subr.bf16.mxu0 0
        %529 = vmatpush1.bf16.msra.mxu0 0
        %530 = vmatprep.subr.bf16.mxu0 0
        %531 = vmatpush1.bf16.msra.mxu0 0
        %532 = vmatprep.subr.bf16.mxu0 0
        %533 = vmatpush1.bf16.msra.mxu0 0
        %534 = vmatprep.subr.bf16.mxu0 0
        %535 = vmatpush1.bf16.msra.mxu0 0
        %536 = vmatprep.subr.bf16.mxu0 0
        %537 = vmatpush1.bf16.msra.mxu0 0
        %538 = vmatprep.subr.bf16.mxu0 0
        %539 = vmatpush1.bf16.msra.mxu0 0
        %540 = vmatprep.subr.bf16.mxu0 0
        %541 = vmatpush1.bf16.msra.mxu0 0
        %542 = vmatprep.subr.bf16.mxu0 0
        %543 = vmatpush1.bf16.msra.mxu0 0
        %544 = vmatprep.subr.bf16.mxu0 0
        %545 = vmatpush1.bf16.msra.mxu0 0
        %546 = vmatprep.subr.bf16.mxu0 0
        %547 = vmatpush1.bf16.msra.mxu0 0
        %548 = vmatprep.subr.bf16.mxu0 0
        %549 = vmatpush1.bf16.msra.mxu0 0
        %550 = vmatprep.subr.bf16.mxu0 0
        %551 = vmatpush1.bf16.msra.mxu0 0
        %552 = vmatprep.mubr.bf16.mxu0 0
        %553 = vmatmul.mubr.bf16.gmra.mrb[0].mxu0 %v518
        %v554 = vpop.f32.mrb[0].mxu0
        %v555 = vadd.f32 %v502, %v554
        %v556 = vpop.f32.mrb[0].mxu0
        %v557 = vpop.f32.mrb[0].mxu0
        %v558 = vpop.f32.mrb[0].mxu0
        %559 = vdwg.mxu0
        %v560 = vpack.c.bf16 %v555, %v555
        %v562 = vunpack.c.l.b16 %v560
        %v563 = vpack.c.b16 %v562, %v562
        %564 = vrot.lane.b32.xlu0 %v563, 96
        %v565 = vpop.permute.xlu0 %564
        %vm567 = vcmask 257024
        %568 = vst.msk [vmem:[%s479] sm:$0xf] %vm567, %v565
        %569 = vrot.lane.b32.xlu0 %v563, 64
        %v570 = vpop.permute.xlu0 %569
        %572 = vst.msk [vmem:[%s483] sm:$0xf] %vm567, %v570
        %574 = vrot.lane.b32.xlu0 %v555, 96
        %v575 = vpop.permute.xlu0 %574
        %577 = vxpose.xlu0.b32.start [1/16] %v575, 128
        %578 = vxpose.xlu0.b32.cont [2/16] 0.0, 128
        %579 = vxpose.xlu0.b32.cont [3/16] 0.0, 128
        %580 = vxpose.xlu0.b32.cont [4/16] 0.0, 128
        %581 = vxpose.xlu0.b32.cont [5/16] 0.0, 128
        %582 = vxpose.xlu0.b32.cont [6/16] 0.0, 128
        %583 = vxpose.xlu0.b32.cont [7/16] 0.0, 128
        %584 = vxpose.xlu0.b32.cont [8/16] 0.0, 128
        %585 = vxpose.xlu0.b32.cont [9/16] 0.0, 128
        %586 = vxpose.xlu0.b32.cont [10/16] 0.0, 128
        %587 = vxpose.xlu0.b32.cont [11/16] 0.0, 128
        %588 = vxpose.xlu0.b32.cont [12/16] 0.0, 128
        %589 = vxpose.xlu0.b32.cont [13/16] 0.0, 128
        %590 = vxpose.xlu0.b32.cont [14/16] 0.0, 128
        %591 = vxpose.xlu0.b32.cont [15/16] 0.0, 128
        %592 = vxpose.xlu0.b32.end [16/16] 0.0, 128
        %v593 = vpop.trf.xlu0
        %v594 = vpop.trf.xlu0
        %v595 = vpop.trf.xlu0
        %v596 = vpop.trf.xlu0
        %v597 = vpop.trf.xlu0
        %v598 = vpop.trf.xlu0
        %v599 = vpop.trf.xlu0
        %v600 = vpop.trf.xlu0
        %v601 = vpop.trf.xlu0
        %v602 = vpop.trf.xlu0
        %v603 = vpop.trf.xlu0
        %v604 = vpop.trf.xlu0
        %v605 = vpop.trf.xlu0
        %v606 = vpop.trf.xlu0
        %v607 = vpop.trf.xlu0
        %v608 = vpop.trf.xlu0
        %609 = vrot.lane.b32.xlu0 %v555, 64
        %v610 = vpop.permute.xlu0 %609
        %vm612 = vcmask 64512
        %v614 = vsel %vm612, %v593, 0
        %v617 = vsel %vm612, %v594, 0
        %v620 = vsel %vm612, %v595, 0
        %v623 = vsel %vm612, %v596, 0
        %625 = vmatprep.subr.mxu0 0.0
        %626 = vmatpush1.msra.mxu0 %v610
        %627 = vmatprep.subr.mxu0 0.0
        %628 = vmatpush1.msra.mxu0 0.0
        %629 = vmatprep.subr.mxu0 0.0
        %630 = vmatpush1.msra.mxu0 0.0
        %631 = vmatprep.subr.mxu0 0.0
        %632 = vmatpush1.msra.mxu0 0.0
        %633 = vmatprep.subr.mxu0 0.0
        %634 = vmatpush1.msra.mxu0 0.0
        %635 = vmatprep.subr.mxu0 0.0
        %636 = vmatpush1.msra.mxu0 0.0
        %637 = vmatprep.subr.mxu0 0.0
        %638 = vmatpush1.msra.mxu0 0.0
        %639 = vmatprep.subr.mxu0 0.0
        %640 = vmatpush1.msra.mxu0 0.0
        %641 = vmatprep.subr.mxu0 0.0
        %642 = vmatpush1.msra.mxu0 0.0
        %643 = vmatprep.subr.mxu0 0.0
        %644 = vmatpush1.msra.mxu0 0.0
        %645 = vmatprep.subr.mxu0 0.0
        %646 = vmatpush1.msra.mxu0 0.0
        %647 = vmatprep.subr.mxu0 0.0
        %648 = vmatpush1.msra.mxu0 0.0
        %649 = vmatprep.subr.mxu0 0.0
        %650 = vmatpush1.msra.mxu0 0.0
        %651 = vmatprep.subr.mxu0 0.0
        %652 = vmatpush1.msra.mxu0 0.0
        %653 = vmatprep.subr.mxu0 0.0
        %654 = vmatpush1.msra.mxu0 0.0
        %655 = vmatprep.subr.mxu0 0.0
        %656 = vmatpush1.msra.mxu0 0.0
        %657 = vmatprep.subr.mxu0 0.0
        %658 = vmatpush1.msra.mxu0 0.0
        %659 = vmatprep.subr.mxu0 0.0
        %660 = vmatpush1.msra.mxu0 0.0
        %661 = vmatprep.subr.mxu0 0.0
        %662 = vmatpush1.msra.mxu0 0.0
        %663 = vmatprep.subr.mxu0 0.0
        %664 = vmatpush1.msra.mxu0 0.0
        %665 = vmatprep.subr.mxu0 0.0
        %666 = vmatpush1.msra.mxu0 0.0
        %667 = vmatprep.subr.mxu0 0.0
        %668 = vmatpush1.msra.mxu0 0.0
        %669 = vmatprep.subr.mxu0 0.0
        %670 = vmatpush1.msra.mxu0 0.0
        %671 = vmatprep.subr.mxu0 0.0
        %672 = vmatpush1.msra.mxu0 0.0
        %673 = vmatprep.subr.mxu0 0.0
        %674 = vmatpush1.msra.mxu0 0.0
        %675 = vmatprep.subr.mxu0 0.0
        %676 = vmatpush1.msra.mxu0 0.0
        %677 = vmatprep.subr.mxu0 0.0
        %678 = vmatpush1.msra.mxu0 0.0
        %679 = vmatprep.subr.mxu0 0.0
        %680 = vmatpush1.msra.mxu0 0.0
        %681 = vmatprep.subr.mxu0 0.0
        %682 = vmatpush1.msra.mxu0 0.0
        %683 = vmatprep.subr.mxu0 0.0
        %684 = vmatpush1.msra.mxu0 0.0
        %685 = vmatprep.subr.mxu0 0.0
        %686 = vmatpush1.msra.mxu0 0.0
        %687 = vmatprep.subr.mxu0 0.0
        %688 = vmatpush1.msra.mxu0 0.0
        %689 = vmatprep.mubr.f32.mxu0 0.0
        %690 = vmatmul.mubr.f32.gmra.mrb[0].mxu0 %v614
        %v691 = vpop.f32.mrb[0].mxu0
        %v692 = vadd.f32 0.0, %v691
        %v693 = vpop.f32.mrb[0].mxu0
        %694 = vmatprep.mubr.f32.mxu0 0.0
        %695 = vmatmul.mubr.f32.gmra.mrb[0].mxu0 %v617
        %v696 = vpop.f32.mrb[0].mxu0
        %v697 = vadd.f32 0.0, %v696
        %v698 = vpop.f32.mrb[0].mxu0
        %699 = vmatprep.mubr.f32.mxu0 0.0
        %700 = vmatmul.mubr.f32.gmra.mrb[0].mxu0 %v620
        %v701 = vpop.f32.mrb[0].mxu0
        %v702 = vadd.f32 0.0, %v701
        %v703 = vpop.f32.mrb[0].mxu0
        %704 = vmatprep.mubr.f32.mxu0 0.0
        %705 = vmatmul.mubr.f32.gmra.mrb[0].mxu0 %v623
        %v706 = vpop.f32.mrb[0].mxu0
        %v707 = vadd.f32 0.0, %v706
        %v708 = vpop.f32.mrb[0].mxu0
        %709 = vdwg.mxu0
        %v710 = vmul.f32 %v692, %v487
        %v711 = vmul.f32 %v697, %v488
        %v712 = vmul.f32 %v702, %v489
        %v713 = vmul.f32 %v707, %v490
        %v714 = vpack.c.bf16 %v711, %v710
        %v715 = vpack.c.bf16 %v713, %v712
        %v717 = vsel %vm516, %v560, 0
        %719 = vmatprep.subr.bf16.mxu0 0
        %720 = vmatpush1.bf16.msra.mxu0 %v714
        %721 = vmatprep.subr.bf16.mxu0 0
        %722 = vmatpush1.bf16.msra.mxu0 %v715
        %723 = vmatprep.subr.bf16.mxu0 0
        %724 = vmatpush1.bf16.msra.mxu0 0
        %725 = vmatprep.subr.bf16.mxu0 0
        %726 = vmatpush1.bf16.msra.mxu0 0
        %727 = vmatprep.subr.bf16.mxu0 0
        %728 = vmatpush1.bf16.msra.mxu0 0
        %729 = vmatprep.subr.bf16.mxu0 0
        %730 = vmatpush1.bf16.msra.mxu0 0
        %731 = vmatprep.subr.bf16.mxu0 0
        %732 = vmatpush1.bf16.msra.mxu0 0
        %733 = vmatprep.subr.bf16.mxu0 0
        %734 = vmatpush1.bf16.msra.mxu0 0
        %735 = vmatprep.subr.bf16.mxu0 0
        %736 = vmatpush1.bf16.msra.mxu0 0
        %737 = vmatprep.subr.bf16.mxu0 0
        %738 = vmatpush1.bf16.msra.mxu0 0
        %739 = vmatprep.subr.bf16.mxu0 0
        %740 = vmatpush1.bf16.msra.mxu0 0
        %741 = vmatprep.subr.bf16.mxu0 0
        %742 = vmatpush1.bf16.msra.mxu0 0
        %743 = vmatprep.subr.bf16.mxu0 0
        %744 = vmatpush1.bf16.msra.mxu0 0
        %745 = vmatprep.subr.bf16.mxu0 0
        %746 = vmatpush1.bf16.msra.mxu0 0
        %747 = vmatprep.subr.bf16.mxu0 0
        %748 = vmatpush1.bf16.msra.mxu0 0
        %749 = vmatprep.subr.bf16.mxu0 0
        %750 = vmatpush1.bf16.msra.mxu0 0
        %751 = vmatprep.mubr.bf16.mxu0 0
        %752 = vmatmul.mubr.bf16.gmra.mrb[0].mxu0 %v717
        %v753 = vpop.f32.mrb[0].mxu0
        %v754 = vadd.f32 0.0, %v753
        %v755 = vpop.f32.mrb[0].mxu0
        %v756 = vpop.f32.mrb[0].mxu0
        %v757 = vpop.f32.mrb[0].mxu0
        %758 = vdwg.mxu0
        %v759 = vmul.f32 %v754, 0.35355338
        %v760 = vpack.c.bf16 %v759, %v759
        %v761 = vld [vmem:[%s4] sm:$0xf]
        %v762 = vld [vmem:[%s4 + $0x4] sm:$0xf]
        %v763 = vld [vmem:[%s4 + $0x8] sm:$0xf]
        %v764 = vld [vmem:[%s4 + $0xc] sm:$0xf]
        %v765 = vld [vmem:[%s5] sm:$0x1]
        %v767 = vlaneseq
        %v768 = vshrl.u32 %v767, 7
        %v769 = vsub.s32 0, %v768
        %v770 = vrot.slane %v765, %v769
        %v776 = vunpack.c.l.b16 %v761
        %v777 = vunpack.c.l.b16 %v762
        %v778 = vunpack.c.l.b16 %v763
        %v779 = vunpack.c.l.b16 %v764
        %v780 = vpack.c.b16 %v777, %v776
        %v781 = vpack.c.b16 %v779, %v778
        %v785 = vsel %vm516, %v760, 0
        %787 = vmatprep.subr.bf16.mxu0 0
        %788 = vmatpush1.bf16.msra.mxu0 %v780
        %789 = vmatprep.subr.bf16.mxu0 0
        %790 = vmatpush1.bf16.msra.mxu0 %v781
        %791 = vmatprep.subr.bf16.mxu0 0
        %792 = vmatpush1.bf16.msra.mxu0 0
        %793 = vmatprep.subr.bf16.mxu0 0
        %794 = vmatpush1.bf16.msra.mxu0 0
        %795 = vmatprep.subr.bf16.mxu0 0
        %796 = vmatpush1.bf16.msra.mxu0 0
        %797 = vmatprep.subr.bf16.mxu0 0
        %798 = vmatpush1.bf16.msra.mxu0 0
        %799 = vmatprep.subr.bf16.mxu0 0
        %800 = vmatpush1.bf16.msra.mxu0 0
        %801 = vmatprep.subr.bf16.mxu0 0
        %802 = vmatpush1.bf16.msra.mxu0 0
        %803 = vmatprep.subr.bf16.mxu0 0
        %804 = vmatpush1.bf16.msra.mxu0 0
        %805 = vmatprep.subr.bf16.mxu0 0
        %806 = vmatpush1.bf16.msra.mxu0 0
        %807 = vmatprep.subr.bf16.mxu0 0
        %808 = vmatpush1.bf16.msra.mxu0 0
        %809 = vmatprep.subr.bf16.mxu0 0
        %810 = vmatpush1.bf16.msra.mxu0 0
        %811 = vmatprep.subr.bf16.mxu0 0
        %812 = vmatpush1.bf16.msra.mxu0 0
        %813 = vmatprep.subr.bf16.mxu0 0
        %814 = vmatpush1.bf16.msra.mxu0 0
        %815 = vmatprep.subr.bf16.mxu0 0
        %816 = vmatpush1.bf16.msra.mxu0 0
        %817 = vmatprep.subr.bf16.mxu0 0
        %818 = vmatpush1.bf16.msra.mxu0 0
        %819 = vmatprep.mubr.bf16.mxu0 0
        %820 = vmatmul.mubr.bf16.gmra.mrb[0].mxu0 %v785
        %v821 = vpop.f32.mrb[0].mxu0
        %v822 = vadd.f32 %v770, %v821
        %v823 = vpop.f32.mrb[0].mxu0
        %v824 = vpop.f32.mrb[0].mxu0
        %v825 = vpop.f32.mrb[0].mxu0
        %826 = vdwg.mxu0
        %v827 = vadd.f32 %v486, %v822
        %v828 = vsel %vm516, %v827, 0.0
        %829 = vadd.xlane.f32.xlu0 %v828
        %v830 = vpop.xlane.xlu0 %829
        %v831 = vrcp.pop 32.0
        %v832 = vmul.f32 %v830, %v831
        %v833 = vsub.f32 %v827, %v832
        %v834 = vmul.f32 %v833, %v833
        %v835 = vsel %vm516, %v834, 0.0
        %836 = vadd.xlane.f32.xlu0 %v835
        %v837 = vpop.xlane.xlu0 %836
        %v838 = vmul.f32 %v837, %v831
        %v839 = vadd.f32 %v838, 1e-05
        %v840 = vrsqrt.pop %v839
        %v841 = vmul.f32 %v833, %v840
        %v842 = vlaneseq
        %v843 = vshrl.u32 %v842, 7
        %v844 = vsub.s32 0, %v843
        %v845 = vrot.slane %v491, %v844
        %v846 = vmul.f32 %v841, %v845
        %v847 = vlaneseq
        %v848 = vshrl.u32 %v847, 7
        %v849 = vsub.s32 0, %v848
        %v850 = vrot.slane %v492, %v849
        %v851 = vadd.f32 %v846, %v850
        %v852 = vpack.c.bf16 %v851, %v851
        %v853 = vld [vmem:[%s6] sm:$0xf]
        %v854 = vld [vmem:[%s6 + $0x4] sm:$0xf]
        %v855 = vld [vmem:[%s6 + $0x8] sm:$0xf]
        %v856 = vld [vmem:[%s6 + $0xc] sm:$0xf]
        %v857 = vld [vmem:[%s7] sm:$0x1]
        %v859 = vlaneseq
        %v860 = vshrl.u32 %v859, 7
        %v861 = vsub.s32 0, %v860
        %v862 = vrot.slane %v857, %v861
        %v868 = vunpack.c.l.b16 %v853
        %v869 = vunpack.c.l.b16 %v854
        %v870 = vunpack.c.l.b16 %v855
        %v871 = vunpack.c.l.b16 %v856
        %v872 = vpack.c.b16 %v869, %v868
        %v873 = vpack.c.b16 %v871, %v870
        %v877 = vsel %vm516, %v852, 0
        %879 = vmatprep.subr.bf16.mxu0 0
        %880 = vmatpush1.bf16.msra.mxu0 %v872
        %881 = vmatprep.subr.bf16.mxu0 0
        %882 = vmatpush1.bf16.msra.mxu0 %v873
        %883 = vmatprep.subr.bf16.mxu0 0
        %884 = vmatpush1.bf16.msra.mxu0 0
        %885 = vmatprep.subr.bf16.mxu0 0
        %886 = vmatpush1.bf16.msra.mxu0 0
        %887 = vmatprep.subr.bf16.mxu0 0
        %888 = vmatpush1.bf16.msra.mxu0 0
        %889 = vmatprep.subr.bf16.mxu0 0
        %890 = vmatpush1.bf16.msra.mxu0 0
        %891 = vmatprep.subr.bf16.mxu0 0
        %892 = vmatpush1.bf16.msra.mxu0 0
        %893 = vmatprep.subr.bf16.mxu0 0
        %894 = vmatpush1.bf16.msra.mxu0 0
        %895 = vmatprep.subr.bf16.mxu0 0
        %896 = vmatpush1.bf16.msra.mxu0 0
        %897 = vmatprep.subr.bf16.mxu0 0
        %898 = vmatpush1.bf16.msra.mxu0 0
        %899 = vmatprep.subr.bf16.mxu0 0
        %900 = vmatpush1.bf16.msra.mxu0 0
        %901 = vmatprep.subr.bf16.mxu0 0
        %902 = vmatpush1.bf16.msra.mxu0 0
        %903 = vmatprep.subr.bf16.mxu0 0
        %904 = vmatpush1.bf16.msra.mxu0 0
        %905 = vmatprep.subr.bf16.mxu0 0
        %906 = vmatpush1.bf16.msra.mxu0 0
        %907 = vmatprep.subr.bf16.mxu0 0
        %908 = vmatpush1.bf16.msra.mxu0 0
        %909 = vmatprep.subr.bf16.mxu0 0
        %910 = vmatpush1.bf16.msra.mxu0 0
        %911 = vmatprep.mubr.bf16.mxu0 0
        %912 = vmatmul.mubr.bf16.gmra.mrb[0].mxu0 %v877
        %v913 = vpop.f32.mrb[0].mxu0
        %v914 = vadd.f32 %v862, %v913
        %v915 = vpop.f32.mrb[0].mxu0
        %v916 = vpop.f32.mrb[0].mxu0
        %v917 = vpop.f32.mrb[0].mxu0
        %918 = vdwg.mxu0
        %v919 = vmax.f32 %v914, 0.0
        %v920 = vpack.c.bf16 %v919, %v919
        %v921 = vld [vmem:[%s8] sm:$0xf]
        %v922 = vld [vmem:[%s8 + $0x4] sm:$0xf]
        %v923 = vld [vmem:[%s8 + $0x8] sm:$0xf]
        %v924 = vld [vmem:[%s8 + $0xc] sm:$0xf]
        %v925 = vld [vmem:[%s8 + $0x10] sm:$0xf]
        %v926 = vld [vmem:[%s8 + $0x14] sm:$0xf]
        %v927 = vld [vmem:[%s8 + $0x18] sm:$0xf]
        %v928 = vld [vmem:[%s8 + $0x1c] sm:$0xf]
        %v929 = vld [vmem:[%s8 + $0x20] sm:$0xf]
        %v930 = vld [vmem:[%s8 + $0x24] sm:$0xf]
        %v931 = vld [vmem:[%s8 + $0x28] sm:$0xf]
        %v932 = vld [vmem:[%s8 + $0x2c] sm:$0xf]
        %v933 = vld [vmem:[%s8 + $0x30] sm:$0xf]
        %v934 = vld [vmem:[%s8 + $0x34] sm:$0xf]
        %v935 = vld [vmem:[%s8 + $0x38] sm:$0xf]
        %v936 = vld [vmem:[%s8 + $0x3c] sm:$0xf]
        %v937 = vld [vmem:[%s9] sm:$0x1]
        %v939 = vlaneseq
        %v940 = vshrl.u32 %v939, 7
        %v941 = vsub.s32 0, %v940
        %v942 = vrot.slane %v937, %v941
        %v960 = vunpack.c.l.b16 %v921
        %v961 = vunpack.c.l.b16 %v922
        %v962 = vunpack.c.l.b16 %v923
        %v963 = vunpack.c.l.b16 %v924
        %v964 = vunpack.c.l.b16 %v925
        %v965 = vunpack.c.l.b16 %v926
        %v966 = vunpack.c.l.b16 %v927
        %v967 = vunpack.c.l.b16 %v928
        %v968 = vunpack.c.l.b16 %v929
        %v969 = vunpack.c.l.b16 %v930
        %v970 = vunpack.c.l.b16 %v931
        %v971 = vunpack.c.l.b16 %v932
        %v972 = vunpack.c.l.b16 %v933
        %v973 = vunpack.c.l.b16 %v934
        %v974 = vunpack.c.l.b16 %v935
        %v975 = vunpack.c.l.b16 %v936
        %v976 = vpack.c.b16 %v961, %v960
        %v977 = vpack.c.b16 %v963, %v962
        %v978 = vpack.c.b16 %v965, %v964
        %v979 = vpack.c.b16 %v967, %v966
        %v980 = vpack.c.b16 %v969, %v968
        %v981 = vpack.c.b16 %v971, %v970
        %v982 = vpack.c.b16 %v973, %v972
        %v983 = vpack.c.b16 %v975, %v974
        %992 = vmatprep.subr.bf16.mxu0 0
        %993 = vmatpush1.bf16.msra.mxu0 %v976
        %994 = vmatprep.subr.bf16.mxu0 0
        %995 = vmatpush1.bf16.msra.mxu0 %v977
        %996 = vmatprep.subr.bf16.mxu0 0
        %997 = vmatpush1.bf16.msra.mxu0 %v978
        %998 = vmatprep.subr.bf16.mxu0 0
        %999 = vmatpush1.bf16.msra.mxu0 %v979
        %1000 = vmatprep.subr.bf16.mxu0 0
        %1001 = vmatpush1.bf16.msra.mxu0 %v980
        %1002 = vmatprep.subr.bf16.mxu0 0
        %1003 = vmatpush1.bf16.msra.mxu0 %v981
        %1004 = vmatprep.subr.bf16.mxu0 0
        %1005 = vmatpush1.bf16.msra.mxu0 %v982
        %1006 = vmatprep.subr.bf16.mxu0 0
        %1007 = vmatpush1.bf16.msra.mxu0 %v983
        %1008 = vmatprep.subr.bf16.mxu0 0
        %1009 = vmatpush1.bf16.msra.mxu0 0
        %1010 = vmatprep.subr.bf16.mxu0 0
        %1011 = vmatpush1.bf16.msra.mxu0 0
        %1012 = vmatprep.subr.bf16.mxu0 0
        %1013 = vmatpush1.bf16.msra.mxu0 0
        %1014 = vmatprep.subr.bf16.mxu0 0
        %1015 = vmatpush1.bf16.msra.mxu0 0
        %1016 = vmatprep.subr.bf16.mxu0 0
        %1017 = vmatpush1.bf16.msra.mxu0 0
        %1018 = vmatprep.subr.bf16.mxu0 0
        %1019 = vmatpush1.bf16.msra.mxu0 0
        %1020 = vmatprep.subr.bf16.mxu0 0
        %1021 = vmatpush1.bf16.msra.mxu0 0
        %1022 = vmatprep.subr.bf16.mxu0 0
        %1023 = vmatpush1.bf16.msra.mxu0 0
        %1024 = vmatprep.mubr.bf16.mxu0 0
        %1025 = vmatmul.mubr.bf16.gmra.mrb[0].mxu0 %v920
        %v1026 = vpop.f32.mrb[0].mxu0
        %v1027 = vadd.f32 %v942, %v1026
        %v1028 = vpop.f32.mrb[0].mxu0
        %v1029 = vpop.f32.mrb[0].mxu0
        %v1030 = vpop.f32.mrb[0].mxu0
        %1031 = vdwg.mxu0
        %v1032 = vadd.f32 %v851, %v1027
        %v1033 = vsel %vm516, %v1032, 0.0
        %1034 = vadd.xlane.f32.xlu0 %v1033
        %v1035 = vpop.xlane.xlu0 %1034
        %v1036 = vmul.f32 %v1035, %v831
        %v1037 = vsub.f32 %v1032, %v1036
        %v1038 = vmul.f32 %v1037, %v1037
        %v1039 = vsel %vm516, %v1038, 0.0
        %1040 = vadd.xlane.f32.xlu0 %v1039
        %v1041 = vpop.xlane.xlu0 %1040
        %v1042 = vmul.f32 %v1041, %v831
        %v1043 = vadd.f32 %v1042, 1e-05
        %v1044 = vrsqrt.pop %v1043
        %v1045 = vmul.f32 %v1037, %v1044
        %v1046 = vlaneseq
        %v1047 = vshrl.u32 %v1046, 7
        %v1048 = vsub.s32 1, %v1047
        %v1049 = vrot.slane %v491, %v1048
        %v1050 = vmul.f32 %v1045, %v1049
        %v1051 = vlaneseq
        %v1052 = vshrl.u32 %v1051, 7
        %v1053 = vsub.s32 1, %v1052
        %v1054 = vrot.slane %v492, %v1053
        %v1055 = vadd.f32 %v1050, %v1054
        %v1056 = vadd.f32 %v851, %v1055
        %v1057 = vsel %vm516, %v1056, 0.0
        %1058 = vadd.xlane.f32.xlu0 %v1057
        %v1059 = vpop.xlane.xlu0 %1058
        %v1060 = vmul.f32 %v1059, %v831
        %v1061 = vsub.f32 %v1056, %v1060
        %v1062 = vmul.f32 %v1061, %v1061
        %v1063 = vsel %vm516, %v1062, 0.0
        %1064 = vadd.xlane.f32.xlu0 %v1063
        %v1065 = vpop.xlane.xlu0 %1064
        %v1066 = vmul.f32 %v1065, %v831
        %v1067 = vadd.f32 %v1066, 1e-05
        %v1068 = vrsqrt.pop %v1067
        %v1069 = vmul.f32 %v1061, %v1068
        %v1070 = vlaneseq
        %v1071 = vshrl.u32 %v1070, 7
        %v1072 = vsub.s32 2, %v1071
        %v1073 = vrot.slane %v491, %v1072
        %v1074 = vmul.f32 %v1069, %v1073
        %v1075 = vlaneseq
        %v1076 = vshrl.u32 %v1075, 7
        %v1077 = vsub.s32 2, %v1076
        %v1078 = vrot.slane %v492, %v1077
        %v1079 = vadd.f32 %v1074, %v1078
        %v1080 = vpack.c.bf16 %v1079, %v1079
        %1081 = vst.msk [vmem:[%s459] sm:$0xf] %vm567, %v1080
        %s1082 = sand.u32 %s294, 1
        %s1083 = scalar_lea.sflag [#allocation3], %s1082
        %s1084 = sand.u32 %s294, 1
        %s1085 = smul.addr %s1084, 4
        %s1086 = scalar_lea.vmem [#allocation2], %s1085
        %p1087 = scmp.lt.s32.totalorder %s29, 1
        %s1088 = scalar_select %p1087, %s29, 1
        %s1089 = smul.addr %s1088, 4
        %s1090 = scalar_lea.vmem %s13, %s1089
        %p1091 = scmp.lt.s32.totalorder %s29, 1
        %s1092 = scalar_select %p1091, %s29, 1
        %s1093 = smul.addr %s1092, 4
        %s1094 = scalar_lea.vmem %s14, %s1093
        // Predicated region
        $region69: #{aiayn_forward.7} parent=67 // pred_check
          %p1095 = pneg %p304
        $region70: #{aiayn_forward.7} parent=67 // pred_check_branch
          %1097 = sbr.rel (%p1095) target = $region72
        $region71: #{aiayn_forward.7} parent=67 // pred_region
          %s1099 = ssub.s32 64, 64
          %1100 = vsyncadd %s1083, %s1099
          %s1101 = smul.addr %s29, 64
          %s1102 = scalar_lea.hbm %s12, %s1101
          %s1104 = sshll.u32 %s1086, 4
          %s1105 = int_to_ptr.vmem [resolvable:$true] %s1104
          %1107 = dma.vmem_to_hbm [thread:$0]  %s1105, 64, %s1102, %s1083
        $region72: #{aiayn_forward.7} parent=67 // pred_fallthru
          _
        // Predicated region
        $region73: #{aiayn_forward.7} parent=67 // pred_check
          %p1108 = pneg %p330
        $region74: #{aiayn_forward.7} parent=67 // pred_check_branch
          %1110 = sbr.rel (%p1108) target = $region76
        $region75: #{aiayn_forward.7} parent=67 // pred_region
          _
        $region76: #{aiayn_forward.7} parent=67 // pred_fallthru
          _
        // Predicated region
        $region77: #{aiayn_forward.7} parent=67 // pred_check
          %p1111 = pneg %p356
        $region78: #{aiayn_forward.7} parent=67 // pred_check_branch
          %1113 = sbr.rel (%p1111) target = $region80
        $region79: #{aiayn_forward.7} parent=67 // pred_region
          _
        $region80: #{aiayn_forward.7} parent=67 // pred_fallthru
          _
      $region68: #{aiayn_forward.7} parent=5 // pred_fallthru
        _
      %p1114 = scmp.le.s32.totalorder 2, %s24
      // Predicated region
      $region81: #{aiayn_forward.7} parent=5 // pred_check
        %p1115 = pneg %p1114
      $region82: #{aiayn_forward.7} parent=5 // pred_check_branch
        %1117 = sbr.rel (%p1115) target = $region84
      $region83: #{aiayn_forward.7} parent=5 // pred_region
        %s1118 = ssub.s32 %s24, 2
        // Predicated region
        $region85: #{aiayn_forward.7} parent=83 // pred_check
          %p1119 = pneg %p310
        $region86: #{aiayn_forward.7} parent=83 // pred_check_branch
          %1121 = sbr.rel (%p1119) target = $region88
        $region87: #{aiayn_forward.7} parent=83 // pred_region
          %s1122 = sand.u32 %s295, 1
          %s1123 = scalar_lea.sflag [#allocation3], %s1122
          %s1124 = sand.u32 %s295, 1
          %s1125 = smul.addr %s1124, 4
          %s1126 = scalar_lea.vmem [#allocation2], %s1125
          %1127 = dma.done %s1123, 64
        $region88: #{aiayn_forward.7} parent=83 // pred_fallthru
          _
        // Predicated region
        $region89: #{aiayn_forward.7} parent=83 // pred_check
          %p1128 = pneg %p336
        $region90: #{aiayn_forward.7} parent=83 // pred_check_branch
          %1130 = sbr.rel (%p1128) target = $region92
        $region91: #{aiayn_forward.7} parent=83 // pred_region
          %p1131 = scmp.lt.s32.totalorder %s30, 1
          %s1132 = scalar_select %p1131, %s30, 1
          %s1133 = smul.addr %s1132, 4
          %s1134 = scalar_lea.vmem %s13, %s1133
        $region92: #{aiayn_forward.7} parent=83 // pred_fallthru
          _
        // Predicated region
        $region93: #{aiayn_forward.7} parent=83 // pred_check
          %p1135 = pneg %p362
        $region94: #{aiayn_forward.7} parent=83 // pred_check_branch
          %1137 = sbr.rel (%p1135) target = $region96
        $region95: #{aiayn_forward.7} parent=83 // pred_region
          %p1138 = scmp.lt.s32.totalorder %s30, 1
          %s1139 = scalar_select %p1138, %s30, 1
          %s1140 = smul.addr %s1139, 4
          %s1141 = scalar_lea.vmem %s14, %s1140
        $region96: #{aiayn_forward.7} parent=83 // pred_fallthru
          _
      $region84: #{aiayn_forward.7} parent=5 // pred_fallthru
        _
    $region6: #{aiayn_forward.7} parent=1 // loop_footer
      %s28 = sadd.s32 1, %s24
    $region7: #{aiayn_forward.7} parent=1 // loop_footer_branch
      %23 = sbr.rel target = $region3
    $region8: #{aiayn_forward.7} parent=1 // loop_exit
      _
    %1142 = vsyncpa [#allocation3], 1
    %s1143 = scalar_lea.sflag [#allocation3], 1
    %1144 = vsyncpa %s1143, 1

// kernel: aiayn_forward.6
$region0: #{aiayn_forward.6}
  #allocation0 [shape = 'u32[]', space=smem, size = 0x4, offset = 0x4, fixed_abs, tag = 'smem constant byte address 0x4 - core index']
  #allocation1 [shape = 'u32[144,128]{1,0:T(1,128)}', space=vmem, size = 0x12000, scoped, tag = 'internal scratch']
  %s0 = inlined_call_operand.vmem [shape: bf16[2,8,32], index: 0, kind: input, shape index: {}]
  %s1 = inlined_call_operand.vmem [shape: f32[32,32], index: 1, kind: input, shape index: {}]
  %s2 = inlined_call_operand.vmem [shape: bf16[32,96], index: 2, kind: input, shape index: {}]
  %s3 = inlined_call_operand.vmem [shape: f32[1,96], index: 3, kind: input, shape index: {}]
  %s4 = inlined_call_operand.vmem [shape: bf16[32,32], index: 4, kind: input, shape index: {}]
  %s5 = inlined_call_operand.vmem [shape: f32[1,32], index: 5, kind: input, shape index: {}]
  %s6 = inlined_call_operand.vmem [shape: bf16[32,128], index: 6, kind: input, shape index: {}]
  %s7 = inlined_call_operand.vmem [shape: f32[1,128], index: 7, kind: input, shape index: {}]
  %s8 = inlined_call_operand.vmem [shape: bf16[128,32], index: 8, kind: input, shape index: {}]
  %s9 = inlined_call_operand.vmem [shape: f32[1,32], index: 9, kind: input, shape index: {}]
  %s10 = inlined_call_operand.vmem [shape: f32[3,32], index: 10, kind: input, shape index: {}]
  %s11 = inlined_call_operand.vmem [shape: f32[3,32], index: 11, kind: input, shape index: {}]
  %s12 = inlined_call_operand.vmem [shape: bf16[2,8,32], index: 12, kind: output, shape index: {0}]
  %s13 = inlined_call_operand.hbm [shape: bf16[2,8,32], index: 13, kind: output, shape index: {1}]
  %s14 = inlined_call_operand.hbm [shape: bf16[2,8,32], index: 14, kind: output, shape index: {2}]
  %15 = xla_tuple %s12, %s13, %s14
  %s16 = sld [smem:[#allocation0]]
  $region97: #{aiayn_forward.6} parent=0
    _
  %s18 = ssub.s32 1, %s16
  %s19 = scalar_select 0, %s18, %s16
  $region1: #{aiayn_forward.6} parent=0
    #allocation2 [shape = 'u8[4096]{0}', space=vmem, size = 0x1000, scoped, tag = 'output window, operand 1']
    #allocation3 [shape = 's32[2]{0}', space=sflag, size = 0x8, scoped, tag = 'scoped memory for aiayn_forward.6']
    #allocation4 [shape = 'u8[4096]{0}', space=vmem, size = 0x1000, scoped, tag = 'output window, operand 2']
    #allocation5 [shape = 's32[2]{0}', space=sflag, size = 0x8, scoped, tag = 'scoped memory for aiayn_forward.6']
    %20 = vsyncpa [#allocation3], 0
    %s21 = scalar_lea.sflag [#allocation3], 1
    %22 = vsyncpa %s21, 0
    %23 = vsyncpa [#allocation5], 0
    %s24 = scalar_lea.sflag [#allocation5], 1
    %25 = vsyncpa %s24, 0
    loop: start=0, step=1, limit=4
    $region2: #{aiayn_forward.6} parent=1 // loop_pre_header
      _
    $region3: #{aiayn_forward.6} parent=1 // loop_header
      %s27 = sphi 0, %s31
      %p28 = scmp.ge.s32.totalorder %s27, 4
      %s37 = sphi 0, %s39
      %s40 = sphi 0, %s37
      %s41 = sphi 0, %s40
      %s57 = sphi 0, %s41
      %s61 = sphi 0, %s61
      %s63 = sphi 0, %s61
      %s64 = sphi 0, %s63
      %s78 = sphi 0, %s64
      %s82 = sphi 0, %s82
      %s84 = sphi 0, %s82
      %s85 = sphi 0, %s84
      %s99 = sphi 0, %s85
      %s103 = sphi 0, %s103
      %s105 = sphi 0, %s103
      %s106 = sphi 0, %s105
      %s120 = sphi 0, %s106
      %s124 = sphi 0, %s124
      %s126 = sphi 0, %s124
      %s127 = sphi 0, %s126
      %s141 = sphi 0, %s127
      %s145 = sphi 0, %s145
      %s147 = sphi 0, %s145
      %s148 = sphi 0, %s147
      %s162 = sphi 0, %s148
      %s166 = sphi 0, %s166
      %s168 = sphi 0, %s166
      %s169 = sphi 0, %s168
      %s183 = sphi 0, %s169
      %s187 = sphi 0, %s187
      %s189 = sphi 0, %s187
      %s190 = sphi 0, %s189
      %s204 = sphi 0, %s190
      %s208 = sphi 0, %s208
      %s210 = sphi 0, %s208
      %s211 = sphi 0, %s210
      %s225 = sphi 0, %s211
      %s229 = sphi 0, %s229
      %s231 = sphi 0, %s229
      %s232 = sphi 0, %s231
      %s246 = sphi 0, %s232
      %s250 = sphi 0, %s250
      %s252 = sphi 0, %s250
      %s253 = sphi 0, %s252
      %s267 = sphi 0, %s253
      %s271 = sphi 0, %s271
      %s273 = sphi 0, %s271
      %s274 = sphi 0, %s273
      %s288 = sphi 0, %s274
      %s294 = sphi 0, %s296
      %s297 = sphi 0, %s294
      %s298 = sphi 0, %s297
      %s314 = sphi 0, %s298
      %s320 = sphi 0, %s322
      %s323 = sphi 0, %s320
      %s324 = sphi 0, %s323
      %s340 = sphi 0, %s324
      %s346 = sphi 0, %s348
      %s349 = sphi 0, %s346
      %s350 = sphi 0, %s349
      %s366 = sphi 0, %s350
    $region4: #{aiayn_forward.6} parent=1 // loop_header_branch
      %30 = sbr.rel (%p28) target = $region8
    $region5: #{aiayn_forward.6} parent=1 // loop_body
      %s32 = ssub.s32 %s27, 1
      %s33 = ssub.s32 %s27, 2
      %s34 = sadd.s32 %s27, 1
      %s35 = ssub.s32 %s27, %s34
      %p36 = scmp.eq.s32.totalorder %s35, 0
      %s38 = sadd.s32 %s37, 1
      %s39 = scalar_select %p36, %s37, %s38
      %p42 = pneg %p36
      %p43 = scmp.eq.s32.totalorder %s27, 1
      %p44 = por %p42, %p43
      %p45 = scmp.ne.s32.totalorder %s37, %s40
      %p46 = scmp.eq.s32.totalorder %s27, 0
      %p47 = por %p45, %p46
      %p48 = scmp.ne.s32.totalorder %s37, %s40
      %p49 = scmp.eq.s32.totalorder %s32, 1
      %p50 = por %p48, %p49
      %p51 = scmp.ne.s32.totalorder %s40, %s41
      %p52 = scmp.eq.s32.totalorder %s32, 0
      %p53 = por %p51, %p52
      %p54 = scmp.ne.s32.totalorder %s40, %s41
      %p55 = scmp.eq.s32.totalorder %s33, 1
      %p56 = por %p54, %p55
      %p58 = scmp.ne.s32.totalorder %s41, %s57
      %p59 = scmp.eq.s32.totalorder %s33, 0
      %p60 = por %p58, %p59
      %s62 = sadd.s32 %s61, 1
      %p65 = scmp.eq.s32.totalorder %s27, 1
      %p66 = scmp.ne.s32.totalorder %s61, %s63
      %p67 = scmp.eq.s32.totalorder %s27, 0
      %p68 = por %p66, %p67
      %p69 = scmp.ne.s32.totalorder %s61, %s63
      %p70 = scmp.eq.s32.totalorder %s32, 1
      %p71 = por %p69, %p70
      %p72 = scmp.ne.s32.totalorder %s63, %s64
      %p73 = scmp.eq.s32.totalorder %s32, 0
      %p74 = por %p72, %p73
      %p75 = scmp.ne.s32.totalorder %s63, %s64
      %p76 = scmp.eq.s32.totalorder %s33, 1
      %p77 = por %p75, %p76
      %p79 = scmp.ne.s32.totalorder %s64, %s78
      %p80 = scmp.eq.s32.totalorder %s33, 0
      %p81 = por %p79, %p80
      %s83 = sadd.s32 %s82, 1
      %p86 = scmp.eq.s32.totalorder %s27, 1
      %p87 = scmp.ne.s32.totalorder %s82, %s84
      %p88 = scmp.eq.s32.totalorder %s27, 0
      %p89 = por %p87, %p88
      %p90 = scmp.ne.s32.totalorder %s82, %s84
      %p91 = scmp.eq.s32.totalorder %s32, 1
      %p92 = por %p90, %p91
      %p93 = scmp.ne.s32.totalorder %s84, %s85
      %p94 = scmp.eq.s32.totalorder %s32, 0
      %p95 = por %p93, %p94
      %p96 = scmp.ne.s32.totalorder %s84, %s85
      %p97 = scmp.eq.s32.totalorder %s33, 1
      %p98 = por %p96, %p97
      %p100 = scmp.ne.s32.totalorder %s85, %s99
      %p101 = scmp.eq.s32.totalorder %s33, 0
      %p102 = por %p100, %p101
      %s104 = sadd.s32 %s103, 1
      %p107 = scmp.eq.s32.totalorder %s27, 1
      %p108 = scmp.ne.s32.totalorder %s103, %s105
      %p109 = scmp.eq.s32.totalorder %s27, 0
      %p110 = por %p108, %p109
      %p111 = scmp.ne.s32.totalorder %s103, %s105
      %p112 = scmp.eq.s32.totalorder %s32, 1
      %p113 = por %p111, %p112
      %p114 = scmp.ne.s32.totalorder %s105, %s106
      %p115 = scmp.eq.s32.totalorder %s32, 0
      %p116 = por %p114, %p115
      %p117 = scmp.ne.s32.totalorder %s105, %s106
      %p118 = scmp.eq.s32.totalorder %s33, 1
      %p119 = por %p117, %p118
      %p121 = scmp.ne.s32.totalorder %s106, %s120
      %p122 = scmp.eq.s32.totalorder %s33, 0
      %p123 = por %p121, %p122
      %s125 = sadd.s32 %s124, 1
      %p128 = scmp.eq.s32.totalorder %s27, 1
      %p129 = scmp.ne.s32.totalorder %s124, %s126
      %p130 = scmp.eq.s32.totalorder %s27, 0
      %p131 = por %p129, %p130
      %p132 = scmp.ne.s32.totalorder %s124, %s126
      %p133 = scmp.eq.s32.totalorder %s32, 1
      %p134 = por %p132, %p133
      %p135 = scmp.ne.s32.totalorder %s126, %s127
      %p136 = scmp.eq.s32.totalorder %s32, 0
      %p137 = por %p135, %p136
      %p138 = scmp.ne.s32.totalorder %s126, %s127
      %p139 = scmp.eq.s32.totalorder %s33, 1
      %p140 = por %p138, %p139
      %p142 = scmp.ne.s32.totalorder %s127, %s141
      %p143 = scmp.eq.s32.totalorder %s33, 0
      %p144 = por %p142, %p143
      %s146 = sadd.s32 %s145, 1
      %p149 = scmp.eq.s32.totalorder %s27, 1
      %p150 = scmp.ne.s32.totalorder %s145, %s147
      %p151 = scmp.eq.s32.totalorder %s27, 0
      %p152 = por %p150, %p151
      %p153 = scmp.ne.s32.totalorder %s145, %s147
      %p154 = scmp.eq.s32.totalorder %s32, 1
      %p155 = por %p153, %p154
      %p156 = scmp.ne.s32.totalorder %s147, %s148
      %p157 = scmp.eq.s32.totalorder %s32, 0
      %p158 = por %p156, %p157
      %p159 = scmp.ne.s32.totalorder %s147, %s148
      %p160 = scmp.eq.s32.totalorder %s33, 1
      %p161 = por %p159, %p160
      %p163 = scmp.ne.s32.totalorder %s148, %s162
      %p164 = scmp.eq.s32.totalorder %s33, 0
      %p165 = por %p163, %p164
      %s167 = sadd.s32 %s166, 1
      %p170 = scmp.eq.s32.totalorder %s27, 1
      %p171 = scmp.ne.s32.totalorder %s166, %s168
      %p172 = scmp.eq.s32.totalorder %s27, 0
      %p173 = por %p171, %p172
      %p174 = scmp.ne.s32.totalorder %s166, %s168
      %p175 = scmp.eq.s32.totalorder %s32, 1
      %p176 = por %p174, %p175
      %p177 = scmp.ne.s32.totalorder %s168, %s169
      %p178 = scmp.eq.s32.totalorder %s32, 0
      %p179 = por %p177, %p178
      %p180 = scmp.ne.s32.totalorder %s168, %s169
      %p181 = scmp.eq.s32.totalorder %s33, 1
      %p182 = por %p180, %p181
      %p184 = scmp.ne.s32.totalorder %s169, %s183
      %p185 = scmp.eq.s32.totalorder %s33, 0
      %p186 = por %p184, %p185
      %s188 = sadd.s32 %s187, 1
      %p191 = scmp.eq.s32.totalorder %s27, 1
      %p192 = scmp.ne.s32.totalorder %s187, %s189
      %p193 = scmp.eq.s32.totalorder %s27, 0
      %p194 = por %p192, %p193
      %p195 = scmp.ne.s32.totalorder %s187, %s189
      %p196 = scmp.eq.s32.totalorder %s32, 1
      %p197 = por %p195, %p196
      %p198 = scmp.ne.s32.totalorder %s189, %s190
      %p199 = scmp.eq.s32.totalorder %s32, 0
      %p200 = por %p198, %p199
      %p201 = scmp.ne.s32.totalorder %s189, %s190
      %p202 = scmp.eq.s32.totalorder %s33, 1
      %p203 = por %p201, %p202
      %p205 = scmp.ne.s32.totalorder %s190, %s204
      %p206 = scmp.eq.s32.totalorder %s33, 0
      %p207 = por %p205, %p206
      %s209 = sadd.s32 %s208, 1
      %p212 = scmp.eq.s32.totalorder %s27, 1
      %p213 = scmp.ne.s32.totalorder %s208, %s210
      %p214 = scmp.eq.s32.totalorder %s27, 0
      %p215 = por %p213, %p214
      %p216 = scmp.ne.s32.totalorder %s208, %s210
      %p217 = scmp.eq.s32.totalorder %s32, 1
      %p218 = por %p216, %p217
      %p219 = scmp.ne.s32.totalorder %s210, %s211
      %p220 = scmp.eq.s32.totalorder %s32, 0
      %p221 = por %p219, %p220
      %p222 = scmp.ne.s32.totalorder %s210, %s211
      %p223 = scmp.eq.s32.totalorder %s33, 1
      %p224 = por %p222, %p223
      %p226 = scmp.ne.s32.totalorder %s211, %s225
      %p227 = scmp.eq.s32.totalorder %s33, 0
      %p228 = por %p226, %p227
      %s230 = sadd.s32 %s229, 1
      %p233 = scmp.eq.s32.totalorder %s27, 1
      %p234 = scmp.ne.s32.totalorder %s229, %s231
      %p235 = scmp.eq.s32.totalorder %s27, 0
      %p236 = por %p234, %p235
      %p237 = scmp.ne.s32.totalorder %s229, %s231
      %p238 = scmp.eq.s32.totalorder %s32, 1
      %p239 = por %p237, %p238
      %p240 = scmp.ne.s32.totalorder %s231, %s232
      %p241 = scmp.eq.s32.totalorder %s32, 0
      %p242 = por %p240, %p241
      %p243 = scmp.ne.s32.totalorder %s231, %s232
      %p244 = scmp.eq.s32.totalorder %s33, 1
      %p245 = por %p243, %p244
      %p247 = scmp.ne.s32.totalorder %s232, %s246
      %p248 = scmp.eq.s32.totalorder %s33, 0
      %p249 = por %p247, %p248
      %s251 = sadd.s32 %s250, 1
      %p254 = scmp.eq.s32.totalorder %s27, 1
      %p255 = scmp.ne.s32.totalorder %s250, %s252
      %p256 = scmp.eq.s32.totalorder %s27, 0
      %p257 = por %p255, %p256
      %p258 = scmp.ne.s32.totalorder %s250, %s252
      %p259 = scmp.eq.s32.totalorder %s32, 1
      %p260 = por %p258, %p259
      %p261 = scmp.ne.s32.totalorder %s252, %s253
      %p262 = scmp.eq.s32.totalorder %s32, 0
      %p263 = por %p261, %p262
      %p264 = scmp.ne.s32.totalorder %s252, %s253
      %p265 = scmp.eq.s32.totalorder %s33, 1
      %p266 = por %p264, %p265
      %p268 = scmp.ne.s32.totalorder %s253, %s267
      %p269 = scmp.eq.s32.totalorder %s33, 0
      %p270 = por %p268, %p269
      %s272 = sadd.s32 %s271, 1
      %p275 = scmp.eq.s32.totalorder %s27, 1
      %p276 = scmp.ne.s32.totalorder %s271, %s273
      %p277 = scmp.eq.s32.totalorder %s27, 0
      %p278 = por %p276, %p277
      %p279 = scmp.ne.s32.totalorder %s271, %s273
      %p280 = scmp.eq.s32.totalorder %s32, 1
      %p281 = por %p279, %p280
      %p282 = scmp.ne.s32.totalorder %s273, %s274
      %p283 = scmp.eq.s32.totalorder %s32, 0
      %p284 = por %p282, %p283
      %p285 = scmp.ne.s32.totalorder %s273, %s274
      %p286 = scmp.eq.s32.totalorder %s33, 1
      %p287 = por %p285, %p286
      %p289 = scmp.ne.s32.totalorder %s274, %s288
      %p290 = scmp.eq.s32.totalorder %s33, 0
      %p291 = por %p289, %p290
      %s292 = ssub.s32 %s27, %s34
      %p293 = scmp.eq.s32.totalorder %s292, 0
      %s295 = sadd.s32 %s294, 1
      %s296 = scalar_select %p293, %s294, %s295
      %p299 = pneg %p293
      %p300 = scmp.eq.s32.totalorder %s27, 1
      %p301 = por %p299, %p300
      %p302 = scmp.ne.s32.totalorder %s294, %s297
      %p303 = scmp.eq.s32.totalorder %s27, 0
      %p304 = por %p302, %p303
      %p305 = scmp.ne.s32.totalorder %s294, %s297
      %p306 = scmp.eq.s32.totalorder %s32, 1
      %p307 = por %p305, %p306
      %p308 = scmp.ne.s32.totalorder %s297, %s298
      %p309 = scmp.eq.s32.totalorder %s32, 0
      %p310 = por %p308, %p309
      %p311 = scmp.ne.s32.totalorder %s297, %s298
      %p312 = scmp.eq.s32.totalorder %s33, 1
      %p313 = por %p311, %p312
      %p315 = scmp.ne.s32.totalorder %s298, %s314
      %p316 = scmp.eq.s32.totalorder %s33, 0
      %p317 = por %p315, %p316
      %s318 = ssub.s32 %s27, %s34
      %p319 = scmp.eq.s32.totalorder %s318, 0
      %s321 = sadd.s32 %s320, 1
      %s322 = scalar_select %p319, %s320, %s321
      %p325 = pneg %p319
      %p326 = scmp.eq.s32.totalorder %s27, 1
      %p327 = por %p325, %p326
      %p328 = scmp.ne.s32.totalorder %s320, %s323
      %p329 = scmp.eq.s32.totalorder %s27, 0
      %p330 = por %p328, %p329
      %p331 = scmp.ne.s32.totalorder %s320, %s323
      %p332 = scmp.eq.s32.totalorder %s32, 1
      %p333 = por %p331, %p332
      %p334 = scmp.ne.s32.totalorder %s323, %s324
      %p335 = scmp.eq.s32.totalorder %s32, 0
      %p336 = por %p334, %p335
      %p337 = scmp.ne.s32.totalorder %s323, %s324
      %p338 = scmp.eq.s32.totalorder %s33, 1
      %p339 = por %p337, %p338
      %p341 = scmp.ne.s32.totalorder %s324, %s340
      %p342 = scmp.eq.s32.totalorder %s33, 0
      %p343 = por %p341, %p342
      %s344 = ssub.s32 %s27, %s34
      %p345 = scmp.eq.s32.totalorder %s344, 0
      %s347 = sadd.s32 %s346, 1
      %s348 = scalar_select %p345, %s346, %s347
      %p351 = pneg %p345
      %p352 = scmp.eq.s32.totalorder %s27, 1
      %p353 = por %p351, %p352
      %p354 = scmp.ne.s32.totalorder %s346, %s349
      %p355 = scmp.eq.s32.totalorder %s27, 0
      %p356 = por %p354, %p355
      %p357 = scmp.ne.s32.totalorder %s346, %s349
      %p358 = scmp.eq.s32.totalorder %s32, 1
      %p359 = por %p357, %p358
      %p360 = scmp.ne.s32.totalorder %s349, %s350
      %p361 = scmp.eq.s32.totalorder %s32, 0
      %p362 = por %p360, %p361
      %p363 = scmp.ne.s32.totalorder %s349, %s350
      %p364 = scmp.eq.s32.totalorder %s33, 1
      %p365 = por %p363, %p364
      %p367 = scmp.ne.s32.totalorder %s350, %s366
      %p368 = scmp.eq.s32.totalorder %s33, 0
      %p369 = por %p367, %p368
      %p370 = scmp.le.s32.totalorder 1, %s27
      %p371 = scmp.lt.s32.totalorder %s27, 3
      %p372 = pnand %p370, %p371
      %p373 = pneg %p372
      // Predicated region
      $region9: #{aiayn_forward.6} parent=5 // pred_check
        _
      $region10: #{aiayn_forward.6} parent=5 // pred_check_branch
        %375 = sbr.rel (%p372) target = $region12
      $region11: #{aiayn_forward.6} parent=5 // pred_region
        %s376 = ssub.s32 %s27, 1
        // Predicated region
        $region13: #{aiayn_forward.6} parent=11 // pred_check
          %p377 = pneg %p74
        $region14: #{aiayn_forward.6} parent=11 // pred_check_branch
          %379 = sbr.rel (%p377) target = $region16
        $region15: #{aiayn_forward.6} parent=11 // pred_region
          _
        $region16: #{aiayn_forward.6} parent=11 // pred_fallthru
          _
        // Predicated region
        $region17: #{aiayn_forward.6} parent=11 // pred_check
          %p380 = pneg %p95
        $region18: #{aiayn_forward.6} parent=11 // pred_check_branch
          %382 = sbr.rel (%p380) target = $region20
        $region19: #{aiayn_forward.6} parent=11 // pred_region
          _
        $region20: #{aiayn_forward.6} parent=11 // pred_fallthru
          _
        // Predicated region
        $region21: #{aiayn_forward.6} parent=11 // pred_check
          %p383 = pneg %p116
        $region22: #{aiayn_forward.6} parent=11 // pred_check_branch
          %385 = sbr.rel (%p383) target = $region24
        $region23: #{aiayn_forward.6} parent=11 // pred_region
          _
        $region24: #{aiayn_forward.6} parent=11 // pred_fallthru
          _
        // Predicated region
        $region25: #{aiayn_forward.6} parent=11 // pred_check
          %p386 = pneg %p137
        $region26: #{aiayn_forward.6} parent=11 // pred_check_branch
          %388 = sbr.rel (%p386) target = $region28
        $region27: #{aiayn_forward.6} parent=11 // pred_region
          _
        $region28: #{aiayn_forward.6} parent=11 // pred_fallthru
          _
        // Predicated region
        $region29: #{aiayn_forward.6} parent=11 // pred_check
          %p389 = pneg %p158
        $region30: #{aiayn_forward.6} parent=11 // pred_check_branch
          %391 = sbr.rel (%p389) target = $region32
        $region31: #{aiayn_forward.6} parent=11 // pred_region
          _
        $region32: #{aiayn_forward.6} parent=11 // pred_fallthru
          _
        // Predicated region
        $region33: #{aiayn_forward.6} parent=11 // pred_check
          %p392 = pneg %p179
        $region34: #{aiayn_forward.6} parent=11 // pred_check_branch
          %394 = sbr.rel (%p392) target = $region36
        $region35: #{aiayn_forward.6} parent=11 // pred_region
          _
        $region36: #{aiayn_forward.6} parent=11 // pred_fallthru
          _
        // Predicated region
        $region37: #{aiayn_forward.6} parent=11 // pred_check
          %p395 = pneg %p200
        $region38: #{aiayn_forward.6} parent=11 // pred_check_branch
          %397 = sbr.rel (%p395) target = $region40
        $region39: #{aiayn_forward.6} parent=11 // pred_region
          _
        $region40: #{aiayn_forward.6} parent=11 // pred_fallthru
          _
        // Predicated region
        $region41: #{aiayn_forward.6} parent=11 // pred_check
          %p398 = pneg %p221
        $region42: #{aiayn_forward.6} parent=11 // pred_check_branch
          %400 = sbr.rel (%p398) target = $region44
        $region43: #{aiayn_forward.6} parent=11 // pred_region
          _
        $region44: #{aiayn_forward.6} parent=11 // pred_fallthru
          _
        // Predicated region
        $region45: #{aiayn_forward.6} parent=11 // pred_check
          %p401 = pneg %p242
        $region46: #{aiayn_forward.6} parent=11 // pred_check_branch
          %403 = sbr.rel (%p401) target = $region48
        $region47: #{aiayn_forward.6} parent=11 // pred_region
          _
        $region48: #{aiayn_forward.6} parent=11 // pred_fallthru
          _
        // Predicated region
        $region49: #{aiayn_forward.6} parent=11 // pred_check
          %p404 = pneg %p263
        $region50: #{aiayn_forward.6} parent=11 // pred_check_branch
          %406 = sbr.rel (%p404) target = $region52
        $region51: #{aiayn_forward.6} parent=11 // pred_region
          _
        $region52: #{aiayn_forward.6} parent=11 // pred_fallthru
          _
        // Predicated region
        $region53: #{aiayn_forward.6} parent=11 // pred_check
          %p407 = pneg %p284
        $region54: #{aiayn_forward.6} parent=11 // pred_check_branch
          %409 = sbr.rel (%p407) target = $region56
        $region55: #{aiayn_forward.6} parent=11 // pred_region
          _
        $region56: #{aiayn_forward.6} parent=11 // pred_fallthru
          _
      $region12: #{aiayn_forward.6} parent=5 // pred_fallthru
        _
      %p410 = scmp.lt.s32.totalorder %s27, 2
      // Predicated region
      $region57: #{aiayn_forward.6} parent=5 // pred_check
        %p411 = pneg %p410
      $region58: #{aiayn_forward.6} parent=5 // pred_check_branch
        %413 = sbr.rel (%p411) target = $region60
      $region59: #{aiayn_forward.6} parent=5 // pred_region
        // Predicated region
        $region61: #{aiayn_forward.6} parent=59 // pred_check
          %p414 = pneg %p47
        $region62: #{aiayn_forward.6} parent=59 // pred_check_branch
          %416 = sbr.rel (%p414) target = $region64
        $region63: #{aiayn_forward.6} parent=59 // pred_region
          %p417 = scmp.lt.s32.totalorder %s27, 1
          %s418 = scalar_select %p417, %s27, 1
          %s419 = smul.addr %s418, 4
          %s420 = scalar_lea.vmem %s0, %s419
        $region64: #{aiayn_forward.6} parent=59 // pred_fallthru
          _
      $region60: #{aiayn_forward.6} parent=5 // pred_fallthru
        _
      %p421 = scmp.le.s32.totalorder 1, %s27
      %p422 = scmp.lt.s32.totalorder %s27, 3
      %p423 = pnand %p421, %p422
      %p424 = pneg %p423
      // Predicated region
      $region65: #{aiayn_forward.6} parent=5 // pred_check
        _
      $region66: #{aiayn_forward.6} parent=5 // pred_check_branch
        %426 = sbr.rel (%p423) target = $region68
      $region67: #{aiayn_forward.6} parent=5 // pred_region
        %s427 = ssub.s32 %s27, 1
        %p428 = scmp.lt.s32.totalorder %s32, 1
        %s429 = scalar_select %p428, %s32, 1
        %s430 = smul.addr %s429, 4
        %s431 = scalar_lea.vmem %s0, %s430
        %p432 = pneg %p53
        %p433 = pneg %p50
        %p434 = pneg %p74
        %p435 = pneg %p71
        %p436 = pneg %p95
        %p437 = pneg %p92
        %p438 = pneg %p116
        %p439 = pneg %p113
        %p440 = pneg %p137
        %p441 = pneg %p134
        %p442 = pneg %p158
        %p443 = pneg %p155
        %p444 = pneg %p179
        %p445 = pneg %p176
        %p446 = pneg %p200
        %p447 = pneg %p197
        %p448 = pneg %p221
        %p449 = pneg %p218
        %p450 = pneg %p242
        %p451 = pneg %p239
        %p452 = pneg %p263
        %p453 = pneg %p260
        %p454 = pneg %p284
        %p455 = pneg %p281
        %p456 = pneg %p310
        %p457 = pneg %p307
        %p458 = scmp.lt.s32.totalorder %s32, 1
        %s459 = scalar_select %p458, %s32, 1
        %s460 = smul.addr %s459, 4
        %s461 = scalar_lea.vmem %s12, %s460
        %p462 = pneg %p336
        %p463 = pneg %p333
        %s464 = sand.u32 %s323, 1
        %s465 = scalar_lea.sflag [#allocation3], %s464
        %s466 = sand.u32 %s323, 1
        %s467 = smul.addr %s466, 4
        %s468 = scalar_lea.vmem [#allocation2], %s467
        %p469 = pneg %p362
        %p470 = pneg %p359
        %s471 = sand.u32 %s349, 1
        %s472 = scalar_lea.sflag [#allocation5], %s471
        %s473 = sand.u32 %s349, 1
        %s474 = smul.addr %s473, 4
        %s475 = scalar_lea.vmem [#allocation4], %s474
        %p476 = scmp.lt.s32.totalorder %s32, 1
        %s477 = scalar_select %p476, %s32, 1
        %s478 = smul.addr %s477, 4
        %s479 = scalar_lea.vmem %s0, %s478
        %p480 = scmp.lt.s32.totalorder %s32, 1
        %s481 = scalar_select %p480, %s32, 1
        %s482 = smul.addr %s481, 4
        %s483 = scalar_lea.vmem %s12, %s482
        %v485 = vld [vmem:[%s479] sm:$0xf]
        %v486 = vunpack.c.l.bf16 %v485
        %v487 = vld [vmem:[%s1] sm:$0xff]
        %v488 = vld [vmem:[%s1 + $0x8] sm:$0xff]
        %v489 = vld [vmem:[%s1 + $0x10] sm:$0xff]
        %v490 = vld [vmem:[%s1 + $0x18] sm:$0xff]
        %v491 = vld [vmem:[%s10] sm:$0x7]
        %v492 = vld [vmem:[%s11] sm:$0x7]
        %v493 = vld [vmem:[%s2] sm:$0xf]
        %v494 = vld [vmem:[%s2 + $0x4] sm:$0xf]
        %v495 = vld [vmem:[%s2 + $0x8] sm:$0xf]
        %v496 = vld [vmem:[%s2 + $0xc] sm:$0xf]
        %v497 = vld [vmem:[%s3] sm:$0x1]
        %v499 = vlaneseq
        %v500 = vshrl.u32 %v499, 7
        %v501 = vsub.s32 0, %v500
        %v502 = vrot.slane %v497, %v501
        %v508 = vunpack.c.l.b16 %v493
        %v509 = vunpack.c.l.b16 %v494
        %v510 = vunpack.c.l.b16 %v495
        %v511 = vunpack.c.l.b16 %v496
        %v512 = vpack.c.b16 %v509, %v508
        %v513 = vpack.c.b16 %v511, %v510
        %vm516 = vcmask 261120
        %v518 = vsel %vm516, %v485, 0
        %520 = vmatprep.subr.bf16.mxu0 0
        %521 = vmatpush1.bf16.msra.mxu0 %v512
        %522 = vmatprep.subr.bf16.mxu0 0
        %523 = vmatpush1.bf16.msra.mxu0 %v513
        %524 = vmatprep.subr.bf16.mxu0 0
        %525 = vmatpush1.bf16.msra.mxu0 0
        %526 = vmatprep.subr.bf16.mxu0 0
        %527 = vmatpush1.bf16.msra.mxu0 0
        %528 = vmatprep.subr.bf16.mxu0 0
        %529 = vmatpush1.bf16.msra.mxu0 0
        %530 = vmatprep.subr.bf16.mxu0 0
        %531 = vmatpush1.bf16.msra.mxu0 0
        %532 = vmatprep.subr.bf16.mxu0 0
        %533 = vmatpush1.bf16.msra.mxu0 0
        %534 = vmatprep.subr.bf16.mxu0 0
        %535 = vmatpush1.bf16.msra.mxu0 0
        %536 = vmatprep.subr.bf16.mxu0 0
        %537 = vmatpush1.bf16.msra.mxu0 0
        %538 = vmatprep.subr.bf16.mxu0 0
        %539 = vmatpush1.bf16.msra.mxu0 0
        %540 = vmatprep.subr.bf16.mxu0 0
        %541 = vmatpush1.bf16.msra.mxu0 0
        %542 = vmatprep.subr.bf16.mxu0 0
        %543 = vmatpush1.bf16.msra.mxu0 0
        %544 = vmatprep.subr.bf16.mxu0 0
        %545 = vmatpush1.bf16.msra.mxu0 0
        %546 = vmatprep.subr.bf16.mxu0 0
        %547 = vmatpush1.bf16.msra.mxu0 0
        %548 = vmatprep.subr.bf16.mxu0 0
        %549 = vmatpush1.bf16.msra.mxu0 0
        %550 = vmatprep.subr.bf16.mxu0 0
        %551 = vmatpush1.bf16.msra.mxu0 0
        %552 = vmatprep.mubr.bf16.mxu0 0
        %553 = vmatmul.mubr.bf16.gmra.mrb[0].mxu0 %v518
        %v554 = vpop.f32.mrb[0].mxu0
        %v555 = vadd.f32 %v502, %v554
        %v556 = vpop.f32.mrb[0].mxu0
        %v557 = vpop.f32.mrb[0].mxu0
        %v558 = vpop.f32.mrb[0].mxu0
        %559 = vdwg.mxu0
        %v560 = vpack.c.bf16 %v555, %v555
        %v562 = vunpack.c.l.b16 %v560
        %v563 = vpack.c.b16 %v562, %v562
        %564 = vrot.lane.b32.xlu0 %v563, 96
        %v565 = vpop.permute.xlu0 %564
        %vm567 = vcmask 257024
        %568 = vst.msk [vmem:[%s468] sm:$0xf] %vm567, %v565
        %569 = vrot.lane.b32.xlu0 %v563, 64
        %v570 = vpop.permute.xlu0 %569
        %572 = vst.msk [vmem:[%s475] sm:$0xf] %vm567, %v570
        %574 = vrot.lane.b32.xlu0 %v555, 96
        %v575 = vpop.permute.xlu0 %574
        %577 = vxpose.xlu0.b32.start [1/16] %v575, 128
        %578 = vxpose.xlu0.b32.cont [2/16] 0.0, 128
        %579 = vxpose.xlu0.b32.cont [3/16] 0.0, 128
        %580 = vxpose.xlu0.b32.cont [4/16] 0.0, 128
        %581 = vxpose.xlu0.b32.cont [5/16] 0.0, 128
        %582 = vxpose.xlu0.b32.cont [6/16] 0.0, 128
        %583 = vxpose.xlu0.b32.cont [7/16] 0.0, 128
        %584 = vxpose.xlu0.b32.cont [8/16] 0.0, 128
        %585 = vxpose.xlu0.b32.cont [9/16] 0.0, 128
        %586 = vxpose.xlu0.b32.cont [10/16] 0.0, 128
        %587 = vxpose.xlu0.b32.cont [11/16] 0.0, 128
        %588 = vxpose.xlu0.b32.cont [12/16] 0.0, 128
        %589 = vxpose.xlu0.b32.cont [13/16] 0.0, 128
        %590 = vxpose.xlu0.b32.cont [14/16] 0.0, 128
        %591 = vxpose.xlu0.b32.cont [15/16] 0.0, 128
        %592 = vxpose.xlu0.b32.end [16/16] 0.0, 128
        %v593 = vpop.trf.xlu0
        %v594 = vpop.trf.xlu0
        %v595 = vpop.trf.xlu0
        %v596 = vpop.trf.xlu0
        %v597 = vpop.trf.xlu0
        %v598 = vpop.trf.xlu0
        %v599 = vpop.trf.xlu0
        %v600 = vpop.trf.xlu0
        %v601 = vpop.trf.xlu0
        %v602 = vpop.trf.xlu0
        %v603 = vpop.trf.xlu0
        %v604 = vpop.trf.xlu0
        %v605 = vpop.trf.xlu0
        %v606 = vpop.trf.xlu0
        %v607 = vpop.trf.xlu0
        %v608 = vpop.trf.xlu0
        %609 = vrot.lane.b32.xlu0 %v555, 64
        %v610 = vpop.permute.xlu0 %609
        %vm612 = vcmask 64512
        %v614 = vsel %vm612, %v593, 0
        %v617 = vsel %vm612, %v594, 0
        %v620 = vsel %vm612, %v595, 0
        %v623 = vsel %vm612, %v596, 0
        %625 = vmatprep.subr.mxu0 0.0
        %626 = vmatpush1.msra.mxu0 %v610
        %627 = vmatprep.subr.mxu0 0.0
        %628 = vmatpush1.msra.mxu0 0.0
        %629 = vmatprep.subr.mxu0 0.0
        %630 = vmatpush1.msra.mxu0 0.0
        %631 = vmatprep.subr.mxu0 0.0
        %632 = vmatpush1.msra.mxu0 0.0
        %633 = vmatprep.subr.mxu0 0.0
        %634 = vmatpush1.msra.mxu0 0.0
        %635 = vmatprep.subr.mxu0 0.0
        %636 = vmatpush1.msra.mxu0 0.0
        %637 = vmatprep.subr.mxu0 0.0
        %638 = vmatpush1.msra.mxu0 0.0
        %639 = vmatprep.subr.mxu0 0.0
        %640 = vmatpush1.msra.mxu0 0.0
        %641 = vmatprep.subr.mxu0 0.0
        %642 = vmatpush1.msra.mxu0 0.0
        %643 = vmatprep.subr.mxu0 0.0
        %644 = vmatpush1.msra.mxu0 0.0
        %645 = vmatprep.subr.mxu0 0.0
        %646 = vmatpush1.msra.mxu0 0.0
        %647 = vmatprep.subr.mxu0 0.0
        %648 = vmatpush1.msra.mxu0 0.0
        %649 = vmatprep.subr.mxu0 0.0
        %650 = vmatpush1.msra.mxu0 0.0
        %651 = vmatprep.subr.mxu0 0.0
        %652 = vmatpush1.msra.mxu0 0.0
        %653 = vmatprep.subr.mxu0 0.0
        %654 = vmatpush1.msra.mxu0 0.0
        %655 = vmatprep.subr.mxu0 0.0
        %656 = vmatpush1.msra.mxu0 0.0
        %657 = vmatprep.subr.mxu0 0.0
        %658 = vmatpush1.msra.mxu0 0.0
        %659 = vmatprep.subr.mxu0 0.0
        %660 = vmatpush1.msra.mxu0 0.0
        %661 = vmatprep.subr.mxu0 0.0
        %662 = vmatpush1.msra.mxu0 0.0
        %663 = vmatprep.subr.mxu0 0.0
        %664 = vmatpush1.msra.mxu0 0.0
        %665 = vmatprep.subr.mxu0 0.0
        %666 = vmatpush1.msra.mxu0 0.0
        %667 = vmatprep.subr.mxu0 0.0
        %668 = vmatpush1.msra.mxu0 0.0
        %669 = vmatprep.subr.mxu0 0.0
        %670 = vmatpush1.msra.mxu0 0.0
        %671 = vmatprep.subr.mxu0 0.0
        %672 = vmatpush1.msra.mxu0 0.0
        %673 = vmatprep.subr.mxu0 0.0
        %674 = vmatpush1.msra.mxu0 0.0
        %675 = vmatprep.subr.mxu0 0.0
        %676 = vmatpush1.msra.mxu0 0.0
        %677 = vmatprep.subr.mxu0 0.0
        %678 = vmatpush1.msra.mxu0 0.0
        %679 = vmatprep.subr.mxu0 0.0
        %680 = vmatpush1.msra.mxu0 0.0
        %681 = vmatprep.subr.mxu0 0.0
        %682 = vmatpush1.msra.mxu0 0.0
        %683 = vmatprep.subr.mxu0 0.0
        %684 = vmatpush1.msra.mxu0 0.0
        %685 = vmatprep.subr.mxu0 0.0
        %686 = vmatpush1.msra.mxu0 0.0
        %687 = vmatprep.subr.mxu0 0.0
        %688 = vmatpush1.msra.mxu0 0.0
        %689 = vmatprep.mubr.f32.mxu0 0.0
        %690 = vmatmul.mubr.f32.gmra.mrb[0].mxu0 %v614
        %v691 = vpop.f32.mrb[0].mxu0
        %v692 = vadd.f32 0.0, %v691
        %v693 = vpop.f32.mrb[0].mxu0
        %694 = vmatprep.mubr.f32.mxu0 0.0
        %695 = vmatmul.mubr.f32.gmra.mrb[0].mxu0 %v617
        %v696 = vpop.f32.mrb[0].mxu0
        %v697 = vadd.f32 0.0, %v696
        %v698 = vpop.f32.mrb[0].mxu0
        %699 = vmatprep.mubr.f32.mxu0 0.0
        %700 = vmatmul.mubr.f32.gmra.mrb[0].mxu0 %v620
        %v701 = vpop.f32.mrb[0].mxu0
        %v702 = vadd.f32 0.0, %v701
        %v703 = vpop.f32.mrb[0].mxu0
        %704 = vmatprep.mubr.f32.mxu0 0.0
        %705 = vmatmul.mubr.f32.gmra.mrb[0].mxu0 %v623
        %v706 = vpop.f32.mrb[0].mxu0
        %v707 = vadd.f32 0.0, %v706
        %v708 = vpop.f32.mrb[0].mxu0
        %709 = vdwg.mxu0
        %v710 = vmul.f32 %v692, %v487
        %v711 = vmul.f32 %v697, %v488
        %v712 = vmul.f32 %v702, %v489
        %v713 = vmul.f32 %v707, %v490
        %v714 = vpack.c.bf16 %v711, %v710
        %v715 = vpack.c.bf16 %v713, %v712
        %v717 = vsel %vm516, %v560, 0
        %719 = vmatprep.subr.bf16.mxu0 0
        %720 = vmatpush1.bf16.msra.mxu0 %v714
        %721 = vmatprep.subr.bf16.mxu0 0
        %722 = vmatpush1.bf16.msra.mxu0 %v715
        %723 = vmatprep.subr.bf16.mxu0 0
        %724 = vmatpush1.bf16.msra.mxu0 0
        %725 = vmatprep.subr.bf16.mxu0 0
        %726 = vmatpush1.bf16.msra.mxu0 0
        %727 = vmatprep.subr.bf16.mxu0 0
        %728 = vmatpush1.bf16.msra.mxu0 0
        %729 = vmatprep.subr.bf16.mxu0 0
        %730 = vmatpush1.bf16.msra.mxu0 0
        %731 = vmatprep.subr.bf16.mxu0 0
        %732 = vmatpush1.bf16.msra.mxu0 0
        %733 = vmatprep.subr.bf16.mxu0 0
        %734 = vmatpush1.bf16.msra.mxu0 0
        %735 = vmatprep.subr.bf16.mxu0 0
        %736 = vmatpush1.bf16.msra.mxu0 0
        %737 = vmatprep.subr.bf16.mxu0 0
        %738 = vmatpush1.bf16.msra.mxu0 0
        %739 = vmatprep.subr.bf16.mxu0 0
        %740 = vmatpush1.bf16.msra.mxu0 0
        %741 = vmatprep.subr.bf16.mxu0 0
        %742 = vmatpush1.bf16.msra.mxu0 0
        %743 = vmatprep.subr.bf16.mxu0 0
        %744 = vmatpush1.bf16.msra.mxu0 0
        %745 = vmatprep.subr.bf16.mxu0 0
        %746 = vmatpush1.bf16.msra.mxu0 0
        %747 = vmatprep.subr.bf16.mxu0 0
        %748 = vmatpush1.bf16.msra.mxu0 0
        %749 = vmatprep.subr.bf16.mxu0 0
        %750 = vmatpush1.bf16.msra.mxu0 0
        %751 = vmatprep.mubr.bf16.mxu0 0
        %752 = vmatmul.mubr.bf16.gmra.mrb[0].mxu0 %v717
        %v753 = vpop.f32.mrb[0].mxu0
        %v754 = vadd.f32 0.0, %v753
        %v755 = vpop.f32.mrb[0].mxu0
        %v756 = vpop.f32.mrb[0].mxu0
        %v757 = vpop.f32.mrb[0].mxu0
        %758 = vdwg.mxu0
        %v759 = vmul.f32 %v754, 0.35355338
        %v760 = vpack.c.bf16 %v759, %v759
        %v761 = vld [vmem:[%s4] sm:$0xf]
        %v762 = vld [vmem:[%s4 + $0x4] sm:$0xf]
        %v763 = vld [vmem:[%s4 + $0x8] sm:$0xf]
        %v764 = vld [vmem:[%s4 + $0xc] sm:$0xf]
        %v765 = vld [vmem:[%s5] sm:$0x1]
        %v767 = vlaneseq
        %v768 = vshrl.u32 %v767, 7
        %v769 = vsub.s32 0, %v768
        %v770 = vrot.slane %v765, %v769
        %v776 = vunpack.c.l.b16 %v761
        %v777 = vunpack.c.l.b16 %v762
        %v778 = vunpack.c.l.b16 %v763
        %v779 = vunpack.c.l.b16 %v764
        %v780 = vpack.c.b16 %v777, %v776
        %v781 = vpack.c.b16 %v779, %v778
        %v785 = vsel %vm516, %v760, 0
        %787 = vmatprep.subr.bf16.mxu0 0
        %788 = vmatpush1.bf16.msra.mxu0 %v780
        %789 = vmatprep.subr.bf16.mxu0 0
        %790 = vmatpush1.bf16.msra.mxu0 %v781
        %791 = vmatprep.subr.bf16.mxu0 0
        %792 = vmatpush1.bf16.msra.mxu0 0
        %793 = vmatprep.subr.bf16.mxu0 0
        %794 = vmatpush1.bf16.msra.mxu0 0
        %795 = vmatprep.subr.bf16.mxu0 0
        %796 = vmatpush1.bf16.msra.mxu0 0
        %797 = vmatprep.subr.bf16.mxu0 0
        %798 = vmatpush1.bf16.msra.mxu0 0
        %799 = vmatprep.subr.bf16.mxu0 0
        %800 = vmatpush1.bf16.msra.mxu0 0
        %801 = vmatprep.subr.bf16.mxu0 0
        %802 = vmatpush1.bf16.msra.mxu0 0
        %803 = vmatprep.subr.bf16.mxu0 0
        %804 = vmatpush1.bf16.msra.mxu0 0
        %805 = vmatprep.subr.bf16.mxu0 0
        %806 = vmatpush1.bf16.msra.mxu0 0
        %807 = vmatprep.subr.bf16.mxu0 0
        %808 = vmatpush1.bf16.msra.mxu0 0
        %809 = vmatprep.subr.bf16.mxu0 0
        %810 = vmatpush1.bf16.msra.mxu0 0
        %811 = vmatprep.subr.bf16.mxu0 0
        %812 = vmatpush1.bf16.msra.mxu0 0
        %813 = vmatprep.subr.bf16.mxu0 0
        %814 = vmatpush1.bf16.msra.mxu0 0
        %815 = vmatprep.subr.bf16.mxu0 0
        %816 = vmatpush1.bf16.msra.mxu0 0
        %817 = vmatprep.subr.bf16.mxu0 0
        %818 = vmatpush1.bf16.msra.mxu0 0
        %819 = vmatprep.mubr.bf16.mxu0 0
        %820 = vmatmul.mubr.bf16.gmra.mrb[0].mxu0 %v785
        %v821 = vpop.f32.mrb[0].mxu0
        %v822 = vadd.f32 %v770, %v821
        %v823 = vpop.f32.mrb[0].mxu0
        %v824 = vpop.f32.mrb[0].mxu0
        %v825 = vpop.f32.mrb[0].mxu0
        %826 = vdwg.mxu0
        %v827 = vadd.f32 %v486, %v822
        %v828 = vsel %vm516, %v827, 0.0
        %829 = vadd.xlane.f32.xlu0 %v828
        %v830 = vpop.xlane.xlu0 %829
        %v831 = vrcp.pop 32.0
        %v832 = vmul.f32 %v830, %v831
        %v833 = vsub.f32 %v827, %v832
        %v834 = vmul.f32 %v833, %v833
        %v835 = vsel %vm516, %v834, 0.0
        %836 = vadd.xlane.f32.xlu0 %v835
        %v837 = vpop.xlane.xlu0 %836
        %v838 = vmul.f32 %v837, %v831
        %v839 = vadd.f32 %v838, 1e-05
        %v840 = vrsqrt.pop %v839
        %v841 = vmul.f32 %v833, %v840
        %v842 = vlaneseq
        %v843 = vshrl.u32 %v842, 7
        %v844 = vsub.s32 0, %v843
        %v845 = vrot.slane %v491, %v844
        %v846 = vmul.f32 %v841, %v845
        %v847 = vlaneseq
        %v848 = vshrl.u32 %v847, 7
        %v849 = vsub.s32 0, %v848
        %v850 = vrot.slane %v492, %v849
        %v851 = vadd.f32 %v846, %v850
        %v852 = vpack.c.bf16 %v851, %v851
        %v853 = vld [vmem:[%s6] sm:$0xf]
        %v854 = vld [vmem:[%s6 + $0x4] sm:$0xf]
        %v855 = vld [vmem:[%s6 + $0x8] sm:$0xf]
        %v856 = vld [vmem:[%s6 + $0xc] sm:$0xf]
        %v857 = vld [vmem:[%s7] sm:$0x1]
        %v859 = vlaneseq
        %v860 = vshrl.u32 %v859, 7
        %v861 = vsub.s32 0, %v860
        %v862 = vrot.slane %v857, %v861
        %v868 = vunpack.c.l.b16 %v853
        %v869 = vunpack.c.l.b16 %v854
        %v870 = vunpack.c.l.b16 %v855
        %v871 = vunpack.c.l.b16 %v856
        %v872 = vpack.c.b16 %v869, %v868
        %v873 = vpack.c.b16 %v871, %v870
        %v877 = vsel %vm516, %v852, 0
        %879 = vmatprep.subr.bf16.mxu0 0
        %880 = vmatpush1.bf16.msra.mxu0 %v872
        %881 = vmatprep.subr.bf16.mxu0 0
        %882 = vmatpush1.bf16.msra.mxu0 %v873
        %883 = vmatprep.subr.bf16.mxu0 0
        %884 = vmatpush1.bf16.msra.mxu0 0
        %885 = vmatprep.subr.bf16.mxu0 0
        %886 = vmatpush1.bf16.msra.mxu0 0
        %887 = vmatprep.subr.bf16.mxu0 0
        %888 = vmatpush1.bf16.msra.mxu0 0
        %889 = vmatprep.subr.bf16.mxu0 0
        %890 = vmatpush1.bf16.msra.mxu0 0
        %891 = vmatprep.subr.bf16.mxu0 0
        %892 = vmatpush1.bf16.msra.mxu0 0
        %893 = vmatprep.subr.bf16.mxu0 0
        %894 = vmatpush1.bf16.msra.mxu0 0
        %895 = vmatprep.subr.bf16.mxu0 0
        %896 = vmatpush1.bf16.msra.mxu0 0
        %897 = vmatprep.subr.bf16.mxu0 0
        %898 = vmatpush1.bf16.msra.mxu0 0
        %899 = vmatprep.subr.bf16.mxu0 0
        %900 = vmatpush1.bf16.msra.mxu0 0
        %901 = vmatprep.subr.bf16.mxu0 0
        %902 = vmatpush1.bf16.msra.mxu0 0
        %903 = vmatprep.subr.bf16.mxu0 0
        %904 = vmatpush1.bf16.msra.mxu0 0
        %905 = vmatprep.subr.bf16.mxu0 0
        %906 = vmatpush1.bf16.msra.mxu0 0
        %907 = vmatprep.subr.bf16.mxu0 0
        %908 = vmatpush1.bf16.msra.mxu0 0
        %909 = vmatprep.subr.bf16.mxu0 0
        %910 = vmatpush1.bf16.msra.mxu0 0
        %911 = vmatprep.mubr.bf16.mxu0 0
        %912 = vmatmul.mubr.bf16.gmra.mrb[0].mxu0 %v877
        %v913 = vpop.f32.mrb[0].mxu0
        %v914 = vadd.f32 %v862, %v913
        %v915 = vpop.f32.mrb[0].mxu0
        %v916 = vpop.f32.mrb[0].mxu0
        %v917 = vpop.f32.mrb[0].mxu0
        %918 = vdwg.mxu0
        %v919 = vmax.f32 %v914, 0.0
        %v920 = vpack.c.bf16 %v919, %v919
        %v921 = vld [vmem:[%s8] sm:$0xf]
        %v922 = vld [vmem:[%s8 + $0x4] sm:$0xf]
        %v923 = vld [vmem:[%s8 + $0x8] sm:$0xf]
        %v924 = vld [vmem:[%s8 + $0xc] sm:$0xf]
        %v925 = vld [vmem:[%s8 + $0x10] sm:$0xf]
        %v926 = vld [vmem:[%s8 + $0x14] sm:$0xf]
        %v927 = vld [vmem:[%s8 + $0x18] sm:$0xf]
        %v928 = vld [vmem:[%s8 + $0x1c] sm:$0xf]
        %v929 = vld [vmem:[%s8 + $0x20] sm:$0xf]
        %v930 = vld [vmem:[%s8 + $0x24] sm:$0xf]
        %v931 = vld [vmem:[%s8 + $0x28] sm:$0xf]
        %v932 = vld [vmem:[%s8 + $0x2c] sm:$0xf]
        %v933 = vld [vmem:[%s8 + $0x30] sm:$0xf]
        %v934 = vld [vmem:[%s8 + $0x34] sm:$0xf]
        %v935 = vld [vmem:[%s8 + $0x38] sm:$0xf]
        %v936 = vld [vmem:[%s8 + $0x3c] sm:$0xf]
        %v937 = vld [vmem:[%s9] sm:$0x1]
        %v939 = vlaneseq
        %v940 = vshrl.u32 %v939, 7
        %v941 = vsub.s32 0, %v940
        %v942 = vrot.slane %v937, %v941
        %v960 = vunpack.c.l.b16 %v921
        %v961 = vunpack.c.l.b16 %v922
        %v962 = vunpack.c.l.b16 %v923
        %v963 = vunpack.c.l.b16 %v924
        %v964 = vunpack.c.l.b16 %v925
        %v965 = vunpack.c.l.b16 %v926
        %v966 = vunpack.c.l.b16 %v927
        %v967 = vunpack.c.l.b16 %v928
        %v968 = vunpack.c.l.b16 %v929
        %v969 = vunpack.c.l.b16 %v930
        %v970 = vunpack.c.l.b16 %v931
        %v971 = vunpack.c.l.b16 %v932
        %v972 = vunpack.c.l.b16 %v933
        %v973 = vunpack.c.l.b16 %v934
        %v974 = vunpack.c.l.b16 %v935
        %v975 = vunpack.c.l.b16 %v936
        %v976 = vpack.c.b16 %v961, %v960
        %v977 = vpack.c.b16 %v963, %v962
        %v978 = vpack.c.b16 %v965, %v964
        %v979 = vpack.c.b16 %v967, %v966
        %v980 = vpack.c.b16 %v969, %v968
        %v981 = vpack.c.b16 %v971, %v970
        %v982 = vpack.c.b16 %v973, %v972
        %v983 = vpack.c.b16 %v975, %v974
        %992 = vmatprep.subr.bf16.mxu0 0
        %993 = vmatpush1.bf16.msra.mxu0 %v976
        %994 = vmatprep.subr.bf16.mxu0 0
        %995 = vmatpush1.bf16.msra.mxu0 %v977
        %996 = vmatprep.subr.bf16.mxu0 0
        %997 = vmatpush1.bf16.msra.mxu0 %v978
        %998 = vmatprep.subr.bf16.mxu0 0
        %999 = vmatpush1.bf16.msra.mxu0 %v979
        %1000 = vmatprep.subr.bf16.mxu0 0
        %1001 = vmatpush1.bf16.msra.mxu0 %v980
        %1002 = vmatprep.subr.bf16.mxu0 0
        %1003 = vmatpush1.bf16.msra.mxu0 %v981
        %1004 = vmatprep.subr.bf16.mxu0 0
        %1005 = vmatpush1.bf16.msra.mxu0 %v982
        %1006 = vmatprep.subr.bf16.mxu0 0
        %1007 = vmatpush1.bf16.msra.mxu0 %v983
        %1008 = vmatprep.subr.bf16.mxu0 0
        %1009 = vmatpush1.bf16.msra.mxu0 0
        %1010 = vmatprep.subr.bf16.mxu0 0
        %1011 = vmatpush1.bf16.msra.mxu0 0
        %1012 = vmatprep.subr.bf16.mxu0 0
        %1013 = vmatpush1.bf16.msra.mxu0 0
        %1014 = vmatprep.subr.bf16.mxu0 0
        %1015 = vmatpush1.bf16.msra.mxu0 0
        %1016 = vmatprep.subr.bf16.mxu0 0
        %1017 = vmatpush1.bf16.msra.mxu0 0
        %1018 = vmatprep.subr.bf16.mxu0 0
        %1019 = vmatpush1.bf16.msra.mxu0 0
        %1020 = vmatprep.subr.bf16.mxu0 0
        %1021 = vmatpush1.bf16.msra.mxu0 0
        %1022 = vmatprep.subr.bf16.mxu0 0
        %1023 = vmatpush1.bf16.msra.mxu0 0
        %1024 = vmatprep.mubr.bf16.mxu0 0
        %1025 = vmatmul.mubr.bf16.gmra.mrb[0].mxu0 %v920
        %v1026 = vpop.f32.mrb[0].mxu0
        %v1027 = vadd.f32 %v942, %v1026
        %v1028 = vpop.f32.mrb[0].mxu0
        %v1029 = vpop.f32.mrb[0].mxu0
        %v1030 = vpop.f32.mrb[0].mxu0
        %1031 = vdwg.mxu0
        %v1032 = vadd.f32 %v851, %v1027
        %v1033 = vsel %vm516, %v1032, 0.0
        %1034 = vadd.xlane.f32.xlu0 %v1033
        %v1035 = vpop.xlane.xlu0 %1034
        %v1036 = vmul.f32 %v1035, %v831
        %v1037 = vsub.f32 %v1032, %v1036
        %v1038 = vmul.f32 %v1037, %v1037
        %v1039 = vsel %vm516, %v1038, 0.0
        %1040 = vadd.xlane.f32.xlu0 %v1039
        %v1041 = vpop.xlane.xlu0 %1040
        %v1042 = vmul.f32 %v1041, %v831
        %v1043 = vadd.f32 %v1042, 1e-05
        %v1044 = vrsqrt.pop %v1043
        %v1045 = vmul.f32 %v1037, %v1044
        %v1046 = vlaneseq
        %v1047 = vshrl.u32 %v1046, 7
        %v1048 = vsub.s32 1, %v1047
        %v1049 = vrot.slane %v491, %v1048
        %v1050 = vmul.f32 %v1045, %v1049
        %v1051 = vlaneseq
        %v1052 = vshrl.u32 %v1051, 7
        %v1053 = vsub.s32 1, %v1052
        %v1054 = vrot.slane %v492, %v1053
        %v1055 = vadd.f32 %v1050, %v1054
        %v1056 = vadd.f32 %v851, %v1055
        %v1057 = vsel %vm516, %v1056, 0.0
        %1058 = vadd.xlane.f32.xlu0 %v1057
        %v1059 = vpop.xlane.xlu0 %1058
        %v1060 = vmul.f32 %v1059, %v831
        %v1061 = vsub.f32 %v1056, %v1060
        %v1062 = vmul.f32 %v1061, %v1061
        %v1063 = vsel %vm516, %v1062, 0.0
        %1064 = vadd.xlane.f32.xlu0 %v1063
        %v1065 = vpop.xlane.xlu0 %1064
        %v1066 = vmul.f32 %v1065, %v831
        %v1067 = vadd.f32 %v1066, 1e-05
        %v1068 = vrsqrt.pop %v1067
        %v1069 = vmul.f32 %v1061, %v1068
        %v1070 = vlaneseq
        %v1071 = vshrl.u32 %v1070, 7
        %v1072 = vsub.s32 2, %v1071
        %v1073 = vrot.slane %v491, %v1072
        %v1074 = vmul.f32 %v1069, %v1073
        %v1075 = vlaneseq
        %v1076 = vshrl.u32 %v1075, 7
        %v1077 = vsub.s32 2, %v1076
        %v1078 = vrot.slane %v492, %v1077
        %v1079 = vadd.f32 %v1074, %v1078
        %v1080 = vpack.c.bf16 %v1079, %v1079
        %1081 = vst.msk [vmem:[%s483] sm:$0xf] %vm567, %v1080
        %p1082 = scmp.lt.s32.totalorder %s32, 1
        %s1083 = scalar_select %p1082, %s32, 1
        %s1084 = smul.addr %s1083, 4
        %s1085 = scalar_lea.vmem %s12, %s1084
        %s1086 = sand.u32 %s323, 1
        %s1087 = scalar_lea.sflag [#allocation3], %s1086
        %s1088 = sand.u32 %s323, 1
        %s1089 = smul.addr %s1088, 4
        %s1090 = scalar_lea.vmem [#allocation2], %s1089
        %s1091 = sand.u32 %s349, 1
        %s1092 = scalar_lea.sflag [#allocation5], %s1091
        %s1093 = sand.u32 %s349, 1
        %s1094 = smul.addr %s1093, 4
        %s1095 = scalar_lea.vmem [#allocation4], %s1094
        // Predicated region
        $region69: #{aiayn_forward.6} parent=67 // pred_check
          %p1096 = pneg %p307
        $region70: #{aiayn_forward.6} parent=67 // pred_check_branch
          %1098 = sbr.rel (%p1096) target = $region72
        $region71: #{aiayn_forward.6} parent=67 // pred_region
          _
        $region72: #{aiayn_forward.6} parent=67 // pred_fallthru
          _
        // Predicated region
        $region73: #{aiayn_forward.6} parent=67 // pred_check
          %p1099 = pneg %p333
        $region74: #{aiayn_forward.6} parent=67 // pred_check_branch
          %1101 = sbr.rel (%p1099) target = $region76
        $region75: #{aiayn_forward.6} parent=67 // pred_region
          %s1103 = ssub.s32 64, 64
          %1104 = vsyncadd %s1087, %s1103
          %s1105 = smul.addr %s32, 64
          %s1106 = scalar_lea.hbm %s13, %s1105
          %s1108 = sshll.u32 %s1090, 4
          %s1109 = int_to_ptr.vmem [resolvable:$true] %s1108
          %1111 = dma.vmem_to_hbm [thread:$0]  %s1109, 64, %s1106, %s1087
        $region76: #{aiayn_forward.6} parent=67 // pred_fallthru
          _
        // Predicated region
        $region77: #{aiayn_forward.6} parent=67 // pred_check
          %p1112 = pneg %p359
        $region78: #{aiayn_forward.6} parent=67 // pred_check_branch
          %1114 = sbr.rel (%p1112) target = $region80
        $region79: #{aiayn_forward.6} parent=67 // pred_region
          %s1116 = ssub.s32 64, 64
          %1117 = vsyncadd %s1092, %s1116
          %s1118 = smul.addr %s32, 64
          %s1119 = scalar_lea.hbm %s14, %s1118
          %s1121 = sshll.u32 %s1095, 4
          %s1122 = int_to_ptr.vmem [resolvable:$true] %s1121
          %1124 = dma.vmem_to_hbm [thread:$0]  %s1122, 64, %s1119, %s1092
        $region80: #{aiayn_forward.6} parent=67 // pred_fallthru
          _
      $region68: #{aiayn_forward.6} parent=5 // pred_fallthru
        _
      %p1125 = scmp.le.s32.totalorder 2, %s27
      // Predicated region
      $region81: #{aiayn_forward.6} parent=5 // pred_check
        %p1126 = pneg %p1125
      $region82: #{aiayn_forward.6} parent=5 // pred_check_branch
        %1128 = sbr.rel (%p1126) target = $region84
      $region83: #{aiayn_forward.6} parent=5 // pred_region
        %s1129 = ssub.s32 %s27, 2
        // Predicated region
        $region85: #{aiayn_forward.6} parent=83 // pred_check
          %p1130 = pneg %p313
        $region86: #{aiayn_forward.6} parent=83 // pred_check_branch
          %1132 = sbr.rel (%p1130) target = $region88
        $region87: #{aiayn_forward.6} parent=83 // pred_region
          %p1133 = scmp.lt.s32.totalorder %s33, 1
          %s1134 = scalar_select %p1133, %s33, 1
          %s1135 = smul.addr %s1134, 4
          %s1136 = scalar_lea.vmem %s12, %s1135
        $region88: #{aiayn_forward.6} parent=83 // pred_fallthru
          _
        // Predicated region
        $region89: #{aiayn_forward.6} parent=83 // pred_check
          %p1137 = pneg %p339
        $region90: #{aiayn_forward.6} parent=83 // pred_check_branch
          %1139 = sbr.rel (%p1137) target = $region92
        $region91: #{aiayn_forward.6} parent=83 // pred_region
          %s1140 = sand.u32 %s324, 1
          %s1141 = scalar_lea.sflag [#allocation3], %s1140
          %s1142 = sand.u32 %s324, 1
          %s1143 = smul.addr %s1142, 4
          %s1144 = scalar_lea.vmem [#allocation2], %s1143
          %1145 = dma.done %s1141, 64
        $region92: #{aiayn_forward.6} parent=83 // pred_fallthru
          _
        // Predicated region
        $region93: #{aiayn_forward.6} parent=83 // pred_check
          %p1146 = pneg %p365
        $region94: #{aiayn_forward.6} parent=83 // pred_check_branch
          %1148 = sbr.rel (%p1146) target = $region96
        $region95: #{aiayn_forward.6} parent=83 // pred_region
          %s1149 = sand.u32 %s350, 1
          %s1150 = scalar_lea.sflag [#allocation5], %s1149
          %s1151 = sand.u32 %s350, 1
          %s1152 = smul.addr %s1151, 4
          %s1153 = scalar_lea.vmem [#allocation4], %s1152
          %1154 = dma.done %s1150, 64
        $region96: #{aiayn_forward.6} parent=83 // pred_fallthru
          _
      $region84: #{aiayn_forward.6} parent=5 // pred_fallthru
        _
    $region6: #{aiayn_forward.6} parent=1 // loop_footer
      %s31 = sadd.s32 1, %s27
    $region7: #{aiayn_forward.6} parent=1 // loop_footer_branch
      %26 = sbr.rel target = $region3
    $region8: #{aiayn_forward.6} parent=1 // loop_exit
      _
    %1155 = vsyncpa [#allocation3], 1
    %s1156 = scalar_lea.sflag [#allocation3], 1
    %1157 = vsyncpa %s1156, 1
    %1158 = vsyncpa [#allocation5], 1
    %s1159 = scalar_lea.sflag [#allocation5], 1
    %1160 = vsyncpa %s1159, 1

// kernel: aiayn_forward.8
$region0: #{aiayn_forward.8}
  #allocation0 [shape = 'u32[]', space=smem, size = 0x4, offset = 0x4, fixed_abs, tag = 'smem constant byte address 0x4 - core index']
  #allocation1 [shape = 'u32[144,128]{1,0:T(1,128)}', space=vmem, size = 0x12000, scoped, tag = 'internal scratch']
  %s0 = inlined_call_operand.vmem [shape: bf16[2,8,32], index: 0, kind: input, shape index: {}]
  %s1 = inlined_call_operand.vmem [shape: bf16[2,8,32], index: 1, kind: input, shape index: {}]
  %s2 = inlined_call_operand.vmem [shape: bf16[2,8,32], index: 2, kind: input, shape index: {}]
  %s3 = inlined_call_operand.vmem [shape: f32[32,32], index: 3, kind: input, shape index: {}]
  %s4 = inlined_call_operand.vmem [shape: bf16[32,96], index: 4, kind: input, shape index: {}]
  %s5 = inlined_call_operand.vmem [shape: f32[1,96], index: 5, kind: input, shape index: {}]
  %s6 = inlined_call_operand.vmem [shape: bf16[32,32], index: 6, kind: input, shape index: {}]
  %s7 = inlined_call_operand.vmem [shape: f32[1,32], index: 7, kind: input, shape index: {}]
  %s8 = inlined_call_operand.vmem [shape: bf16[32,96], index: 8, kind: input, shape index: {}]
  %s9 = inlined_call_operand.vmem [shape: f32[1,96], index: 9, kind: input, shape index: {}]
  %s10 = inlined_call_operand.vmem [shape: bf16[32,32], index: 10, kind: input, shape index: {}]
  %s11 = inlined_call_operand.vmem [shape: f32[1,32], index: 11, kind: input, shape index: {}]
  %s12 = inlined_call_operand.vmem [shape: bf16[32,128], index: 12, kind: input, shape index: {}]
  %s13 = inlined_call_operand.vmem [shape: f32[1,128], index: 13, kind: input, shape index: {}]
  %s14 = inlined_call_operand.vmem [shape: bf16[128,32], index: 14, kind: input, shape index: {}]
  %s15 = inlined_call_operand.vmem [shape: f32[1,32], index: 15, kind: input, shape index: {}]
  %s16 = inlined_call_operand.vmem [shape: f32[4,32], index: 16, kind: input, shape index: {}]
  %s17 = inlined_call_operand.vmem [shape: f32[4,32], index: 17, kind: input, shape index: {}]
  %s18 = inlined_call_operand.vmem [shape: bf16[2,8,32], index: 18, kind: output, shape index: {}]
  %s19 = sld [smem:[#allocation0]]
  $region105: #{aiayn_forward.8} parent=0
    _
  %s21 = ssub.s32 1, %s19
  %s22 = scalar_select 0, %s21, %s19
  loop: start=0, step=1, limit=4
  $region2: #{aiayn_forward.8} parent=0 // loop_pre_header
    _
  $region3: #{aiayn_forward.8} parent=0 // loop_header
    %s24 = sphi 0, %s28
    %p25 = scmp.ge.s32.totalorder %s24, 4
    %s34 = sphi 0, %s36
    %s37 = sphi 0, %s34
    %s38 = sphi 0, %s37
    %s54 = sphi 0, %s38
    %s60 = sphi 0, %s62
    %s63 = sphi 0, %s60
    %s64 = sphi 0, %s63
    %s80 = sphi 0, %s64
    %s86 = sphi 0, %s88
    %s89 = sphi 0, %s86
    %s90 = sphi 0, %s89
    %s106 = sphi 0, %s90
    %s110 = sphi 0, %s110
    %s112 = sphi 0, %s110
    %s113 = sphi 0, %s112
    %s127 = sphi 0, %s113
    %s131 = sphi 0, %s131
    %s133 = sphi 0, %s131
    %s134 = sphi 0, %s133
    %s148 = sphi 0, %s134
    %s152 = sphi 0, %s152
    %s154 = sphi 0, %s152
    %s155 = sphi 0, %s154
    %s169 = sphi 0, %s155
    %s173 = sphi 0, %s173
    %s175 = sphi 0, %s173
    %s176 = sphi 0, %s175
    %s190 = sphi 0, %s176
    %s194 = sphi 0, %s194
    %s196 = sphi 0, %s194
    %s197 = sphi 0, %s196
    %s211 = sphi 0, %s197
    %s215 = sphi 0, %s215
    %s217 = sphi 0, %s215
    %s218 = sphi 0, %s217
    %s232 = sphi 0, %s218
    %s236 = sphi 0, %s236
    %s238 = sphi 0, %s236
    %s239 = sphi 0, %s238
    %s253 = sphi 0, %s239
    %s257 = sphi 0, %s257
    %s259 = sphi 0, %s257
    %s260 = sphi 0, %s259
    %s274 = sphi 0, %s260
    %s278 = sphi 0, %s278
    %s280 = sphi 0, %s278
    %s281 = sphi 0, %s280
    %s295 = sphi 0, %s281
    %s299 = sphi 0, %s299
    %s301 = sphi 0, %s299
    %s302 = sphi 0, %s301
    %s316 = sphi 0, %s302
    %s320 = sphi 0, %s320
    %s322 = sphi 0, %s320
    %s323 = sphi 0, %s322
    %s337 = sphi 0, %s323
    %s341 = sphi 0, %s341
    %s343 = sphi 0, %s341
    %s344 = sphi 0, %s343
    %s358 = sphi 0, %s344
    %s362 = sphi 0, %s362
    %s364 = sphi 0, %s362
    %s365 = sphi 0, %s364
    %s379 = sphi 0, %s365
    %s383 = sphi 0, %s383
    %s385 = sphi 0, %s383
    %s386 = sphi 0, %s385
    %s400 = sphi 0, %s386
    %s404 = sphi 0, %s404
    %s406 = sphi 0, %s404
    %s407 = sphi 0, %s406
    %s421 = sphi 0, %s407
    %s427 = sphi 0, %s429
    %s430 = sphi 0, %s427
    %s431 = sphi 0, %s430
    %s447 = sphi 0, %s431
  $region4: #{aiayn_forward.8} parent=0 // loop_header_branch
    %27 = sbr.rel (%p25) target = $region8
  $region5: #{aiayn_forward.8} parent=0 // loop_body
    %s29 = ssub.s32 %s24, 1
    %s30 = ssub.s32 %s24, 2
    %s31 = sadd.s32 %s24, 1
    %s32 = ssub.s32 %s24, %s31
    %p33 = scmp.eq.s32.totalorder %s32, 0
    %s35 = sadd.s32 %s34, 1
    %s36 = scalar_select %p33, %s34, %s35
    %p39 = pneg %p33
    %p40 = scmp.eq.s32.totalorder %s24, 1
    %p41 = por %p39, %p40
    %p42 = scmp.ne.s32.totalorder %s34, %s37
    %p43 = scmp.eq.s32.totalorder %s24, 0
    %p44 = por %p42, %p43
    %p45 = scmp.ne.s32.totalorder %s34, %s37
    %p46 = scmp.eq.s32.totalorder %s29, 1
    %p47 = por %p45, %p46
    %p48 = scmp.ne.s32.totalorder %s37, %s38
    %p49 = scmp.eq.s32.totalorder %s29, 0
    %p50 = por %p48, %p49
    %p51 = scmp.ne.s32.totalorder %s37, %s38
    %p52 = scmp.eq.s32.totalorder %s30, 1
    %p53 = por %p51, %p52
    %p55 = scmp.ne.s32.totalorder %s38, %s54
    %p56 = scmp.eq.s32.totalorder %s30, 0
    %p57 = por %p55, %p56
    %s58 = ssub.s32 %s24, %s31
    %p59 = scmp.eq.s32.totalorder %s58, 0
    %s61 = sadd.s32 %s60, 1
    %s62 = scalar_select %p59, %s60, %s61
    %p65 = pneg %p59
    %p66 = scmp.eq.s32.totalorder %s24, 1
    %p67 = por %p65, %p66
    %p68 = scmp.ne.s32.totalorder %s60, %s63
    %p69 = scmp.eq.s32.totalorder %s24, 0
    %p70 = por %p68, %p69
    %p71 = scmp.ne.s32.totalorder %s60, %s63
    %p72 = scmp.eq.s32.totalorder %s29, 1
    %p73 = por %p71, %p72
    %p74 = scmp.ne.s32.totalorder %s63, %s64
    %p75 = scmp.eq.s32.totalorder %s29, 0
    %p76 = por %p74, %p75
    %p77 = scmp.ne.s32.totalorder %s63, %s64
    %p78 = scmp.eq.s32.totalorder %s30, 1
    %p79 = por %p77, %p78
    %p81 = scmp.ne.s32.totalorder %s64, %s80
    %p82 = scmp.eq.s32.totalorder %s30, 0
    %p83 = por %p81, %p82
    %s84 = ssub.s32 %s24, %s31
    %p85 = scmp.eq.s32.totalorder %s84, 0
    %s87 = sadd.s32 %s86, 1
    %s88 = scalar_select %p85, %s86, %s87
    %p91 = pneg %p85
    %p92 = scmp.eq.s32.totalorder %s24, 1
    %p93 = por %p91, %p92
    %p94 = scmp.ne.s32.totalorder %s86, %s89
    %p95 = scmp.eq.s32.totalorder %s24, 0
    %p96 = por %p94, %p95
    %p97 = scmp.ne.s32.totalorder %s86, %s89
    %p98 = scmp.eq.s32.totalorder %s29, 1
    %p99 = por %p97, %p98
    %p100 = scmp.ne.s32.totalorder %s89, %s90
    %p101 = scmp.eq.s32.totalorder %s29, 0
    %p102 = por %p100, %p101
    %p103 = scmp.ne.s32.totalorder %s89, %s90
    %p104 = scmp.eq.s32.totalorder %s30, 1
    %p105 = por %p103, %p104
    %p107 = scmp.ne.s32.totalorder %s90, %s106
    %p108 = scmp.eq.s32.totalorder %s30, 0
    %p109 = por %p107, %p108
    %s111 = sadd.s32 %s110, 1
    %p114 = scmp.eq.s32.totalorder %s24, 1
    %p115 = scmp.ne.s32.totalorder %s110, %s112
    %p116 = scmp.eq.s32.totalorder %s24, 0
    %p117 = por %p115, %p116
    %p118 = scmp.ne.s32.totalorder %s110, %s112
    %p119 = scmp.eq.s32.totalorder %s29, 1
    %p120 = por %p118, %p119
    %p121 = scmp.ne.s32.totalorder %s112, %s113
    %p122 = scmp.eq.s32.totalorder %s29, 0
    %p123 = por %p121, %p122
    %p124 = scmp.ne.s32.totalorder %s112, %s113
    %p125 = scmp.eq.s32.totalorder %s30, 1
    %p126 = por %p124, %p125
    %p128 = scmp.ne.s32.totalorder %s113, %s127
    %p129 = scmp.eq.s32.totalorder %s30, 0
    %p130 = por %p128, %p129
    %s132 = sadd.s32 %s131, 1
    %p135 = scmp.eq.s32.totalorder %s24, 1
    %p136 = scmp.ne.s32.totalorder %s131, %s133
    %p137 = scmp.eq.s32.totalorder %s24, 0
    %p138 = por %p136, %p137
    %p139 = scmp.ne.s32.totalorder %s131, %s133
    %p140 = scmp.eq.s32.totalorder %s29, 1
    %p141 = por %p139, %p140
    %p142 = scmp.ne.s32.totalorder %s133, %s134
    %p143 = scmp.eq.s32.totalorder %s29, 0
    %p144 = por %p142, %p143
    %p145 = scmp.ne.s32.totalorder %s133, %s134
    %p146 = scmp.eq.s32.totalorder %s30, 1
    %p147 = por %p145, %p146
    %p149 = scmp.ne.s32.totalorder %s134, %s148
    %p150 = scmp.eq.s32.totalorder %s30, 0
    %p151 = por %p149, %p150
    %s153 = sadd.s32 %s152, 1
    %p156 = scmp.eq.s32.totalorder %s24, 1
    %p157 = scmp.ne.s32.totalorder %s152, %s154
    %p158 = scmp.eq.s32.totalorder %s24, 0
    %p159 = por %p157, %p158
    %p160 = scmp.ne.s32.totalorder %s152, %s154
    %p161 = scmp.eq.s32.totalorder %s29, 1
    %p162 = por %p160, %p161
    %p163 = scmp.ne.s32.totalorder %s154, %s155
    %p164 = scmp.eq.s32.totalorder %s29, 0
    %p165 = por %p163, %p164
    %p166 = scmp.ne.s32.totalorder %s154, %s155
    %p167 = scmp.eq.s32.totalorder %s30, 1
    %p168 = por %p166, %p167
    %p170 = scmp.ne.s32.totalorder %s155, %s169
    %p171 = scmp.eq.s32.totalorder %s30, 0
    %p172 = por %p170, %p171
    %s174 = sadd.s32 %s173, 1
    %p177 = scmp.eq.s32.totalorder %s24, 1
    %p178 = scmp.ne.s32.totalorder %s173, %s175
    %p179 = scmp.eq.s32.totalorder %s24, 0
    %p180 = por %p178, %p179
    %p181 = scmp.ne.s32.totalorder %s173, %s175
    %p182 = scmp.eq.s32.totalorder %s29, 1
    %p183 = por %p181, %p182
    %p184 = scmp.ne.s32.totalorder %s175, %s176
    %p185 = scmp.eq.s32.totalorder %s29, 0
    %p186 = por %p184, %p185
    %p187 = scmp.ne.s32.totalorder %s175, %s176
    %p188 = scmp.eq.s32.totalorder %s30, 1
    %p189 = por %p187, %p188
    %p191 = scmp.ne.s32.totalorder %s176, %s190
    %p192 = scmp.eq.s32.totalorder %s30, 0
    %p193 = por %p191, %p192
    %s195 = sadd.s32 %s194, 1
    %p198 = scmp.eq.s32.totalorder %s24, 1
    %p199 = scmp.ne.s32.totalorder %s194, %s196
    %p200 = scmp.eq.s32.totalorder %s24, 0
    %p201 = por %p199, %p200
    %p202 = scmp.ne.s32.totalorder %s194, %s196
    %p203 = scmp.eq.s32.totalorder %s29, 1
    %p204 = por %p202, %p203
    %p205 = scmp.ne.s32.totalorder %s196, %s197
    %p206 = scmp.eq.s32.totalorder %s29, 0
    %p207 = por %p205, %p206
    %p208 = scmp.ne.s32.totalorder %s196, %s197
    %p209 = scmp.eq.s32.totalorder %s30, 1
    %p210 = por %p208, %p209
    %p212 = scmp.ne.s32.totalorder %s197, %s211
    %p213 = scmp.eq.s32.totalorder %s30, 0
    %p214 = por %p212, %p213
    %s216 = sadd.s32 %s215, 1
    %p219 = scmp.eq.s32.totalorder %s24, 1
    %p220 = scmp.ne.s32.totalorder %s215, %s217
    %p221 = scmp.eq.s32.totalorder %s24, 0
    %p222 = por %p220, %p221
    %p223 = scmp.ne.s32.totalorder %s215, %s217
    %p224 = scmp.eq.s32.totalorder %s29, 1
    %p225 = por %p223, %p224
    %p226 = scmp.ne.s32.totalorder %s217, %s218
    %p227 = scmp.eq.s32.totalorder %s29, 0
    %p228 = por %p226, %p227
    %p229 = scmp.ne.s32.totalorder %s217, %s218
    %p230 = scmp.eq.s32.totalorder %s30, 1
    %p231 = por %p229, %p230
    %p233 = scmp.ne.s32.totalorder %s218, %s232
    %p234 = scmp.eq.s32.totalorder %s30, 0
    %p235 = por %p233, %p234
    %s237 = sadd.s32 %s236, 1
    %p240 = scmp.eq.s32.totalorder %s24, 1
    %p241 = scmp.ne.s32.totalorder %s236, %s238
    %p242 = scmp.eq.s32.totalorder %s24, 0
    %p243 = por %p241, %p242
    %p244 = scmp.ne.s32.totalorder %s236, %s238
    %p245 = scmp.eq.s32.totalorder %s29, 1
    %p246 = por %p244, %p245
    %p247 = scmp.ne.s32.totalorder %s238, %s239
    %p248 = scmp.eq.s32.totalorder %s29, 0
    %p249 = por %p247, %p248
    %p250 = scmp.ne.s32.totalorder %s238, %s239
    %p251 = scmp.eq.s32.totalorder %s30, 1
    %p252 = por %p250, %p251
    %p254 = scmp.ne.s32.totalorder %s239, %s253
    %p255 = scmp.eq.s32.totalorder %s30, 0
    %p256 = por %p254, %p255
    %s258 = sadd.s32 %s257, 1
    %p261 = scmp.eq.s32.totalorder %s24, 1
    %p262 = scmp.ne.s32.totalorder %s257, %s259
    %p263 = scmp.eq.s32.totalorder %s24, 0
    %p264 = por %p262, %p263
    %p265 = scmp.ne.s32.totalorder %s257, %s259
    %p266 = scmp.eq.s32.totalorder %s29, 1
    %p267 = por %p265, %p266
    %p268 = scmp.ne.s32.totalorder %s259, %s260
    %p269 = scmp.eq.s32.totalorder %s29, 0
    %p270 = por %p268, %p269
    %p271 = scmp.ne.s32.totalorder %s259, %s260
    %p272 = scmp.eq.s32.totalorder %s30, 1
    %p273 = por %p271, %p272
    %p275 = scmp.ne.s32.totalorder %s260, %s274
    %p276 = scmp.eq.s32.totalorder %s30, 0
    %p277 = por %p275, %p276
    %s279 = sadd.s32 %s278, 1
    %p282 = scmp.eq.s32.totalorder %s24, 1
    %p283 = scmp.ne.s32.totalorder %s278, %s280
    %p284 = scmp.eq.s32.totalorder %s24, 0
    %p285 = por %p283, %p284
    %p286 = scmp.ne.s32.totalorder %s278, %s280
    %p287 = scmp.eq.s32.totalorder %s29, 1
    %p288 = por %p286, %p287
    %p289 = scmp.ne.s32.totalorder %s280, %s281
    %p290 = scmp.eq.s32.totalorder %s29, 0
    %p291 = por %p289, %p290
    %p292 = scmp.ne.s32.totalorder %s280, %s281
    %p293 = scmp.eq.s32.totalorder %s30, 1
    %p294 = por %p292, %p293
    %p296 = scmp.ne.s32.totalorder %s281, %s295
    %p297 = scmp.eq.s32.totalorder %s30, 0
    %p298 = por %p296, %p297
    %s300 = sadd.s32 %s299, 1
    %p303 = scmp.eq.s32.totalorder %s24, 1
    %p304 = scmp.ne.s32.totalorder %s299, %s301
    %p305 = scmp.eq.s32.totalorder %s24, 0
    %p306 = por %p304, %p305
    %p307 = scmp.ne.s32.totalorder %s299, %s301
    %p308 = scmp.eq.s32.totalorder %s29, 1
    %p309 = por %p307, %p308
    %p310 = scmp.ne.s32.totalorder %s301, %s302
    %p311 = scmp.eq.s32.totalorder %s29, 0
    %p312 = por %p310, %p311
    %p313 = scmp.ne.s32.totalorder %s301, %s302
    %p314 = scmp.eq.s32.totalorder %s30, 1
    %p315 = por %p313, %p314
    %p317 = scmp.ne.s32.totalorder %s302, %s316
    %p318 = scmp.eq.s32.totalorder %s30, 0
    %p319 = por %p317, %p318
    %s321 = sadd.s32 %s320, 1
    %p324 = scmp.eq.s32.totalorder %s24, 1
    %p325 = scmp.ne.s32.totalorder %s320, %s322
    %p326 = scmp.eq.s32.totalorder %s24, 0
    %p327 = por %p325, %p326
    %p328 = scmp.ne.s32.totalorder %s320, %s322
    %p329 = scmp.eq.s32.totalorder %s29, 1
    %p330 = por %p328, %p329
    %p331 = scmp.ne.s32.totalorder %s322, %s323
    %p332 = scmp.eq.s32.totalorder %s29, 0
    %p333 = por %p331, %p332
    %p334 = scmp.ne.s32.totalorder %s322, %s323
    %p335 = scmp.eq.s32.totalorder %s30, 1
    %p336 = por %p334, %p335
    %p338 = scmp.ne.s32.totalorder %s323, %s337
    %p339 = scmp.eq.s32.totalorder %s30, 0
    %p340 = por %p338, %p339
    %s342 = sadd.s32 %s341, 1
    %p345 = scmp.eq.s32.totalorder %s24, 1
    %p346 = scmp.ne.s32.totalorder %s341, %s343
    %p347 = scmp.eq.s32.totalorder %s24, 0
    %p348 = por %p346, %p347
    %p349 = scmp.ne.s32.totalorder %s341, %s343
    %p350 = scmp.eq.s32.totalorder %s29, 1
    %p351 = por %p349, %p350
    %p352 = scmp.ne.s32.totalorder %s343, %s344
    %p353 = scmp.eq.s32.totalorder %s29, 0
    %p354 = por %p352, %p353
    %p355 = scmp.ne.s32.totalorder %s343, %s344
    %p356 = scmp.eq.s32.totalorder %s30, 1
    %p357 = por %p355, %p356
    %p359 = scmp.ne.s32.totalorder %s344, %s358
    %p360 = scmp.eq.s32.totalorder %s30, 0
    %p361 = por %p359, %p360
    %s363 = sadd.s32 %s362, 1
    %p366 = scmp.eq.s32.totalorder %s24, 1
    %p367 = scmp.ne.s32.totalorder %s362, %s364
    %p368 = scmp.eq.s32.totalorder %s24, 0
    %p369 = por %p367, %p368
    %p370 = scmp.ne.s32.totalorder %s362, %s364
    %p371 = scmp.eq.s32.totalorder %s29, 1
    %p372 = por %p370, %p371
    %p373 = scmp.ne.s32.totalorder %s364, %s365
    %p374 = scmp.eq.s32.totalorder %s29, 0
    %p375 = por %p373, %p374
    %p376 = scmp.ne.s32.totalorder %s364, %s365
    %p377 = scmp.eq.s32.totalorder %s30, 1
    %p378 = por %p376, %p377
    %p380 = scmp.ne.s32.totalorder %s365, %s379
    %p381 = scmp.eq.s32.totalorder %s30, 0
    %p382 = por %p380, %p381
    %s384 = sadd.s32 %s383, 1
    %p387 = scmp.eq.s32.totalorder %s24, 1
    %p388 = scmp.ne.s32.totalorder %s383, %s385
    %p389 = scmp.eq.s32.totalorder %s24, 0
    %p390 = por %p388, %p389
    %p391 = scmp.ne.s32.totalorder %s383, %s385
    %p392 = scmp.eq.s32.totalorder %s29, 1
    %p393 = por %p391, %p392
    %p394 = scmp.ne.s32.totalorder %s385, %s386
    %p395 = scmp.eq.s32.totalorder %s29, 0
    %p396 = por %p394, %p395
    %p397 = scmp.ne.s32.totalorder %s385, %s386
    %p398 = scmp.eq.s32.totalorder %s30, 1
    %p399 = por %p397, %p398
    %p401 = scmp.ne.s32.totalorder %s386, %s400
    %p402 = scmp.eq.s32.totalorder %s30, 0
    %p403 = por %p401, %p402
    %s405 = sadd.s32 %s404, 1
    %p408 = scmp.eq.s32.totalorder %s24, 1
    %p409 = scmp.ne.s32.totalorder %s404, %s406
    %p410 = scmp.eq.s32.totalorder %s24, 0
    %p411 = por %p409, %p410
    %p412 = scmp.ne.s32.totalorder %s404, %s406
    %p413 = scmp.eq.s32.totalorder %s29, 1
    %p414 = por %p412, %p413
    %p415 = scmp.ne.s32.totalorder %s406, %s407
    %p416 = scmp.eq.s32.totalorder %s29, 0
    %p417 = por %p415, %p416
    %p418 = scmp.ne.s32.totalorder %s406, %s407
    %p419 = scmp.eq.s32.totalorder %s30, 1
    %p420 = por %p418, %p419
    %p422 = scmp.ne.s32.totalorder %s407, %s421
    %p423 = scmp.eq.s32.totalorder %s30, 0
    %p424 = por %p422, %p423
    %s425 = ssub.s32 %s24, %s31
    %p426 = scmp.eq.s32.totalorder %s425, 0
    %s428 = sadd.s32 %s427, 1
    %s429 = scalar_select %p426, %s427, %s428
    %p432 = pneg %p426
    %p433 = scmp.eq.s32.totalorder %s24, 1
    %p434 = por %p432, %p433
    %p435 = scmp.ne.s32.totalorder %s427, %s430
    %p436 = scmp.eq.s32.totalorder %s24, 0
    %p437 = por %p435, %p436
    %p438 = scmp.ne.s32.totalorder %s427, %s430
    %p439 = scmp.eq.s32.totalorder %s29, 1
    %p440 = por %p438, %p439
    %p441 = scmp.ne.s32.totalorder %s430, %s431
    %p442 = scmp.eq.s32.totalorder %s29, 0
    %p443 = por %p441, %p442
    %p444 = scmp.ne.s32.totalorder %s430, %s431
    %p445 = scmp.eq.s32.totalorder %s30, 1
    %p446 = por %p444, %p445
    %p448 = scmp.ne.s32.totalorder %s431, %s447
    %p449 = scmp.eq.s32.totalorder %s30, 0
    %p450 = por %p448, %p449
    %p451 = scmp.le.s32.totalorder 1, %s24
    %p452 = scmp.lt.s32.totalorder %s24, 3
    %p453 = pnand %p451, %p452
    %p454 = pneg %p453
    // Predicated region
    $region9: #{aiayn_forward.8} parent=5 // pred_check
      _
    $region10: #{aiayn_forward.8} parent=5 // pred_check_branch
      %456 = sbr.rel (%p453) target = $region12
    $region11: #{aiayn_forward.8} parent=5 // pred_region
      %s457 = ssub.s32 %s24, 1
      // Predicated region
      $region13: #{aiayn_forward.8} parent=11 // pred_check
        %p458 = pneg %p123
      $region14: #{aiayn_forward.8} parent=11 // pred_check_branch
        %460 = sbr.rel (%p458) target = $region16
      $region15: #{aiayn_forward.8} parent=11 // pred_region
        _
      $region16: #{aiayn_forward.8} parent=11 // pred_fallthru
        _
      // Predicated region
      $region17: #{aiayn_forward.8} parent=11 // pred_check
        %p461 = pneg %p144
      $region18: #{aiayn_forward.8} parent=11 // pred_check_branch
        %463 = sbr.rel (%p461) target = $region20
      $region19: #{aiayn_forward.8} parent=11 // pred_region
        _
      $region20: #{aiayn_forward.8} parent=11 // pred_fallthru
        _
      // Predicated region
      $region21: #{aiayn_forward.8} parent=11 // pred_check
        %p464 = pneg %p165
      $region22: #{aiayn_forward.8} parent=11 // pred_check_branch
        %466 = sbr.rel (%p464) target = $region24
      $region23: #{aiayn_forward.8} parent=11 // pred_region
        _
      $region24: #{aiayn_forward.8} parent=11 // pred_fallthru
        _
      // Predicated region
      $region25: #{aiayn_forward.8} parent=11 // pred_check
        %p467 = pneg %p186
      $region26: #{aiayn_forward.8} parent=11 // pred_check_branch
        %469 = sbr.rel (%p467) target = $region28
      $region27: #{aiayn_forward.8} parent=11 // pred_region
        _
      $region28: #{aiayn_forward.8} parent=11 // pred_fallthru
        _
      // Predicated region
      $region29: #{aiayn_forward.8} parent=11 // pred_check
        %p470 = pneg %p207
      $region30: #{aiayn_forward.8} parent=11 // pred_check_branch
        %472 = sbr.rel (%p470) target = $region32
      $region31: #{aiayn_forward.8} parent=11 // pred_region
        _
      $region32: #{aiayn_forward.8} parent=11 // pred_fallthru
        _
      // Predicated region
      $region33: #{aiayn_forward.8} parent=11 // pred_check
        %p473 = pneg %p228
      $region34: #{aiayn_forward.8} parent=11 // pred_check_branch
        %475 = sbr.rel (%p473) target = $region36
      $region35: #{aiayn_forward.8} parent=11 // pred_region
        _
      $region36: #{aiayn_forward.8} parent=11 // pred_fallthru
        _
      // Predicated region
      $region37: #{aiayn_forward.8} parent=11 // pred_check
        %p476 = pneg %p249
      $region38: #{aiayn_forward.8} parent=11 // pred_check_branch
        %478 = sbr.rel (%p476) target = $region40
      $region39: #{aiayn_forward.8} parent=11 // pred_region
        _
      $region40: #{aiayn_forward.8} parent=11 // pred_fallthru
        _
      // Predicated region
      $region41: #{aiayn_forward.8} parent=11 // pred_check
        %p479 = pneg %p270
      $region42: #{aiayn_forward.8} parent=11 // pred_check_branch
        %481 = sbr.rel (%p479) target = $region44
      $region43: #{aiayn_forward.8} parent=11 // pred_region
        _
      $region44: #{aiayn_forward.8} parent=11 // pred_fallthru
        _
      // Predicated region
      $region45: #{aiayn_forward.8} parent=11 // pred_check
        %p482 = pneg %p291
      $region46: #{aiayn_forward.8} parent=11 // pred_check_branch
        %484 = sbr.rel (%p482) target = $region48
      $region47: #{aiayn_forward.8} parent=11 // pred_region
        _
      $region48: #{aiayn_forward.8} parent=11 // pred_fallthru
        _
      // Predicated region
      $region49: #{aiayn_forward.8} parent=11 // pred_check
        %p485 = pneg %p312
      $region50: #{aiayn_forward.8} parent=11 // pred_check_branch
        %487 = sbr.rel (%p485) target = $region52
      $region51: #{aiayn_forward.8} parent=11 // pred_region
        _
      $region52: #{aiayn_forward.8} parent=11 // pred_fallthru
        _
      // Predicated region
      $region53: #{aiayn_forward.8} parent=11 // pred_check
        %p488 = pneg %p333
      $region54: #{aiayn_forward.8} parent=11 // pred_check_branch
        %490 = sbr.rel (%p488) target = $region56
      $region55: #{aiayn_forward.8} parent=11 // pred_region
        _
      $region56: #{aiayn_forward.8} parent=11 // pred_fallthru
        _
      // Predicated region
      $region57: #{aiayn_forward.8} parent=11 // pred_check
        %p491 = pneg %p354
      $region58: #{aiayn_forward.8} parent=11 // pred_check_branch
        %493 = sbr.rel (%p491) target = $region60
      $region59: #{aiayn_forward.8} parent=11 // pred_region
        _
      $region60: #{aiayn_forward.8} parent=11 // pred_fallthru
        _
      // Predicated region
      $region61: #{aiayn_forward.8} parent=11 // pred_check
        %p494 = pneg %p375
      $region62: #{aiayn_forward.8} parent=11 // pred_check_branch
        %496 = sbr.rel (%p494) target = $region64
      $region63: #{aiayn_forward.8} parent=11 // pred_region
        _
      $region64: #{aiayn_forward.8} parent=11 // pred_fallthru
        _
      // Predicated region
      $region65: #{aiayn_forward.8} parent=11 // pred_check
        %p497 = pneg %p396
      $region66: #{aiayn_forward.8} parent=11 // pred_check_branch
        %499 = sbr.rel (%p497) target = $region68
      $region67: #{aiayn_forward.8} parent=11 // pred_region
        _
      $region68: #{aiayn_forward.8} parent=11 // pred_fallthru
        _
      // Predicated region
      $region69: #{aiayn_forward.8} parent=11 // pred_check
        %p500 = pneg %p417
      $region70: #{aiayn_forward.8} parent=11 // pred_check_branch
        %502 = sbr.rel (%p500) target = $region72
      $region71: #{aiayn_forward.8} parent=11 // pred_region
        _
      $region72: #{aiayn_forward.8} parent=11 // pred_fallthru
        _
    $region12: #{aiayn_forward.8} parent=5 // pred_fallthru
      _
    %p503 = scmp.lt.s32.totalorder %s24, 2
    // Predicated region
    $region73: #{aiayn_forward.8} parent=5 // pred_check
      %p504 = pneg %p503
    $region74: #{aiayn_forward.8} parent=5 // pred_check_branch
      %506 = sbr.rel (%p504) target = $region76
    $region75: #{aiayn_forward.8} parent=5 // pred_region
      // Predicated region
      $region77: #{aiayn_forward.8} parent=75 // pred_check
        %p507 = pneg %p44
      $region78: #{aiayn_forward.8} parent=75 // pred_check_branch
        %509 = sbr.rel (%p507) target = $region80
      $region79: #{aiayn_forward.8} parent=75 // pred_region
        %p510 = scmp.lt.s32.totalorder %s24, 1
        %s511 = scalar_select %p510, %s24, 1
        %s512 = smul.addr %s511, 4
        %s513 = scalar_lea.vmem %s0, %s512
      $region80: #{aiayn_forward.8} parent=75 // pred_fallthru
        _
      // Predicated region
      $region81: #{aiayn_forward.8} parent=75 // pred_check
        %p514 = pneg %p70
      $region82: #{aiayn_forward.8} parent=75 // pred_check_branch
        %516 = sbr.rel (%p514) target = $region84
      $region83: #{aiayn_forward.8} parent=75 // pred_region
        %p517 = scmp.lt.s32.totalorder %s24, 1
        %s518 = scalar_select %p517, %s24, 1
        %s519 = smul.addr %s518, 4
        %s520 = scalar_lea.vmem %s1, %s519
      $region84: #{aiayn_forward.8} parent=75 // pred_fallthru
        _
      // Predicated region
      $region85: #{aiayn_forward.8} parent=75 // pred_check
        %p521 = pneg %p96
      $region86: #{aiayn_forward.8} parent=75 // pred_check_branch
        %523 = sbr.rel (%p521) target = $region88
      $region87: #{aiayn_forward.8} parent=75 // pred_region
        %p524 = scmp.lt.s32.totalorder %s24, 1
        %s525 = scalar_select %p524, %s24, 1
        %s526 = smul.addr %s525, 4
        %s527 = scalar_lea.vmem %s2, %s526
      $region88: #{aiayn_forward.8} parent=75 // pred_fallthru
        _
    $region76: #{aiayn_forward.8} parent=5 // pred_fallthru
      _
    %p528 = scmp.le.s32.totalorder 1, %s24
    %p529 = scmp.lt.s32.totalorder %s24, 3
    %p530 = pnand %p528, %p529
    %p531 = pneg %p530
    // Predicated region
    $region89: #{aiayn_forward.8} parent=5 // pred_check
      _
    $region90: #{aiayn_forward.8} parent=5 // pred_check_branch
      %533 = sbr.rel (%p530) target = $region92
    $region91: #{aiayn_forward.8} parent=5 // pred_region
      %s534 = ssub.s32 %s24, 1
      %p535 = scmp.lt.s32.totalorder %s29, 1
      %s536 = scalar_select %p535, %s29, 1
      %s537 = smul.addr %s536, 4
      %s538 = scalar_lea.vmem %s0, %s537
      %p539 = pneg %p50
      %p540 = pneg %p47
      %p541 = scmp.lt.s32.totalorder %s29, 1
      %s542 = scalar_select %p541, %s29, 1
      %s543 = smul.addr %s542, 4
      %s544 = scalar_lea.vmem %s1, %s543
      %p545 = pneg %p76
      %p546 = pneg %p73
      %p547 = scmp.lt.s32.totalorder %s29, 1
      %s548 = scalar_select %p547, %s29, 1
      %s549 = smul.addr %s548, 4
      %s550 = scalar_lea.vmem %s2, %s549
      %p551 = pneg %p102
      %p552 = pneg %p99
      %p553 = pneg %p123
      %p554 = pneg %p120
      %p555 = pneg %p144
      %p556 = pneg %p141
      %p557 = pneg %p165
      %p558 = pneg %p162
      %p559 = pneg %p186
      %p560 = pneg %p183
      %p561 = pneg %p207
      %p562 = pneg %p204
      %p563 = pneg %p228
      %p564 = pneg %p225
      %p565 = pneg %p249
      %p566 = pneg %p246
      %p567 = pneg %p270
      %p568 = pneg %p267
      %p569 = pneg %p291
      %p570 = pneg %p288
      %p571 = pneg %p312
      %p572 = pneg %p309
      %p573 = pneg %p333
      %p574 = pneg %p330
      %p575 = pneg %p354
      %p576 = pneg %p351
      %p577 = pneg %p375
      %p578 = pneg %p372
      %p579 = pneg %p396
      %p580 = pneg %p393
      %p581 = pneg %p417
      %p582 = pneg %p414
      %p583 = pneg %p443
      %p584 = pneg %p440
      %p585 = scmp.lt.s32.totalorder %s29, 1
      %s586 = scalar_select %p585, %s29, 1
      %s587 = smul.addr %s586, 4
      %s588 = scalar_lea.vmem %s18, %s587
      %p589 = scmp.lt.s32.totalorder %s29, 1
      %s590 = scalar_select %p589, %s29, 1
      %s591 = smul.addr %s590, 4
      %s592 = scalar_lea.vmem %s0, %s591
      %p593 = scmp.lt.s32.totalorder %s29, 1
      %s594 = scalar_select %p593, %s29, 1
      %s595 = smul.addr %s594, 4
      %s596 = scalar_lea.vmem %s1, %s595
      %p597 = scmp.lt.s32.totalorder %s29, 1
      %s598 = scalar_select %p597, %s29, 1
      %s599 = smul.addr %s598, 4
      %s600 = scalar_lea.vmem %s2, %s599
      %p601 = scmp.lt.s32.totalorder %s29, 1
      %s602 = scalar_select %p601, %s29, 1
      %s603 = smul.addr %s602, 4
      %s604 = scalar_lea.vmem %s18, %s603
      %v606 = vld [vmem:[%s592] sm:$0xf]
      %v607 = vunpack.c.l.bf16 %v606
      %v608 = vld [vmem:[%s3] sm:$0xff]
      %v609 = vld [vmem:[%s3 + $0x8] sm:$0xff]
      %v610 = vld [vmem:[%s3 + $0x10] sm:$0xff]
      %v611 = vld [vmem:[%s3 + $0x18] sm:$0xff]
      %v612 = vld [vmem:[%s16] sm:$0xf]
      %v613 = vld [vmem:[%s17] sm:$0xf]
      %v614 = vld [vmem:[%s4] sm:$0xf]
      %v615 = vld [vmem:[%s4 + $0x4] sm:$0xf]
      %v616 = vld [vmem:[%s4 + $0x8] sm:$0xf]
      %v617 = vld [vmem:[%s4 + $0xc] sm:$0xf]
      %v618 = vld [vmem:[%s5] sm:$0x1]
      %v620 = vlaneseq
      %v621 = vshrl.u32 %v620, 7
      %v622 = vsub.s32 0, %v621
      %v623 = vrot.slane %v618, %v622
      %v629 = vunpack.c.l.b16 %v614
      %v630 = vunpack.c.l.b16 %v615
      %v631 = vunpack.c.l.b16 %v616
      %v632 = vunpack.c.l.b16 %v617
      %v633 = vpack.c.b16 %v630, %v629
      %v634 = vpack.c.b16 %v632, %v631
      %vm637 = vcmask 261120
      %v639 = vsel %vm637, %v606, 0
      %641 = vmatprep.subr.bf16.mxu0 0
      %642 = vmatpush1.bf16.msra.mxu0 %v633
      %643 = vmatprep.subr.bf16.mxu0 0
      %644 = vmatpush1.bf16.msra.mxu0 %v634
      %645 = vmatprep.subr.bf16.mxu0 0
      %646 = vmatpush1.bf16.msra.mxu0 0
      %647 = vmatprep.subr.bf16.mxu0 0
      %648 = vmatpush1.bf16.msra.mxu0 0
      %649 = vmatprep.subr.bf16.mxu0 0
      %650 = vmatpush1.bf16.msra.mxu0 0
      %651 = vmatprep.subr.bf16.mxu0 0
      %652 = vmatpush1.bf16.msra.mxu0 0
      %653 = vmatprep.subr.bf16.mxu0 0
      %654 = vmatpush1.bf16.msra.mxu0 0
      %655 = vmatprep.subr.bf16.mxu0 0
      %656 = vmatpush1.bf16.msra.mxu0 0
      %657 = vmatprep.subr.bf16.mxu0 0
      %658 = vmatpush1.bf16.msra.mxu0 0
      %659 = vmatprep.subr.bf16.mxu0 0
      %660 = vmatpush1.bf16.msra.mxu0 0
      %661 = vmatprep.subr.bf16.mxu0 0
      %662 = vmatpush1.bf16.msra.mxu0 0
      %663 = vmatprep.subr.bf16.mxu0 0
      %664 = vmatpush1.bf16.msra.mxu0 0
      %665 = vmatprep.subr.bf16.mxu0 0
      %666 = vmatpush1.bf16.msra.mxu0 0
      %667 = vmatprep.subr.bf16.mxu0 0
      %668 = vmatpush1.bf16.msra.mxu0 0
      %669 = vmatprep.subr.bf16.mxu0 0
      %670 = vmatpush1.bf16.msra.mxu0 0
      %671 = vmatprep.subr.bf16.mxu0 0
      %672 = vmatpush1.bf16.msra.mxu0 0
      %673 = vmatprep.mubr.bf16.mxu0 0
      %674 = vmatmul.mubr.bf16.gmra.mrb[0].mxu0 %v639
      %v675 = vpop.f32.mrb[0].mxu0
      %v676 = vadd.f32 %v623, %v675
      %v677 = vpop.f32.mrb[0].mxu0
      %v678 = vpop.f32.mrb[0].mxu0
      %v679 = vpop.f32.mrb[0].mxu0
      %680 = vdwg.mxu0
      %682 = vrot.lane.b32.xlu0 %v676, 96
      %v683 = vpop.permute.xlu0 %682
      %685 = vxpose.xlu0.b32.start [1/16] %v683, 128
      %686 = vxpose.xlu0.b32.cont [2/16] 0.0, 128
      %687 = vxpose.xlu0.b32.cont [3/16] 0.0, 128
      %688 = vxpose.xlu0.b32.cont [4/16] 0.0, 128
      %689 = vxpose.xlu0.b32.cont [5/16] 0.0, 128
      %690 = vxpose.xlu0.b32.cont [6/16] 0.0, 128
      %691 = vxpose.xlu0.b32.cont [7/16] 0.0, 128
      %692 = vxpose.xlu0.b32.cont [8/16] 0.0, 128
      %693 = vxpose.xlu0.b32.cont [9/16] 0.0, 128
      %694 = vxpose.xlu0.b32.cont [10/16] 0.0, 128
      %695 = vxpose.xlu0.b32.cont [11/16] 0.0, 128
      %696 = vxpose.xlu0.b32.cont [12/16] 0.0, 128
      %697 = vxpose.xlu0.b32.cont [13/16] 0.0, 128
      %698 = vxpose.xlu0.b32.cont [14/16] 0.0, 128
      %699 = vxpose.xlu0.b32.cont [15/16] 0.0, 128
      %700 = vxpose.xlu0.b32.end [16/16] 0.0, 128
      %v701 = vpop.trf.xlu0
      %v702 = vpop.trf.xlu0
      %v703 = vpop.trf.xlu0
      %v704 = vpop.trf.xlu0
      %v705 = vpop.trf.xlu0
      %v706 = vpop.trf.xlu0
      %v707 = vpop.trf.xlu0
      %v708 = vpop.trf.xlu0
      %v709 = vpop.trf.xlu0
      %v710 = vpop.trf.xlu0
      %v711 = vpop.trf.xlu0
      %v712 = vpop.trf.xlu0
      %v713 = vpop.trf.xlu0
      %v714 = vpop.trf.xlu0
      %v715 = vpop.trf.xlu0
      %v716 = vpop.trf.xlu0
      %717 = vrot.lane.b32.xlu0 %v676, 64
      %v718 = vpop.permute.xlu0 %717
      %vm720 = vcmask 64512
      %v722 = vsel %vm720, %v701, 0
      %v725 = vsel %vm720, %v702, 0
      %v728 = vsel %vm720, %v703, 0
      %v731 = vsel %vm720, %v704, 0
      %733 = vmatprep.subr.mxu0 0.0
      %734 = vmatpush1.msra.mxu0 %v718
      %735 = vmatprep.subr.mxu0 0.0
      %736 = vmatpush1.msra.mxu0 0.0
      %737 = vmatprep.subr.mxu0 0.0
      %738 = vmatpush1.msra.mxu0 0.0
      %739 = vmatprep.subr.mxu0 0.0
      %740 = vmatpush1.msra.mxu0 0.0
      %741 = vmatprep.subr.mxu0 0.0
      %742 = vmatpush1.msra.mxu0 0.0
      %743 = vmatprep.subr.mxu0 0.0
      %744 = vmatpush1.msra.mxu0 0.0
      %745 = vmatprep.subr.mxu0 0.0
      %746 = vmatpush1.msra.mxu0 0.0
      %747 = vmatprep.subr.mxu0 0.0
      %748 = vmatpush1.msra.mxu0 0.0
      %749 = vmatprep.subr.mxu0 0.0
      %750 = vmatpush1.msra.mxu0 0.0
      %751 = vmatprep.subr.mxu0 0.0
      %752 = vmatpush1.msra.mxu0 0.0
      %753 = vmatprep.subr.mxu0 0.0
      %754 = vmatpush1.msra.mxu0 0.0
      %755 = vmatprep.subr.mxu0 0.0
      %756 = vmatpush1.msra.mxu0 0.0
      %757 = vmatprep.subr.mxu0 0.0
      %758 = vmatpush1.msra.mxu0 0.0
      %759 = vmatprep.subr.mxu0 0.0
      %760 = vmatpush1.msra.mxu0 0.0
      %761 = vmatprep.subr.mxu0 0.0
      %762 = vmatpush1.msra.mxu0 0.0
      %763 = vmatprep.subr.mxu0 0.0
      %764 = vmatpush1.msra.mxu0 0.0
      %765 = vmatprep.subr.mxu0 0.0
      %766 = vmatpush1.msra.mxu0 0.0
      %767 = vmatprep.subr.mxu0 0.0
      %768 = vmatpush1.msra.mxu0 0.0
      %769 = vmatprep.subr.mxu0 0.0
      %770 = vmatpush1.msra.mxu0 0.0
      %771 = vmatprep.subr.mxu0 0.0
      %772 = vmatpush1.msra.mxu0 0.0
      %773 = vmatprep.subr.mxu0 0.0
      %774 = vmatpush1.msra.mxu0 0.0
      %775 = vmatprep.subr.mxu0 0.0
      %776 = vmatpush1.msra.mxu0 0.0
      %777 = vmatprep.subr.mxu0 0.0
      %778 = vmatpush1.msra.mxu0 0.0
      %779 = vmatprep.subr.mxu0 0.0
      %780 = vmatpush1.msra.mxu0 0.0
      %781 = vmatprep.subr.mxu0 0.0
      %782 = vmatpush1.msra.mxu0 0.0
      %783 = vmatprep.subr.mxu0 0.0
      %784 = vmatpush1.msra.mxu0 0.0
      %785 = vmatprep.subr.mxu0 0.0
      %786 = vmatpush1.msra.mxu0 0.0
      %787 = vmatprep.subr.mxu0 0.0
      %788 = vmatpush1.msra.mxu0 0.0
      %789 = vmatprep.subr.mxu0 0.0
      %790 = vmatpush1.msra.mxu0 0.0
      %791 = vmatprep.subr.mxu0 0.0
      %792 = vmatpush1.msra.mxu0 0.0
      %793 = vmatprep.subr.mxu0 0.0
      %794 = vmatpush1.msra.mxu0 0.0
      %795 = vmatprep.subr.mxu0 0.0
      %796 = vmatpush1.msra.mxu0 0.0
      %797 = vmatprep.mubr.f32.mxu0 0.0
      %798 = vmatmul.mubr.f32.gmra.mrb[0].mxu0 %v722
      %v799 = vpop.f32.mrb[0].mxu0
      %v800 = vadd.f32 0.0, %v799
      %v801 = vpop.f32.mrb[0].mxu0
      %802 = vmatprep.mubr.f32.mxu0 0.0
      %803 = vmatmul.mubr.f32.gmra.mrb[0].mxu0 %v725
      %v804 = vpop.f32.mrb[0].mxu0
      %v805 = vadd.f32 0.0, %v804
      %v806 = vpop.f32.mrb[0].mxu0
      %807 = vmatprep.mubr.f32.mxu0 0.0
      %808 = vmatmul.mubr.f32.gmra.mrb[0].mxu0 %v728
      %v809 = vpop.f32.mrb[0].mxu0
      %v810 = vadd.f32 0.0, %v809
      %v811 = vpop.f32.mrb[0].mxu0
      %812 = vmatprep.mubr.f32.mxu0 0.0
      %813 = vmatmul.mubr.f32.gmra.mrb[0].mxu0 %v731
      %v814 = vpop.f32.mrb[0].mxu0
      %v815 = vadd.f32 0.0, %v814
      %v816 = vpop.f32.mrb[0].mxu0
      %817 = vdwg.mxu0
      %v818 = vmul.f32 %v800, %v608
      %v819 = vmul.f32 %v805, %v609
      %v820 = vmul.f32 %v810, %v610
      %v821 = vmul.f32 %v815, %v611
      %v822 = vpack.c.bf16 %v676, %v676
      %v823 = vpack.c.bf16 %v819, %v818
      %v824 = vpack.c.bf16 %v821, %v820
      %v826 = vsel %vm637, %v822, 0
      %828 = vmatprep.subr.bf16.mxu0 0
      %829 = vmatpush1.bf16.msra.mxu0 %v823
      %830 = vmatprep.subr.bf16.mxu0 0
      %831 = vmatpush1.bf16.msra.mxu0 %v824
      %832 = vmatprep.subr.bf16.mxu0 0
      %833 = vmatpush1.bf16.msra.mxu0 0
      %834 = vmatprep.subr.bf16.mxu0 0
      %835 = vmatpush1.bf16.msra.mxu0 0
      %836 = vmatprep.subr.bf16.mxu0 0
      %837 = vmatpush1.bf16.msra.mxu0 0
      %838 = vmatprep.subr.bf16.mxu0 0
      %839 = vmatpush1.bf16.msra.mxu0 0
      %840 = vmatprep.subr.bf16.mxu0 0
      %841 = vmatpush1.bf16.msra.mxu0 0
      %842 = vmatprep.subr.bf16.mxu0 0
      %843 = vmatpush1.bf16.msra.mxu0 0
      %844 = vmatprep.subr.bf16.mxu0 0
      %845 = vmatpush1.bf16.msra.mxu0 0
      %846 = vmatprep.subr.bf16.mxu0 0
      %847 = vmatpush1.bf16.msra.mxu0 0
      %848 = vmatprep.subr.bf16.mxu0 0
      %849 = vmatpush1.bf16.msra.mxu0 0
      %850 = vmatprep.subr.bf16.mxu0 0
      %851 = vmatpush1.bf16.msra.mxu0 0
      %852 = vmatprep.subr.bf16.mxu0 0
      %853 = vmatpush1.bf16.msra.mxu0 0
      %854 = vmatprep.subr.bf16.mxu0 0
      %855 = vmatpush1.bf16.msra.mxu0 0
      %856 = vmatprep.subr.bf16.mxu0 0
      %857 = vmatpush1.bf16.msra.mxu0 0
      %858 = vmatprep.subr.bf16.mxu0 0
      %859 = vmatpush1.bf16.msra.mxu0 0
      %860 = vmatprep.mubr.bf16.mxu0 0
      %861 = vmatmul.mubr.bf16.gmra.mrb[0].mxu0 %v826
      %v862 = vpop.f32.mrb[0].mxu0
      %v863 = vadd.f32 0.0, %v862
      %v864 = vpop.f32.mrb[0].mxu0
      %v865 = vpop.f32.mrb[0].mxu0
      %v866 = vpop.f32.mrb[0].mxu0
      %867 = vdwg.mxu0
      %v868 = vmul.f32 %v863, 0.35355338
      %v869 = vpack.c.bf16 %v868, %v868
      %v870 = vld [vmem:[%s6] sm:$0xf]
      %v871 = vld [vmem:[%s6 + $0x4] sm:$0xf]
      %v872 = vld [vmem:[%s6 + $0x8] sm:$0xf]
      %v873 = vld [vmem:[%s6 + $0xc] sm:$0xf]
      %v874 = vld [vmem:[%s7] sm:$0x1]
      %v876 = vlaneseq
      %v877 = vshrl.u32 %v876, 7
      %v878 = vsub.s32 0, %v877
      %v879 = vrot.slane %v874, %v878
      %v885 = vunpack.c.l.b16 %v870
      %v886 = vunpack.c.l.b16 %v871
      %v887 = vunpack.c.l.b16 %v872
      %v888 = vunpack.c.l.b16 %v873
      %v889 = vpack.c.b16 %v886, %v885
      %v890 = vpack.c.b16 %v888, %v887
      %v894 = vsel %vm637, %v869, 0
      %896 = vmatprep.subr.bf16.mxu0 0
      %897 = vmatpush1.bf16.msra.mxu0 %v889
      %898 = vmatprep.subr.bf16.mxu0 0
      %899 = vmatpush1.bf16.msra.mxu0 %v890
      %900 = vmatprep.subr.bf16.mxu0 0
      %901 = vmatpush1.bf16.msra.mxu0 0
      %902 = vmatprep.subr.bf16.mxu0 0
      %903 = vmatpush1.bf16.msra.mxu0 0
      %904 = vmatprep.subr.bf16.mxu0 0
      %905 = vmatpush1.bf16.msra.mxu0 0
      %906 = vmatprep.subr.bf16.mxu0 0
      %907 = vmatpush1.bf16.msra.mxu0 0
      %908 = vmatprep.subr.bf16.mxu0 0
      %909 = vmatpush1.bf16.msra.mxu0 0
      %910 = vmatprep.subr.bf16.mxu0 0
      %911 = vmatpush1.bf16.msra.mxu0 0
      %912 = vmatprep.subr.bf16.mxu0 0
      %913 = vmatpush1.bf16.msra.mxu0 0
      %914 = vmatprep.subr.bf16.mxu0 0
      %915 = vmatpush1.bf16.msra.mxu0 0
      %916 = vmatprep.subr.bf16.mxu0 0
      %917 = vmatpush1.bf16.msra.mxu0 0
      %918 = vmatprep.subr.bf16.mxu0 0
      %919 = vmatpush1.bf16.msra.mxu0 0
      %920 = vmatprep.subr.bf16.mxu0 0
      %921 = vmatpush1.bf16.msra.mxu0 0
      %922 = vmatprep.subr.bf16.mxu0 0
      %923 = vmatpush1.bf16.msra.mxu0 0
      %924 = vmatprep.subr.bf16.mxu0 0
      %925 = vmatpush1.bf16.msra.mxu0 0
      %926 = vmatprep.subr.bf16.mxu0 0
      %927 = vmatpush1.bf16.msra.mxu0 0
      %928 = vmatprep.mubr.bf16.mxu0 0
      %929 = vmatmul.mubr.bf16.gmra.mrb[0].mxu0 %v894
      %v930 = vpop.f32.mrb[0].mxu0
      %v931 = vadd.f32 %v879, %v930
      %v932 = vpop.f32.mrb[0].mxu0
      %v933 = vpop.f32.mrb[0].mxu0
      %v934 = vpop.f32.mrb[0].mxu0
      %935 = vdwg.mxu0
      %v936 = vadd.f32 %v607, %v931
      %v937 = vsel %vm637, %v936, 0.0
      %938 = vadd.xlane.f32.xlu0 %v937
      %v939 = vpop.xlane.xlu0 %938
      %v940 = vrcp.pop 32.0
      %v941 = vmul.f32 %v939, %v940
      %v942 = vsub.f32 %v936, %v941
      %v943 = vmul.f32 %v942, %v942
      %v944 = vsel %vm637, %v943, 0.0
      %945 = vadd.xlane.f32.xlu0 %v944
      %v946 = vpop.xlane.xlu0 %945
      %v947 = vmul.f32 %v946, %v940
      %v948 = vadd.f32 %v947, 1e-05
      %v949 = vrsqrt.pop %v948
      %v950 = vmul.f32 %v942, %v949
      %v951 = vlaneseq
      %v952 = vshrl.u32 %v951, 7
      %v953 = vsub.s32 0, %v952
      %v954 = vrot.slane %v612, %v953
      %v955 = vmul.f32 %v950, %v954
      %v956 = vlaneseq
      %v957 = vshrl.u32 %v956, 7
      %v958 = vsub.s32 0, %v957
      %v959 = vrot.slane %v613, %v958
      %v960 = vadd.f32 %v955, %v959
      %v961 = vld [vmem:[%s8] sm:$0xf]
      %v962 = vld [vmem:[%s8 + $0x4] sm:$0xf]
      %v963 = vld [vmem:[%s8 + $0x8] sm:$0xf]
      %v964 = vld [vmem:[%s8 + $0xc] sm:$0xf]
      %v965 = vld [vmem:[%s9] sm:$0x1]
      %v966 = vpack.c.bf16 %v960, %v960
      %v968 = vlaneseq
      %v969 = vshrl.u32 %v968, 7
      %v970 = vsub.s32 0, %v969
      %v971 = vrot.slane %v965, %v970
      %v977 = vunpack.c.l.b16 %v961
      %v978 = vunpack.c.l.b16 %v962
      %v979 = vunpack.c.l.b16 %v963
      %v980 = vunpack.c.l.b16 %v964
      %v981 = vpack.c.b16 %v978, %v977
      %v982 = vpack.c.b16 %v980, %v979
      %v986 = vsel %vm637, %v966, 0
      %988 = vmatprep.subr.bf16.mxu0 0
      %989 = vmatpush1.bf16.msra.mxu0 %v981
      %990 = vmatprep.subr.bf16.mxu0 0
      %991 = vmatpush1.bf16.msra.mxu0 %v982
      %992 = vmatprep.subr.bf16.mxu0 0
      %993 = vmatpush1.bf16.msra.mxu0 0
      %994 = vmatprep.subr.bf16.mxu0 0
      %995 = vmatpush1.bf16.msra.mxu0 0
      %996 = vmatprep.subr.bf16.mxu0 0
      %997 = vmatpush1.bf16.msra.mxu0 0
      %998 = vmatprep.subr.bf16.mxu0 0
      %999 = vmatpush1.bf16.msra.mxu0 0
      %1000 = vmatprep.subr.bf16.mxu0 0
      %1001 = vmatpush1.bf16.msra.mxu0 0
      %1002 = vmatprep.subr.bf16.mxu0 0
      %1003 = vmatpush1.bf16.msra.mxu0 0
      %1004 = vmatprep.subr.bf16.mxu0 0
      %1005 = vmatpush1.bf16.msra.mxu0 0
      %1006 = vmatprep.subr.bf16.mxu0 0
      %1007 = vmatpush1.bf16.msra.mxu0 0
      %1008 = vmatprep.subr.bf16.mxu0 0
      %1009 = vmatpush1.bf16.msra.mxu0 0
      %1010 = vmatprep.subr.bf16.mxu0 0
      %1011 = vmatpush1.bf16.msra.mxu0 0
      %1012 = vmatprep.subr.bf16.mxu0 0
      %1013 = vmatpush1.bf16.msra.mxu0 0
      %1014 = vmatprep.subr.bf16.mxu0 0
      %1015 = vmatpush1.bf16.msra.mxu0 0
      %1016 = vmatprep.subr.bf16.mxu0 0
      %1017 = vmatpush1.bf16.msra.mxu0 0
      %1018 = vmatprep.subr.bf16.mxu0 0
      %1019 = vmatpush1.bf16.msra.mxu0 0
      %1020 = vmatprep.mubr.bf16.mxu0 0
      %1021 = vmatmul.mubr.bf16.gmra.mrb[0].mxu0 %v986
      %v1022 = vpop.f32.mrb[0].mxu0
      %v1023 = vadd.f32 %v971, %v1022
      %v1024 = vpop.f32.mrb[0].mxu0
      %v1025 = vpop.f32.mrb[0].mxu0
      %v1026 = vpop.f32.mrb[0].mxu0
      %1027 = vdwg.mxu0
      %v1028 = vld [vmem:[%s596] sm:$0xf]
      %1029 = vrot.lane.b32.xlu0 %v981, 96
      %v1030 = vpop.permute.xlu0 %1029
      %1031 = vrot.lane.b32.xlu0 %v982, 96
      %v1032 = vpop.permute.xlu0 %1031
      %1035 = vrot.lane.b32.xlu0 %v971, 96
      %v1036 = vpop.permute.xlu0 %1035
      %v1039 = vsel %vm637, %v1028, 0
      %1041 = vmatprep.subr.bf16.mxu0 0
      %1042 = vmatpush1.bf16.msra.mxu0 %v1030
      %1043 = vmatprep.subr.bf16.mxu0 0
      %1044 = vmatpush1.bf16.msra.mxu0 %v1032
      %1045 = vmatprep.subr.bf16.mxu0 0
      %1046 = vmatpush1.bf16.msra.mxu0 0
      %1047 = vmatprep.subr.bf16.mxu0 0
      %1048 = vmatpush1.bf16.msra.mxu0 0
      %1049 = vmatprep.subr.bf16.mxu0 0
      %1050 = vmatpush1.bf16.msra.mxu0 0
      %1051 = vmatprep.subr.bf16.mxu0 0
      %1052 = vmatpush1.bf16.msra.mxu0 0
      %1053 = vmatprep.subr.bf16.mxu0 0
      %1054 = vmatpush1.bf16.msra.mxu0 0
      %1055 = vmatprep.subr.bf16.mxu0 0
      %1056 = vmatpush1.bf16.msra.mxu0 0
      %1057 = vmatprep.subr.bf16.mxu0 0
      %1058 = vmatpush1.bf16.msra.mxu0 0
      %1059 = vmatprep.subr.bf16.mxu0 0
      %1060 = vmatpush1.bf16.msra.mxu0 0
      %1061 = vmatprep.subr.bf16.mxu0 0
      %1062 = vmatpush1.bf16.msra.mxu0 0
      %1063 = vmatprep.subr.bf16.mxu0 0
      %1064 = vmatpush1.bf16.msra.mxu0 0
      %1065 = vmatprep.subr.bf16.mxu0 0
      %1066 = vmatpush1.bf16.msra.mxu0 0
      %1067 = vmatprep.subr.bf16.mxu0 0
      %1068 = vmatpush1.bf16.msra.mxu0 0
      %1069 = vmatprep.subr.bf16.mxu0 0
      %1070 = vmatpush1.bf16.msra.mxu0 0
      %1071 = vmatprep.subr.bf16.mxu0 0
      %1072 = vmatpush1.bf16.msra.mxu0 0
      %1073 = vmatprep.mubr.bf16.mxu0 0
      %1074 = vmatmul.mubr.bf16.gmra.mrb[0].mxu0 %v1039
      %v1075 = vpop.f32.mrb[0].mxu0
      %v1076 = vadd.f32 %v1036, %v1075
      %v1077 = vpop.f32.mrb[0].mxu0
      %v1078 = vpop.f32.mrb[0].mxu0
      %v1079 = vpop.f32.mrb[0].mxu0
      %1080 = vdwg.mxu0
      %v1081 = vld [vmem:[%s600] sm:$0xf]
      %1082 = vrot.lane.b32.xlu0 %v981, 64
      %v1083 = vpop.permute.xlu0 %1082
      %1084 = vrot.lane.b32.xlu0 %v982, 64
      %v1085 = vpop.permute.xlu0 %1084
      %1088 = vrot.lane.b32.xlu0 %v971, 64
      %v1089 = vpop.permute.xlu0 %1088
      %v1092 = vsel %vm637, %v1081, 0
      %1094 = vmatprep.subr.bf16.mxu0 0
      %1095 = vmatpush1.bf16.msra.mxu0 %v1083
      %1096 = vmatprep.subr.bf16.mxu0 0
      %1097 = vmatpush1.bf16.msra.mxu0 %v1085
      %1098 = vmatprep.subr.bf16.mxu0 0
      %1099 = vmatpush1.bf16.msra.mxu0 0
      %1100 = vmatprep.subr.bf16.mxu0 0
      %1101 = vmatpush1.bf16.msra.mxu0 0
      %1102 = vmatprep.subr.bf16.mxu0 0
      %1103 = vmatpush1.bf16.msra.mxu0 0
      %1104 = vmatprep.subr.bf16.mxu0 0
      %1105 = vmatpush1.bf16.msra.mxu0 0
      %1106 = vmatprep.subr.bf16.mxu0 0
      %1107 = vmatpush1.bf16.msra.mxu0 0
      %1108 = vmatprep.subr.bf16.mxu0 0
      %1109 = vmatpush1.bf16.msra.mxu0 0
      %1110 = vmatprep.subr.bf16.mxu0 0
      %1111 = vmatpush1.bf16.msra.mxu0 0
      %1112 = vmatprep.subr.bf16.mxu0 0
      %1113 = vmatpush1.bf16.msra.mxu0 0
      %1114 = vmatprep.subr.bf16.mxu0 0
      %1115 = vmatpush1.bf16.msra.mxu0 0
      %1116 = vmatprep.subr.bf16.mxu0 0
      %1117 = vmatpush1.bf16.msra.mxu0 0
      %1118 = vmatprep.subr.bf16.mxu0 0
      %1119 = vmatpush1.bf16.msra.mxu0 0
      %1120 = vmatprep.subr.bf16.mxu0 0
      %1121 = vmatpush1.bf16.msra.mxu0 0
      %1122 = vmatprep.subr.bf16.mxu0 0
      %1123 = vmatpush1.bf16.msra.mxu0 0
      %1124 = vmatprep.subr.bf16.mxu0 0
      %1125 = vmatpush1.bf16.msra.mxu0 0
      %1126 = vmatprep.mubr.bf16.mxu0 0
      %1127 = vmatmul.mubr.bf16.gmra.mrb[0].mxu0 %v1092
      %v1128 = vpop.f32.mrb[0].mxu0
      %v1129 = vadd.f32 %v1089, %v1128
      %v1130 = vpop.f32.mrb[0].mxu0
      %v1131 = vpop.f32.mrb[0].mxu0
      %v1132 = vpop.f32.mrb[0].mxu0
      %1133 = vdwg.mxu0
      %1134 = vxpose.xlu0.b32.start [1/16] %v1076, 128
      %1135 = vxpose.xlu0.b32.cont [2/16] 0.0, 128
      %1136 = vxpose.xlu0.b32.cont [3/16] 0.0, 128
      %1137 = vxpose.xlu0.b32.cont [4/16] 0.0, 128
      %1138 = vxpose.xlu0.b32.cont [5/16] 0.0, 128
      %1139 = vxpose.xlu0.b32.cont [6/16] 0.0, 128
      %1140 = vxpose.xlu0.b32.cont [7/16] 0.0, 128
      %1141 = vxpose.xlu0.b32.cont [8/16] 0.0, 128
      %1142 = vxpose.xlu0.b32.cont [9/16] 0.0, 128
      %1143 = vxpose.xlu0.b32.cont [10/16] 0.0, 128
      %1144 = vxpose.xlu0.b32.cont [11/16] 0.0, 128
      %1145 = vxpose.xlu0.b32.cont [12/16] 0.0, 128
      %1146 = vxpose.xlu0.b32.cont [13/16] 0.0, 128
      %1147 = vxpose.xlu0.b32.cont [14/16] 0.0, 128
      %1148 = vxpose.xlu0.b32.cont [15/16] 0.0, 128
      %1149 = vxpose.xlu0.b32.end [16/16] 0.0, 128
      %v1150 = vpop.trf.xlu0
      %v1151 = vpop.trf.xlu0
      %v1152 = vpop.trf.xlu0
      %v1153 = vpop.trf.xlu0
      %v1154 = vpop.trf.xlu0
      %v1155 = vpop.trf.xlu0
      %v1156 = vpop.trf.xlu0
      %v1157 = vpop.trf.xlu0
      %v1158 = vpop.trf.xlu0
      %v1159 = vpop.trf.xlu0
      %v1160 = vpop.trf.xlu0
      %v1161 = vpop.trf.xlu0
      %v1162 = vpop.trf.xlu0
      %v1163 = vpop.trf.xlu0
      %v1164 = vpop.trf.xlu0
      %v1165 = vpop.trf.xlu0
      %v1167 = vsel %vm720, %v1150, 0
      %v1170 = vsel %vm720, %v1151, 0
      %v1173 = vsel %vm720, %v1152, 0
      %v1176 = vsel %vm720, %v1153, 0
      %1178 = vmatprep.subr.mxu0 0.0
      %1179 = vmatpush1.msra.mxu0 %v1129
      %1180 = vmatprep.subr.mxu0 0.0
      %1181 = vmatpush1.msra.mxu0 0.0
      %1182 = vmatprep.subr.mxu0 0.0
      %1183 = vmatpush1.msra.mxu0 0.0
      %1184 = vmatprep.subr.mxu0 0.0
      %1185 = vmatpush1.msra.mxu0 0.0
      %1186 = vmatprep.subr.mxu0 0.0
      %1187 = vmatpush1.msra.mxu0 0.0
      %1188 = vmatprep.subr.mxu0 0.0
      %1189 = vmatpush1.msra.mxu0 0.0
      %1190 = vmatprep.subr.mxu0 0.0
      %1191 = vmatpush1.msra.mxu0 0.0
      %1192 = vmatprep.subr.mxu0 0.0
      %1193 = vmatpush1.msra.mxu0 0.0
      %1194 = vmatprep.subr.mxu0 0.0
      %1195 = vmatpush1.msra.mxu0 0.0
      %1196 = vmatprep.subr.mxu0 0.0
      %1197 = vmatpush1.msra.mxu0 0.0
      %1198 = vmatprep.subr.mxu0 0.0
      %1199 = vmatpush1.msra.mxu0 0.0
      %1200 = vmatprep.subr.mxu0 0.0
      %1201 = vmatpush1.msra.mxu0 0.0
      %1202 = vmatprep.subr.mxu0 0.0
      %1203 = vmatpush1.msra.mxu0 0.0
      %1204 = vmatprep.subr.mxu0 0.0
      %1205 = vmatpush1.msra.mxu0 0.0
      %1206 = vmatprep.subr.mxu0 0.0
      %1207 = vmatpush1.msra.mxu0 0.0
      %1208 = vmatprep.subr.mxu0 0.0
      %1209 = vmatpush1.msra.mxu0 0.0
      %1210 = vmatprep.subr.mxu0 0.0
      %1211 = vmatpush1.msra.mxu0 0.0
      %1212 = vmatprep.subr.mxu0 0.0
      %1213 = vmatpush1.msra.mxu0 0.0
      %1214 = vmatprep.subr.mxu0 0.0
      %1215 = vmatpush1.msra.mxu0 0.0
      %1216 = vmatprep.subr.mxu0 0.0
      %1217 = vmatpush1.msra.mxu0 0.0
      %1218 = vmatprep.subr.mxu0 0.0
      %1219 = vmatpush1.msra.mxu0 0.0
      %1220 = vmatprep.subr.mxu0 0.0
      %1221 = vmatpush1.msra.mxu0 0.0
      %1222 = vmatprep.subr.mxu0 0.0
      %1223 = vmatpush1.msra.mxu0 0.0
      %1224 = vmatprep.subr.mxu0 0.0
      %1225 = vmatpush1.msra.mxu0 0.0
      %1226 = vmatprep.subr.mxu0 0.0
      %1227 = vmatpush1.msra.mxu0 0.0
      %1228 = vmatprep.subr.mxu0 0.0
      %1229 = vmatpush1.msra.mxu0 0.0
      %1230 = vmatprep.subr.mxu0 0.0
      %1231 = vmatpush1.msra.mxu0 0.0
      %1232 = vmatprep.subr.mxu0 0.0
      %1233 = vmatpush1.msra.mxu0 0.0
      %1234 = vmatprep.subr.mxu0 0.0
      %1235 = vmatpush1.msra.mxu0 0.0
      %1236 = vmatprep.subr.mxu0 0.0
      %1237 = vmatpush1.msra.mxu0 0.0
      %1238 = vmatprep.subr.mxu0 0.0
      %1239 = vmatpush1.msra.mxu0 0.0
      %1240 = vmatprep.subr.mxu0 0.0
      %1241 = vmatpush1.msra.mxu0 0.0
      %1242 = vmatprep.mubr.f32.mxu0 0.0
      %1243 = vmatmul.mubr.f32.gmra.mrb[0].mxu0 %v1167
      %v1244 = vpop.f32.mrb[0].mxu0
      %v1245 = vadd.f32 0.0, %v1244
      %v1246 = vpop.f32.mrb[0].mxu0
      %1247 = vmatprep.mubr.f32.mxu0 0.0
      %1248 = vmatmul.mubr.f32.gmra.mrb[0].mxu0 %v1170
      %v1249 = vpop.f32.mrb[0].mxu0
      %v1250 = vadd.f32 0.0, %v1249
      %v1251 = vpop.f32.mrb[0].mxu0
      %1252 = vmatprep.mubr.f32.mxu0 0.0
      %1253 = vmatmul.mubr.f32.gmra.mrb[0].mxu0 %v1173
      %v1254 = vpop.f32.mrb[0].mxu0
      %v1255 = vadd.f32 0.0, %v1254
      %v1256 = vpop.f32.mrb[0].mxu0
      %1257 = vmatprep.mubr.f32.mxu0 0.0
      %1258 = vmatmul.mubr.f32.gmra.mrb[0].mxu0 %v1176
      %v1259 = vpop.f32.mrb[0].mxu0
      %v1260 = vadd.f32 0.0, %v1259
      %v1261 = vpop.f32.mrb[0].mxu0
      %1262 = vdwg.mxu0
      %v1263 = vmul.f32 %v1245, %v608
      %v1264 = vmul.f32 %v1250, %v609
      %v1265 = vmul.f32 %v1255, %v610
      %v1266 = vmul.f32 %v1260, %v611
      %v1267 = vpack.c.bf16 %v1023, %v1023
      %v1268 = vpack.c.bf16 %v1264, %v1263
      %v1269 = vpack.c.bf16 %v1266, %v1265
      %v1271 = vsel %vm637, %v1267, 0
      %1273 = vmatprep.subr.bf16.mxu0 0
      %1274 = vmatpush1.bf16.msra.mxu0 %v1268
      %1275 = vmatprep.subr.bf16.mxu0 0
      %1276 = vmatpush1.bf16.msra.mxu0 %v1269
      %1277 = vmatprep.subr.bf16.mxu0 0
      %1278 = vmatpush1.bf16.msra.mxu0 0
      %1279 = vmatprep.subr.bf16.mxu0 0
      %1280 = vmatpush1.bf16.msra.mxu0 0
      %1281 = vmatprep.subr.bf16.mxu0 0
      %1282 = vmatpush1.bf16.msra.mxu0 0
      %1283 = vmatprep.subr.bf16.mxu0 0
      %1284 = vmatpush1.bf16.msra.mxu0 0
      %1285 = vmatprep.subr.bf16.mxu0 0
      %1286 = vmatpush1.bf16.msra.mxu0 0
      %1287 = vmatprep.subr.bf16.mxu0 0
      %1288 = vmatpush1.bf16.msra.mxu0 0
      %1289 = vmatprep.subr.bf16.mxu0 0
      %1290 = vmatpush1.bf16.msra.mxu0 0
      %1291 = vmatprep.subr.bf16.mxu0 0
      %1292 = vmatpush1.bf16.msra.mxu0 0
      %1293 = vmatprep.subr.bf16.mxu0 0
      %1294 = vmatpush1.bf16.msra.mxu0 0
      %1295 = vmatprep.subr.bf16.mxu0 0
      %1296 = vmatpush1.bf16.msra.mxu0 0
      %1297 = vmatprep.subr.bf16.mxu0 0
      %1298 = vmatpush1.bf16.msra.mxu0 0
      %1299 = vmatprep.subr.bf16.mxu0 0
      %1300 = vmatpush1.bf16.msra.mxu0 0
      %1301 = vmatprep.subr.bf16.mxu0 0
      %1302 = vmatpush1.bf16.msra.mxu0 0
      %1303 = vmatprep.subr.bf16.mxu0 0
      %1304 = vmatpush1.bf16.msra.mxu0 0
      %1305 = vmatprep.mubr.bf16.mxu0 0
      %1306 = vmatmul.mubr.bf16.gmra.mrb[0].mxu0 %v1271
      %v1307 = vpop.f32.mrb[0].mxu0
      %v1308 = vadd.f32 0.0, %v1307
      %v1309 = vpop.f32.mrb[0].mxu0
      %v1310 = vpop.f32.mrb[0].mxu0
      %v1311 = vpop.f32.mrb[0].mxu0
      %1312 = vdwg.mxu0
      %v1313 = vmul.f32 %v1308, 0.35355338
      %v1314 = vpack.c.bf16 %v1313, %v1313
      %v1315 = vld [vmem:[%s10] sm:$0xf]
      %v1316 = vld [vmem:[%s10 + $0x4] sm:$0xf]
      %v1317 = vld [vmem:[%s10 + $0x8] sm:$0xf]
      %v1318 = vld [vmem:[%s10 + $0xc] sm:$0xf]
      %v1319 = vld [vmem:[%s11] sm:$0x1]
      %v1321 = vlaneseq
      %v1322 = vshrl.u32 %v1321, 7
      %v1323 = vsub.s32 0, %v1322
      %v1324 = vrot.slane %v1319, %v1323
      %v1330 = vunpack.c.l.b16 %v1315
      %v1331 = vunpack.c.l.b16 %v1316
      %v1332 = vunpack.c.l.b16 %v1317
      %v1333 = vunpack.c.l.b16 %v1318
      %v1334 = vpack.c.b16 %v1331, %v1330
      %v1335 = vpack.c.b16 %v1333, %v1332
      %v1339 = vsel %vm637, %v1314, 0
      %1341 = vmatprep.subr.bf16.mxu0 0
      %1342 = vmatpush1.bf16.msra.mxu0 %v1334
      %1343 = vmatprep.subr.bf16.mxu0 0
      %1344 = vmatpush1.bf16.msra.mxu0 %v1335
      %1345 = vmatprep.subr.bf16.mxu0 0
      %1346 = vmatpush1.bf16.msra.mxu0 0
      %1347 = vmatprep.subr.bf16.mxu0 0
      %1348 = vmatpush1.bf16.msra.mxu0 0
      %1349 = vmatprep.subr.bf16.mxu0 0
      %1350 = vmatpush1.bf16.msra.mxu0 0
      %1351 = vmatprep.subr.bf16.mxu0 0
      %1352 = vmatpush1.bf16.msra.mxu0 0
      %1353 = vmatprep.subr.bf16.mxu0 0
      %1354 = vmatpush1.bf16.msra.mxu0 0
      %1355 = vmatprep.subr.bf16.mxu0 0
      %1356 = vmatpush1.bf16.msra.mxu0 0
      %1357 = vmatprep.subr.bf16.mxu0 0
      %1358 = vmatpush1.bf16.msra.mxu0 0
      %1359 = vmatprep.subr.bf16.mxu0 0
      %1360 = vmatpush1.bf16.msra.mxu0 0
      %1361 = vmatprep.subr.bf16.mxu0 0
      %1362 = vmatpush1.bf16.msra.mxu0 0
      %1363 = vmatprep.subr.bf16.mxu0 0
      %1364 = vmatpush1.bf16.msra.mxu0 0
      %1365 = vmatprep.subr.bf16.mxu0 0
      %1366 = vmatpush1.bf16.msra.mxu0 0
      %1367 = vmatprep.subr.bf16.mxu0 0
      %1368 = vmatpush1.bf16.msra.mxu0 0
      %1369 = vmatprep.subr.bf16.mxu0 0
      %1370 = vmatpush1.bf16.msra.mxu0 0
      %1371 = vmatprep.subr.bf16.mxu0 0
      %1372 = vmatpush1.bf16.msra.mxu0 0
      %1373 = vmatprep.mubr.bf16.mxu0 0
      %1374 = vmatmul.mubr.bf16.gmra.mrb[0].mxu0 %v1339
      %v1375 = vpop.f32.mrb[0].mxu0
      %v1376 = vadd.f32 %v1324, %v1375
      %v1377 = vpop.f32.mrb[0].mxu0
      %v1378 = vpop.f32.mrb[0].mxu0
      %v1379 = vpop.f32.mrb[0].mxu0
      %1380 = vdwg.mxu0
      %v1381 = vadd.f32 %v960, %v1376
      %v1382 = vsel %vm637, %v1381, 0.0
      %1383 = vadd.xlane.f32.xlu0 %v1382
      %v1384 = vpop.xlane.xlu0 %1383
      %v1385 = vmul.f32 %v1384, %v940
      %v1386 = vsub.f32 %v1381, %v1385
      %v1387 = vmul.f32 %v1386, %v1386
      %v1388 = vsel %vm637, %v1387, 0.0
      %1389 = vadd.xlane.f32.xlu0 %v1388
      %v1390 = vpop.xlane.xlu0 %1389
      %v1391 = vmul.f32 %v1390, %v940
      %v1392 = vadd.f32 %v1391, 1e-05
      %v1393 = vrsqrt.pop %v1392
      %v1394 = vmul.f32 %v1386, %v1393
      %v1395 = vlaneseq
      %v1396 = vshrl.u32 %v1395, 7
      %v1397 = vsub.s32 1, %v1396
      %v1398 = vrot.slane %v612, %v1397
      %v1399 = vmul.f32 %v1394, %v1398
      %v1400 = vlaneseq
      %v1401 = vshrl.u32 %v1400, 7
      %v1402 = vsub.s32 1, %v1401
      %v1403 = vrot.slane %v613, %v1402
      %v1404 = vadd.f32 %v1399, %v1403
      %v1405 = vpack.c.bf16 %v1404, %v1404
      %v1406 = vld [vmem:[%s12] sm:$0xf]
      %v1407 = vld [vmem:[%s12 + $0x4] sm:$0xf]
      %v1408 = vld [vmem:[%s12 + $0x8] sm:$0xf]
      %v1409 = vld [vmem:[%s12 + $0xc] sm:$0xf]
      %v1410 = vld [vmem:[%s13] sm:$0x1]
      %v1412 = vlaneseq
      %v1413 = vshrl.u32 %v1412, 7
      %v1414 = vsub.s32 0, %v1413
      %v1415 = vrot.slane %v1410, %v1414
      %v1421 = vunpack.c.l.b16 %v1406
      %v1422 = vunpack.c.l.b16 %v1407
      %v1423 = vunpack.c.l.b16 %v1408
      %v1424 = vunpack.c.l.b16 %v1409
      %v1425 = vpack.c.b16 %v1422, %v1421
      %v1426 = vpack.c.b16 %v1424, %v1423
      %v1430 = vsel %vm637, %v1405, 0
      %1432 = vmatprep.subr.bf16.mxu0 0
      %1433 = vmatpush1.bf16.msra.mxu0 %v1425
      %1434 = vmatprep.subr.bf16.mxu0 0
      %1435 = vmatpush1.bf16.msra.mxu0 %v1426
      %1436 = vmatprep.subr.bf16.mxu0 0
      %1437 = vmatpush1.bf16.msra.mxu0 0
      %1438 = vmatprep.subr.bf16.mxu0 0
      %1439 = vmatpush1.bf16.msra.mxu0 0
      %1440 = vmatprep.subr.bf16.mxu0 0
      %1441 = vmatpush1.bf16.msra.mxu0 0
      %1442 = vmatprep.subr.bf16.mxu0 0
      %1443 = vmatpush1.bf16.msra.mxu0 0
      %1444 = vmatprep.subr.bf16.mxu0 0
      %1445 = vmatpush1.bf16.msra.mxu0 0
      %1446 = vmatprep.subr.bf16.mxu0 0
      %1447 = vmatpush1.bf16.msra.mxu0 0
      %1448 = vmatprep.subr.bf16.mxu0 0
      %1449 = vmatpush1.bf16.msra.mxu0 0
      %1450 = vmatprep.subr.bf16.mxu0 0
      %1451 = vmatpush1.bf16.msra.mxu0 0
      %1452 = vmatprep.subr.bf16.mxu0 0
      %1453 = vmatpush1.bf16.msra.mxu0 0
      %1454 = vmatprep.subr.bf16.mxu0 0
      %1455 = vmatpush1.bf16.msra.mxu0 0
      %1456 = vmatprep.subr.bf16.mxu0 0
      %1457 = vmatpush1.bf16.msra.mxu0 0
      %1458 = vmatprep.subr.bf16.mxu0 0
      %1459 = vmatpush1.bf16.msra.mxu0 0
      %1460 = vmatprep.subr.bf16.mxu0 0
      %1461 = vmatpush1.bf16.msra.mxu0 0
      %1462 = vmatprep.subr.bf16.mxu0 0
      %1463 = vmatpush1.bf16.msra.mxu0 0
      %1464 = vmatprep.mubr.bf16.mxu0 0
      %1465 = vmatmul.mubr.bf16.gmra.mrb[0].mxu0 %v1430
      %v1466 = vpop.f32.mrb[0].mxu0
      %v1467 = vadd.f32 %v1415, %v1466
      %v1468 = vpop.f32.mrb[0].mxu0
      %v1469 = vpop.f32.mrb[0].mxu0
      %v1470 = vpop.f32.mrb[0].mxu0
      %1471 = vdwg.mxu0
      %v1472 = vmax.f32 %v1467, 0.0
      %v1473 = vpack.c.bf16 %v1472, %v1472
      %v1474 = vld [vmem:[%s14] sm:$0xf]
      %v1475 = vld [vmem:[%s14 + $0x4] sm:$0xf]
      %v1476 = vld [vmem:[%s14 + $0x8] sm:$0xf]
      %v1477 = vld [vmem:[%s14 + $0xc] sm:$0xf]
      %v1478 = vld [vmem:[%s14 + $0x10] sm:$0xf]
      %v1479 = vld [vmem:[%s14 + $0x14] sm:$0xf]
      %v1480 = vld [vmem:[%s14 + $0x18] sm:$0xf]
      %v1481 = vld [vmem:[%s14 + $0x1c] sm:$0xf]
      %v1482 = vld [vmem:[%s14 + $0x20] sm:$0xf]
      %v1483 = vld [vmem:[%s14 + $0x24] sm:$0xf]
      %v1484 = vld [vmem:[%s14 + $0x28] sm:$0xf]
      %v1485 = vld [vmem:[%s14 + $0x2c] sm:$0xf]
      %v1486 = vld [vmem:[%s14 + $0x30] sm:$0xf]
      %v1487 = vld [vmem:[%s14 + $0x34] sm:$0xf]
      %v1488 = vld [vmem:[%s14 + $0x38] sm:$0xf]
      %v1489 = vld [vmem:[%s14 + $0x3c] sm:$0xf]
      %v1490 = vld [vmem:[%s15] sm:$0x1]
      %v1492 = vlaneseq
      %v1493 = vshrl.u32 %v1492, 7
      %v1494 = vsub.s32 0, %v1493
      %v1495 = vrot.slane %v1490, %v1494
      %v1513 = vunpack.c.l.b16 %v1474
      %v1514 = vunpack.c.l.b16 %v1475
      %v1515 = vunpack.c.l.b16 %v1476
      %v1516 = vunpack.c.l.b16 %v1477
      %v1517 = vunpack.c.l.b16 %v1478
      %v1518 = vunpack.c.l.b16 %v1479
      %v1519 = vunpack.c.l.b16 %v1480
      %v1520 = vunpack.c.l.b16 %v1481
      %v1521 = vunpack.c.l.b16 %v1482
      %v1522 = vunpack.c.l.b16 %v1483
      %v1523 = vunpack.c.l.b16 %v1484
      %v1524 = vunpack.c.l.b16 %v1485
      %v1525 = vunpack.c.l.b16 %v1486
      %v1526 = vunpack.c.l.b16 %v1487
      %v1527 = vunpack.c.l.b16 %v1488
      %v1528 = vunpack.c.l.b16 %v1489
      %v1529 = vpack.c.b16 %v1514, %v1513
      %v1530 = vpack.c.b16 %v1516, %v1515
      %v1531 = vpack.c.b16 %v1518, %v1517
      %v1532 = vpack.c.b16 %v1520, %v1519
      %v1533 = vpack.c.b16 %v1522, %v1521
      %v1534 = vpack.c.b16 %v1524, %v1523
      %v1535 = vpack.c.b16 %v1526, %v1525
      %v1536 = vpack.c.b16 %v1528, %v1527
      %1545 = vmatprep.subr.bf16.mxu0 0
      %1546 = vmatpush1.bf16.msra.mxu0 %v1529
      %1547 = vmatprep.subr.bf16.mxu0 0
      %1548 = vmatpush1.bf16.msra.mxu0 %v1530
      %1549 = vmatprep.subr.bf16.mxu0 0
      %1550 = vmatpush1.bf16.msra.mxu0 %v1531
      %1551 = vmatprep.subr.bf16.mxu0 0
      %1552 = vmatpush1.bf16.msra.mxu0 %v1532
      %1553 = vmatprep.subr.bf16.mxu0 0
      %1554 = vmatpush1.bf16.msra.mxu0 %v1533
      %1555 = vmatprep.subr.bf16.mxu0 0
      %1556 = vmatpush1.bf16.msra.mxu0 %v1534
      %1557 = vmatprep.subr.bf16.mxu0 0
      %1558 = vmatpush1.bf16.msra.mxu0 %v1535
      %1559 = vmatprep.subr.bf16.mxu0 0
      %1560 = vmatpush1.bf16.msra.mxu0 %v1536
      %1561 = vmatprep.subr.bf16.mxu0 0
      %1562 = vmatpush1.bf16.msra.mxu0 0
      %1563 = vmatprep.subr.bf16.mxu0 0
      %1564 = vmatpush1.bf16.msra.mxu0 0
      %1565 = vmatprep.subr.bf16.mxu0 0
      %1566 = vmatpush1.bf16.msra.mxu0 0
      %1567 = vmatprep.subr.bf16.mxu0 0
      %1568 = vmatpush1.bf16.msra.mxu0 0
      %1569 = vmatprep.subr.bf16.mxu0 0
      %1570 = vmatpush1.bf16.msra.mxu0 0
      %1571 = vmatprep.subr.bf16.mxu0 0
      %1572 = vmatpush1.bf16.msra.mxu0 0
      %1573 = vmatprep.subr.bf16.mxu0 0
      %1574 = vmatpush1.bf16.msra.mxu0 0
      %1575 = vmatprep.subr.bf16.mxu0 0
      %1576 = vmatpush1.bf16.msra.mxu0 0
      %1577 = vmatprep.mubr.bf16.mxu0 0
      %1578 = vmatmul.mubr.bf16.gmra.mrb[0].mxu0 %v1473
      %v1579 = vpop.f32.mrb[0].mxu0
      %v1580 = vadd.f32 %v1495, %v1579
      %v1581 = vpop.f32.mrb[0].mxu0
      %v1582 = vpop.f32.mrb[0].mxu0
      %v1583 = vpop.f32.mrb[0].mxu0
      %1584 = vdwg.mxu0
      %v1585 = vadd.f32 %v1404, %v1580
      %v1586 = vsel %vm637, %v1585, 0.0
      %1587 = vadd.xlane.f32.xlu0 %v1586
      %v1588 = vpop.xlane.xlu0 %1587
      %v1589 = vmul.f32 %v1588, %v940
      %v1590 = vsub.f32 %v1585, %v1589
      %v1591 = vmul.f32 %v1590, %v1590
      %v1592 = vsel %vm637, %v1591, 0.0
      %1593 = vadd.xlane.f32.xlu0 %v1592
      %v1594 = vpop.xlane.xlu0 %1593
      %v1595 = vmul.f32 %v1594, %v940
      %v1596 = vadd.f32 %v1595, 1e-05
      %v1597 = vrsqrt.pop %v1596
      %v1598 = vmul.f32 %v1590, %v1597
      %v1599 = vlaneseq
      %v1600 = vshrl.u32 %v1599, 7
      %v1601 = vsub.s32 2, %v1600
      %v1602 = vrot.slane %v612, %v1601
      %v1603 = vmul.f32 %v1598, %v1602
      %v1604 = vlaneseq
      %v1605 = vshrl.u32 %v1604, 7
      %v1606 = vsub.s32 2, %v1605
      %v1607 = vrot.slane %v613, %v1606
      %v1608 = vadd.f32 %v1603, %v1607
      %v1609 = vadd.f32 %v1404, %v1608
      %v1610 = vsel %vm637, %v1609, 0.0
      %1611 = vadd.xlane.f32.xlu0 %v1610
      %v1612 = vpop.xlane.xlu0 %1611
      %v1613 = vmul.f32 %v1612, %v940
      %v1614 = vsub.f32 %v1609, %v1613
      %v1615 = vmul.f32 %v1614, %v1614
      %v1616 = vsel %vm637, %v1615, 0.0
      %1617 = vadd.xlane.f32.xlu0 %v1616
      %v1618 = vpop.xlane.xlu0 %1617
      %v1619 = vmul.f32 %v1618, %v940
      %v1620 = vadd.f32 %v1619, 1e-05
      %v1621 = vrsqrt.pop %v1620
      %v1622 = vmul.f32 %v1614, %v1621
      %v1623 = vlaneseq
      %v1624 = vshrl.u32 %v1623, 7
      %v1625 = vsub.s32 3, %v1624
      %v1626 = vrot.slane %v612, %v1625
      %v1627 = vmul.f32 %v1622, %v1626
      %v1628 = vlaneseq
      %v1629 = vshrl.u32 %v1628, 7
      %v1630 = vsub.s32 3, %v1629
      %v1631 = vrot.slane %v613, %v1630
      %v1632 = vadd.f32 %v1627, %v1631
      %v1633 = vpack.c.bf16 %v1632, %v1632
      %vm1634 = vcmask 257024
      %1635 = vst.msk [vmem:[%s604] sm:$0xf] %vm1634, %v1633
      %p1636 = scmp.lt.s32.totalorder %s29, 1
      %s1637 = scalar_select %p1636, %s29, 1
      %s1638 = smul.addr %s1637, 4
      %s1639 = scalar_lea.vmem %s18, %s1638
      // Predicated region
      $region93: #{aiayn_forward.8} parent=91 // pred_check
        %p1640 = pneg %p440
      $region94: #{aiayn_forward.8} parent=91 // pred_check_branch
        %1642 = sbr.rel (%p1640) target = $region96
      $region95: #{aiayn_forward.8} parent=91 // pred_region
        _
      $region96: #{aiayn_forward.8} parent=91 // pred_fallthru
        _
    $region92: #{aiayn_forward.8} parent=5 // pred_fallthru
      _
    %p1643 = scmp.le.s32.totalorder 2, %s24
    // Predicated region
    $region97: #{aiayn_forward.8} parent=5 // pred_check
      %p1644 = pneg %p1643
    $region98: #{aiayn_forward.8} parent=5 // pred_check_branch
      %1646 = sbr.rel (%p1644) target = $region100
    $region99: #{aiayn_forward.8} parent=5 // pred_region
      %s1647 = ssub.s32 %s24, 2
      // Predicated region
      $region101: #{aiayn_forward.8} parent=99 // pred_check
        %p1648 = pneg %p446
      $region102: #{aiayn_forward.8} parent=99 // pred_check_branch
        %1650 = sbr.rel (%p1648) target = $region104
      $region103: #{aiayn_forward.8} parent=99 // pred_region
        %p1651 = scmp.lt.s32.totalorder %s30, 1
        %s1652 = scalar_select %p1651, %s30, 1
        %s1653 = smul.addr %s1652, 4
        %s1654 = scalar_lea.vmem %s18, %s1653
      $region104: #{aiayn_forward.8} parent=99 // pred_fallthru
        _
    $region100: #{aiayn_forward.8} parent=5 // pred_fallthru
      _
  $region6: #{aiayn_forward.8} parent=0 // loop_footer
    %s28 = sadd.s32 1, %s24
  $region7: #{aiayn_forward.8} parent=0 // loop_footer_branch
    %23 = sbr.rel target = $region3
  $region8: #{aiayn_forward.8} parent=0 // loop_exit
    _

// kernel: aiayn_forward.11
$region0: #{aiayn_forward.11}
  #allocation0 [shape = 'u32[]', space=smem, size = 0x4, offset = 0x4, fixed_abs, tag = 'smem constant byte address 0x4 - core index']
  #allocation1 [shape = 'u32[144,128]{1,0:T(1,128)}', space=vmem, size = 0x12000, scoped, tag = 'internal scratch']
  #allocation2 [shape = 'f32[16,1]{1,0:T(8,128)}', space=vmem, size = 0x2000, scoped, tag = 'scratch operand']
  #allocation3 [shape = 'f32[16,1]{1,0:T(8,128)}', space=vmem, size = 0x2000, scoped, tag = 'scratch operand']
  #allocation4 [shape = 'f32[16,1]{1,0:T(8,128)}', space=vmem, size = 0x2000, scoped, tag = 'scratch operand']
  %s0 = inlined_call_operand.vmem [shape: f32[16,64], index: 0, kind: input, shape index: {}]
  %s1 = inlined_call_operand.vmem [shape: s32[16,1], index: 1, kind: input, shape index: {}]
  %s2 = inlined_call_operand.vmem [shape: f32[16,1], index: 2, kind: output, shape index: {}]
  %s3 = sld [smem:[#allocation0]]
  $region26: #{aiayn_forward.11} parent=0
    _
  %s5 = ssub.s32 1, %s3
  %s6 = scalar_select 0, %s5, %s3
  // Predicated region
  $region2: #{aiayn_forward.11} parent=0 // pred_check
    _
  $region3: #{aiayn_forward.11} parent=0 // pred_check_branch
    %8 = sbr.rel (0) target = $region5
  $region4: #{aiayn_forward.11} parent=0 // pred_region
    _
  $region5: #{aiayn_forward.11} parent=0 // pred_fallthru
    _
  // Predicated region
  $region6: #{aiayn_forward.11} parent=0 // pred_check
    _
  $region7: #{aiayn_forward.11} parent=0 // pred_check_branch
    %10 = sbr.rel (0) target = $region9
  $region8: #{aiayn_forward.11} parent=0 // pred_region
    _
  $region9: #{aiayn_forward.11} parent=0 // pred_fallthru
    _
  %p11 = scmp.eq.s32.totalorder 0, 0
  // Predicated region
  $region10: #{aiayn_forward.11} parent=0 // pred_check
    %p12 = pneg %p11
  $region11: #{aiayn_forward.11} parent=0 // pred_check_branch
    %14 = sbr.rel (%p12) target = $region13
  $region12: #{aiayn_forward.11} parent=0 // pred_region
    %vm15 = vcmask 7168
    %16 = vst.msk [vmem:[#allocation2] sm:$0xff] %vm15, -inf
    %17 = vst.msk [vmem:[#allocation2 + $0x8] sm:$0xff] %vm15, -inf
    %18 = vst.msk [vmem:[#allocation3] sm:$0xff] %vm15, 0.0
    %19 = vst.msk [vmem:[#allocation3 + $0x8] sm:$0xff] %vm15, 0.0
    %20 = vst.msk [vmem:[#allocation4] sm:$0xff] %vm15, 0.0
    %21 = vst.msk [vmem:[#allocation4 + $0x8] sm:$0xff] %vm15, 0.0
  $region13: #{aiayn_forward.11} parent=0 // pred_fallthru
    _
  %v22 = vld [vmem:[%s0] sm:$0xff]
  %v23 = vld [vmem:[%s0 + $0x8] sm:$0xff]
  %v24 = vld [vmem:[%s1] sm:$0xff]
  %v25 = vld [vmem:[%s1 + $0x8] sm:$0xff]
  %v26 = vld [vmem:[#allocation2] sm:$0xff]
  %v27 = vld [vmem:[#allocation2 + $0x8] sm:$0xff]
  %vm28 = vcmask 523264
  %v29 = vsel %vm28, %v22, -inf
  %30 = vmax.xlane.f32.xlu0 %v29
  %v31 = vpop.xlane.xlu0 %30
  %v32 = vsel %vm28, %v23, -inf
  %33 = vmax.xlane.f32.xlu0 %v32
  %v34 = vpop.xlane.xlu0 %33
  %v35 = vmax.f32 %v26, %v31
  %v36 = vmax.f32 %v27, %v34
  %v37 = vld [vmem:[#allocation3] sm:$0xff]
  %v38 = vld [vmem:[#allocation3 + $0x8] sm:$0xff]
  %v39 = vsub.f32 %v26, %v35
  %v40 = vsub.f32 %v27, %v36
  %v41 = vmul.f32 %v39, 1.442695
  %v42 = vpow.pop %v41
  %v43 = vmul.f32 %v40, 1.442695
  %v44 = vpow.pop %v43
  %v45 = vmul.f32 %v37, %v42
  %v46 = vmul.f32 %v38, %v44
  %48 = vset.pattern.permute.xlu0 0
  %49 = vperm.xlu0 %48, %v35
  %v50 = vpop.permute.xlu0 %49
  %53 = vset.pattern.permute.xlu0 0
  %54 = vperm.xlu0 %53, %v36
  %v55 = vpop.permute.xlu0 %54
  %v57 = vsub.f32 %v22, %v50
  %v58 = vsub.f32 %v23, %v55
  %v59 = vmul.f32 %v57, 1.442695
  %v60 = vpow.pop %v59
  %v61 = vmul.f32 %v58, 1.442695
  %v62 = vpow.pop %v61
  %v63 = vsel %vm28, %v60, 0.0
  %64 = vadd.xlane.f32.xlu0 %v63
  %v65 = vpop.xlane.xlu0 %64
  %v66 = vsel %vm28, %v62, 0.0
  %67 = vadd.xlane.f32.xlu0 %v66
  %v68 = vpop.xlane.xlu0 %67
  %v69 = vadd.f32 %v45, %v65
  %v70 = vadd.f32 %v46, %v68
  %vm71 = vcmask 7168
  %72 = vst.msk [vmem:[#allocation3] sm:$0xff] %vm71, %v69
  %73 = vst.msk [vmem:[#allocation3 + $0x8] sm:$0xff] %vm71, %v70
  %74 = vst.msk [vmem:[#allocation2] sm:$0xff] %vm71, %v35
  %75 = vst.msk [vmem:[#allocation2 + $0x8] sm:$0xff] %vm71, %v36
  %v76 = vlaneseq
  %v77 = vand.u32 %v76, 127
  %s78 = smul.u32 0, 64
  %v79 = vstv %s78
  %v80 = vadd.s32 %v77, %v79
  %v81 = vld [vmem:[#allocation4] sm:$0xff]
  %v82 = vld [vmem:[#allocation4 + $0x8] sm:$0xff]
  %83 = vset.pattern.permute.xlu0 0
  %84 = vperm.xlu0 %83, %v24
  %v85 = vpop.permute.xlu0 %84
  %86 = vset.pattern.permute.xlu0 0
  %87 = vperm.xlu0 %86, %v25
  %v88 = vpop.permute.xlu0 %87
  %vm89 = vcmp.eq.s32.totalorder %v80, %v85
  %vm90 = vcmp.eq.s32.totalorder %v80, %v88
  %v91 = vsel %vm89, %v22, 0.0
  %v92 = vsel %vm90, %v23, 0.0
  %v93 = vsel %vm28, %v91, 0.0
  %94 = vadd.xlane.f32.xlu0 %v93
  %v95 = vpop.xlane.xlu0 %94
  %v96 = vsel %vm28, %v92, 0.0
  %97 = vadd.xlane.f32.xlu0 %v96
  %v98 = vpop.xlane.xlu0 %97
  %v99 = vadd.f32 %v81, %v95
  %v100 = vadd.f32 %v82, %v98
  %101 = vst.msk [vmem:[#allocation4] sm:$0xff] %vm71, %v99
  %102 = vst.msk [vmem:[#allocation4 + $0x8] sm:$0xff] %vm71, %v100
  // Predicated region
  $region14: #{aiayn_forward.11} parent=0 // pred_check
    %p103 = pneg %p11
  $region15: #{aiayn_forward.11} parent=0 // pred_check_branch
    %105 = sbr.rel (%p103) target = $region17
  $region16: #{aiayn_forward.11} parent=0 // pred_region
    %v106 = vld [vmem:[#allocation2] sm:$0xff]
    %v107 = vld [vmem:[#allocation2 + $0x8] sm:$0xff]
    %v108 = vld [vmem:[#allocation3] sm:$0xff]
    %v109 = vld [vmem:[#allocation3 + $0x8] sm:$0xff]
    %v110 = vlog2.pop %v108
    %v111 = vmul.f32 %v110, 0.6931472
    %v112 = vlog2.pop %v109
    %v113 = vmul.f32 %v112, 0.6931472
    %v114 = vadd.f32 %v106, %v111
    %v115 = vadd.f32 %v107, %v113
    %v116 = vld [vmem:[#allocation4] sm:$0xff]
    %v117 = vld [vmem:[#allocation4 + $0x8] sm:$0xff]
    %v118 = vsub.f32 %v114, %v116
    %v119 = vsub.f32 %v115, %v117
    %120 = vst.msk [vmem:[%s2] sm:$0xff] %vm71, %v118
    %121 = vst.msk [vmem:[%s2 + $0x8] sm:$0xff] %vm71, %v119
  $region17: #{aiayn_forward.11} parent=0 // pred_fallthru
    _
  // Predicated region
  $region18: #{aiayn_forward.11} parent=0 // pred_check
    _
  $region19: #{aiayn_forward.11} parent=0 // pred_check_branch
    %123 = sbr.rel (0) target = $region21
  $region20: #{aiayn_forward.11} parent=0 // pred_region
    _
  $region21: #{aiayn_forward.11} parent=0 // pred_fallthru
    _
  // Predicated region
  $region22: #{aiayn_forward.11} parent=0 // pred_check
    _
  $region23: #{aiayn_forward.11} parent=0 // pred_check_branch
    %125 = sbr.rel (0) target = $region25
  $region24: #{aiayn_forward.11} parent=0 // pred_region
    _
  $region25: #{aiayn_forward.11} parent=0 // pred_fallthru
    _

</llo_original>
